<compile_context>
chip_gen: v7x
topology: tpu7x:2x2x1
jax: 0.10.0
libtpu: 0.0.40
codegen_flags: <defaults>
</compile_context>

<pallas_src>
import functools

import jax
import jax.numpy as jnp
import numpy as np
from jax import lax
from jax.experimental import pallas as pl
from jax.experimental.pallas import tpu as pltpu


# ----------------------------------------------------------------------------
# Hardware-aware sizing helpers
# ----------------------------------------------------------------------------
def _vmem_limit_bytes():
    """Scoped-VMEM request sized per TPU generation.  Never request the full
    physical VMEM (v7x only has 64 MiB/core); v5e/v6e can go well above their
    16/32 MiB scoped defaults."""
    cap = None
    try:
        info = pltpu.get_tpu_info()
        cap = getattr(info, "vmem_capacity_bytes", None)
    except Exception:
        cap = None
    if not cap:
        cap = 64 * 1024 * 1024          # conservative fallback (v7x physical)
    return int(min(0.75 * cap, 100 * 1024 * 1024))


def _estimate_vmem_per_batch_elem(H, W, Cin, Chid, K, cbytes):
    """Rough per-batch-element VMEM working set: padded cat scratch, two live
    im2col patch matrices, f32 activations, double-buffered I/O blocks."""
    P = K // 2
    rows = H * W
    ccat = Cin + Chid
    pad = (H + 2 * P) * (W + 2 * P) * ccat * cbytes
    patches = 2 * rows * K * K * ccat * cbytes
    io = 2 * rows * (Cin + 2 * Chid) * max(cbytes, 4)
    act = rows * 4 * Chid * 4
    return pad + patches + io + act


def _pick_batch_tile(B, per_elem_bytes, vmem_budget_bytes):
    """Largest divisor of B that fits the VMEM budget while keeping the
    'parallel' batch grid >= 2 steps (even at B=2 -> grid (2,), so both v7x
    TensorCores get a step and pipelining has work to overlap)."""
    for bt in range(B, 0, -1):
        if B % bt:
            continue
        if bt * per_elem_bytes > vmem_budget_bytes:
            continue
        if B >= 2 and (B // bt) < 2:
            continue
        return bt
    return 1


# ----------------------------------------------------------------------------
# In-kernel helpers
# ----------------------------------------------------------------------------
def _zero_padding_border(pad_ref, P):
    """Zero only the P-wide border rings of a (Bt, H+2P, W+2P, C) scratch.
    Runs every grid step (not program_id-gated): under megacore the second
    core never sees program_id 0, and scratch is uninitialized at entry."""
    if P == 0:
        return
    Bt, Hp, Wp, C = pad_ref.shape
    H, W = Hp - 2 * P, Wp - 2 * P
    dt = pad_ref.dtype
    pad_ref[:, 0:P, :, :] = jnp.zeros((Bt, P, Wp, C), dt)
    pad_ref[:, H + P:Hp, :, :] = jnp.zeros((Bt, P, Wp, C), dt)
    pad_ref[:, P:H + P, 0:P, :] = jnp.zeros((Bt, H, P, C), dt)
    pad_ref[:, P:H + P, W + P:Wp, :] = jnp.zeros((Bt, H, P, C), dt)


def _im2col(pad_ref, K, H, W):
    """(Bt, H+2P, W+2P, C) padded scratch -> (Bt*H*W, K*K*C) patch matrix.
    Taps grouped per dy: each dy band is loaded from VMEM once and the K dx
    windows are sliced from the loaded value."""
    Bt, _, _, C = pad_ref.shape
    cols = []
    for dy in range(K):
        band = pad_ref[:, dy:dy + H, :, :]            # one load per dy
        for dx in range(K):
            cols.append(band[:, :, dx:dx + W, :].reshape(Bt * H * W, C))
    return jnp.concatenate(cols, axis=-1)


# ----------------------------------------------------------------------------
# Generic ConvGRUCell step (arbitrary h).  One grid step == Bt batch elements.
# ----------------------------------------------------------------------------
def _convgru_cell_kernel(x_ref, h_ref, wg_ref, bg_ref, wc_ref, bc_ref,
                         out_ref, cpad_ref, *, K, act_dtype):
    Bt, H, W, Cin = x_ref.shape
    Chid = h_ref.shape[-1]
    P = K // 2
    rows = Bt * H * W

    x_val = x_ref[...]
    h_val = h_ref[...]

    # Single SAME-padded cat(h, x) scratch; h occupies lanes [0, Chid) so the
    # candidate step below only needs to rewrite the leading lanes.
    _zero_padding_border(cpad_ref, P)
    cpad_ref[:, P:H + P, P:W + P, :] = jnp.concatenate([h_val, x_val], axis=-1)

    # One im2col patch -> ONE fused reset/update matmul
    # (contraction K*K*(Chid+Cin), N = 2*Chid).
    catpat = _im2col(cpad_ref, K, H, W)
    gates = jnp.dot(catpat, wg_ref[...], preferred_element_type=jnp.float32)
    gates = jax.nn.sigmoid((gates + bg_ref[...]).astype(act_dtype))
    reset = gates[:, :Chid]
    update = gates[:, Chid:]

    h_cur = h_val.reshape(rows, Chid).astype(act_dtype)

    # Candidate: overwrite only the h lanes of the same padded buffer with
    # reset*h (x lanes are still valid), rebuild the patch once, ONE matmul.
    rh = (reset * h_cur).astype(cpad_ref.dtype).reshape(Bt, H, W, Chid)
    cpad_ref[:, P:H + P, P:W + P, 0:Chid] = rh
    catpat2 = _im2col(cpad_ref, K, H, W)
    cand = jnp.dot(catpat2, wc_ref[...], preferred_element_type=jnp.float32)
    cand = jnp.tanh((cand + bc_ref[...]).astype(act_dtype))

    # (1 - u)*h + u*c == h + u*(c - h)   (one fewer VPU op)
    h_next = h_cur + update * (cand - h_cur)
    out_ref[...] = h_next.reshape(Bt, H, W, Chid).astype(out_ref.dtype)


# ----------------------------------------------------------------------------
# Specialized step for h == 0 (first step after reset_hidden):
# reset*h == 0, all h-path taps vanish, h_next = update * cand.
# Update + candidate convolutions fused along N into a single matmul.
# ----------------------------------------------------------------------------
def _convgru_cell_kernel_h0(x_ref, w_ref, b_ref, out_ref, xpad_ref,
                            *, K, Chid, act_dtype):
    Bt, H, W, Cin = x_ref.shape
    P = K // 2

    _zero_padding_border(xpad_ref, P)
    xpad_ref[:, P:H + P, P:W + P, :] = x_ref[...]
    xpat = _im2col(xpad_ref, K, H, W)             # (rows, K*K*Cin)

    pre = jnp.dot(xpat, w_ref[...], preferred_element_type=jnp.float32)
    pre = (pre + b_ref[...]).astype(act_dtype)     # (rows, 2*Chid)
    update = jax.nn.sigmoid(pre[:, :Chid])
    cand = jnp.tanh(pre[:, Chid:])

    h_next = update * cand
    out_ref[...] = h_next.reshape(Bt, H, W, Chid).astype(out_ref.dtype)


# ----------------------------------------------------------------------------
# Wrapper: weight fusion/reorder, bf16 casts, batch tiling, pallas_call
# ----------------------------------------------------------------------------
def convgru_cell_pallas(x_nhwc, h_nhwc, wg_hwio, bg, wc_hwio, bc, kernel_size,
                        h_is_zero=False, compute_dtype=jnp.bfloat16,
                        act_dtype=jnp.float32, batch_tile=None):
    """One ConvGRUCell step.  NHWC activations, HWIO weights.

    compute_dtype: MXU operand dtype (f32 accumulation always).
    act_dtype:     elementwise/activation dtype.  f32 default (v5e has no bf16
                   VPU/EUP); pass bf16 on v6e/v7x for a lighter activation tail.
    batch_tile:    batch elements per grid step (None = auto from VMEM budget,
                   keeping the parallel grid >= 2 steps for v7x megacore).
    """
    B, H, W, Cin = x_nhwc.shape
    Chid = wc_hwio.shape[-1]
    K = kernel_size
    P = K // 2
    cdt = compute_dtype

    vmem_limit = _vmem_limit_bytes()
    if batch_tile is None:
        per_elem = _estimate_vmem_per_batch_elem(
            H, W, Cin, Chid, K, jnp.dtype(cdt).itemsize)
        batch_tile = _pick_batch_tile(B, per_elem, vmem_limit // 3)
    assert B % batch_tile == 0, "batch_tile must divide batch"
    Bt = batch_tile
    grid = (B // Bt,)

    x_c = x_nhwc.astype(cdt)
    wg = wg_hwio.astype(cdt)   # (K,K,Cin+Chid,2*Chid): [...,:Chid]=reset, [...,Chid:]=update
    wc = wc_hwio.astype(cdt)   # (K,K,Cin+Chid,Chid)

    full_spec = lambda a: pl.BlockSpec(a.shape, lambda b: (0,) * a.ndim)
    x_spec = pl.BlockSpec((Bt, H, W, Cin), lambda b: (b, 0, 0, 0))
    h_spec = pl.BlockSpec((Bt, H, W, Chid), lambda b: (b, 0, 0, 0))
    out_spec = pl.BlockSpec((Bt, H, W, Chid), lambda b: (b, 0, 0, 0))
    out_shape = jax.ShapeDtypeStruct((B, H, W, Chid), x_nhwc.dtype)
    cparams = pltpu.CompilerParams(
        dimension_semantics=("parallel",),     # batch across TCs (v7x megacore)
        vmem_limit_bytes=vmem_limit)

    if h_is_zero:
        # h == 0: only the update half of conv_gates and the x half of
        # conv_can survive; fuse them along N into one matmul.
        w_h0 = jnp.concatenate([wg[:, :, :Cin, Chid:], wc[:, :, :Cin, :]],
                               axis=-1).reshape(K * K * Cin, 2 * Chid)
        b_h0 = jnp.concatenate([bg[Chid:], bc]).astype(jnp.float32).reshape(1, 2 * Chid)
        return pl.pallas_call(
            functools.partial(_convgru_cell_kernel_h0, K=K, Chid=Chid,
                              act_dtype=act_dtype),
            grid=grid,
            out_shape=out_shape,
            in_specs=[x_spec, full_spec(w_h0), full_spec(b_h0)],
            out_specs=out_spec,
            scratch_shapes=[pltpu.VMEM((Bt, H + 2 * P, W + 2 * P, Cin), cdt)],
            compiler_params=cparams,
        )(x_c, w_h0, b_h0)

    # Generic path: reorder the weights' input channels to the cat(h, x)
    # layout used by the padded scratch (h first) and keep them fused so each
    # convolution is ONE matmul with contraction K*K*(Cin+Chid).
    h_c = h_nhwc.astype(cdt)
    wg_cat = jnp.concatenate([wg[:, :, Cin:, :], wg[:, :, :Cin, :]],
                             axis=2).reshape(K * K * (Cin + Chid), 2 * Chid)
    wc_cat = jnp.concatenate([wc[:, :, Cin:, :], wc[:, :, :Cin, :]],
                             axis=2).reshape(K * K * (Cin + Chid), Chid)
    bg2 = bg.astype(jnp.float32).reshape(1, 2 * Chid)
    bc2 = bc.astype(jnp.float32).reshape(1, Chid)
    return pl.pallas_call(
        functools.partial(_convgru_cell_kernel, K=K, act_dtype=act_dtype),
        grid=grid,
        out_shape=out_shape,
        in_specs=[x_spec, h_spec, full_spec(wg_cat), full_spec(bg2),
                  full_spec(wc_cat), full_spec(bc2)],
        out_specs=out_spec,
        scratch_shapes=[pltpu.VMEM((Bt, H + 2 * P, W + 2 * P, Cin + Chid), cdt)],
        compiler_params=cparams,
    )(x_c, h_c, wg_cat, bg2, wc_cat, bc2)


# ----------------------------------------------------------------------------
# Pure-JAX f32 reference (ground truth for the correctness checks)
# ----------------------------------------------------------------------------
def convgru_cell_ref(x_nhwc, h_nhwc, wg_hwio, bg, wc_hwio, bc, kernel_size, **_):
    Chid = wc_hwio.shape[-1]
    dn = ('NHWC', 'HWIO', 'NHWC')
    comb = jnp.concatenate([x_nhwc, h_nhwc], axis=-1)
    gates = lax.conv_general_dilated(comb, wg_hwio, (1, 1), 'SAME',
                                     dimension_numbers=dn,
                                     precision=lax.Precision.HIGHEST) + bg
    r = jax.nn.sigmoid(gates[..., :Chid])
    u = jax.nn.sigmoid(gates[..., Chid:])
    comb2 = jnp.concatenate([x_nhwc, r * h_nhwc], axis=-1)
    cnm = jnp.tanh(lax.conv_general_dilated(comb2, wc_hwio, (1, 1), 'SAME',
                                            dimension_numbers=dn,
                                            precision=lax.Precision.HIGHEST) + bc)
    return (1.0 - u) * h_nhwc + u * cnm


# ----------------------------------------------------------------------------
# ConvGRU forward: first call after reset_hidden (hidden = zeros).
# Returns (layer_output_list[-1:], last_state_list[-1:]) in NCHW, like PyTorch.
# TODO(synk): cross-call statefulness (seq_idx, output_inner concatenation
# over multiple forward() calls, save_hidden image dumping) is host-side
# bookkeeping with no Pallas equivalent; only the first post-reset step is
# implemented here.
# ----------------------------------------------------------------------------
def convgru_forward(x_nchw, layer_params, cell_fn, **cell_kwargs):
    cur = jnp.transpose(x_nchw, (0, 2, 3, 1))  # NCHW -> NHWC
    h_last = None
    for p in layer_params:
        B, H, W, _ = cur.shape
        h0 = jnp.zeros((B, H, W, p['hidden_dim']), cur.dtype)
        h_last = cell_fn(cur, h0, p['wg'], p['bg'], p['wc'], p['bc'],
                         p['kernel'], h_is_zero=True, **cell_kwargs)
        cur = h_last  # layer_output == h on the first step
    h_last_nchw = jnp.transpose(h_last, (0, 3, 1, 2))  # back to NCHW
    return [h_last_nchw], [h_last_nchw]


def make_params(key, input_dim, hidden_dim, kernel_size, num_layers):
    layers = []
    cur_in = input_dim
    for _ in range(num_layers):
        key, k1, k2, k3, k4 = jax.random.split(key, 5)
        # deterministic synthetic weights in PyTorch OIHW layout, then -> HWIO
        wg_oihw = 0.1 * jax.random.normal(
            k1, (2 * hidden_dim, cur_in + hidden_dim, kernel_size, kernel_size),
            jnp.float32)
        bg = 0.1 * jax.random.normal(k2, (2 * hidden_dim,), jnp.float32)
        wc_oihw = 0.1 * jax.random.normal(
            k3, (hidden_dim, cur_in + hidden_dim, kernel_size, kernel_size),
            jnp.float32)
        bc = 0.1 * jax.random.normal(k4, (hidden_dim,), jnp.float32)
        layers.append(dict(
            wg=jnp.transpose(wg_oihw, (2, 3, 1, 0)),  # OIHW -> HWIO
            bg=bg,
            wc=jnp.transpose(wc_oihw, (2, 3, 1, 0)),
            bc=bc,
            hidden_dim=hidden_dim,
            kernel=kernel_size,
        ))
        cur_in = hidden_dim
    return layers


if __name__ == "__main__":
    B, Cin, H, W = 2, 4, 16, 16
    hidden_dim = 32
    kernel_size = 3
    num_layers = 2

    key = jax.random.PRNGKey(0)
    key, kx, kh = jax.random.split(key, 3)
    x = jax.random.normal(kx, (B, Cin, H, W), jnp.float32)  # PyTorch NCHW input
    params = make_params(key, Cin, hidden_dim, kernel_size, num_layers)

    x_nhwc = jnp.transpose(x, (0, 2, 3, 1))
    h_rand = jax.random.normal(kh, (B, H, W, hidden_dim), jnp.float32)
    p0 = params[0]

    # --- 1) generic ConvGRUCell step (random h), f32 MXU operands: tight check
    cell_out = jax.block_until_ready(convgru_cell_pallas(
        x_nhwc, h_rand, p0['wg'], p0['bg'], p0['wc'], p0['bc'], kernel_size,
        h_is_zero=False, compute_dtype=jnp.float32))
    cell_ref = convgru_cell_ref(
        x_nhwc, h_rand, p0['wg'], p0['bg'], p0['wc'], p0['bc'], kernel_size)
    np.testing.assert_allclose(np.asarray(cell_out), np.asarray(cell_ref),
                               rtol=1e-5, atol=1e-5)

    # --- 2) generic step in the production bf16 config (loose tolerance
    #        reflecting bf16 quantization of x/h/weights vs the f32 reference)
    cell_out_bf16 = jax.block_until_ready(convgru_cell_pallas(
        x_nhwc, h_rand, p0['wg'], p0['bg'], p0['wc'], p0['bc'], kernel_size,
        h_is_zero=False, compute_dtype=jnp.bfloat16))
    np.testing.assert_allclose(np.asarray(cell_out_bf16), np.asarray(cell_ref),
                               rtol=5e-2, atol=5e-2)

    # --- 3) full forward (h==0 fast path), bf16 MXU operands
    layer_out, last_state = convgru_forward(x, params, convgru_cell_pallas)
    out = jax.block_until_ready(layer_out[0])
    layer_out_ref, _ = convgru_forward(x, params, convgru_cell_ref)
    ref = jax.block_until_ready(layer_out_ref[0])

    assert out.shape == (B, hidden_dim, H, W)
    np.testing.assert_allclose(np.asarray(out), np.asarray(ref),
                               rtol=2e-2, atol=2e-2)
    print("KERNEL_OK")
</pallas_src>

<mosaic_0001>
module attributes {stable_mosaic.version = 11 : i64} {
  func.func @_convgru_cell_kernel(%arg0: i32, %arg1: memref<1x16x16x4xf32, #tpu.memory_space<vmem>>, %arg2: memref<1x16x16x32xf32, #tpu.memory_space<vmem>>, %arg3: memref<324x64xf32, #tpu.memory_space<vmem>>, %arg4: memref<1x64xf32, #tpu.memory_space<vmem>>, %arg5: memref<324x32xf32, #tpu.memory_space<vmem>>, %arg6: memref<1x32xf32, #tpu.memory_space<vmem>>, %arg7: memref<1x16x16x32xf32, #tpu.memory_space<vmem>>, %arg8: memref<1x18x18x36xf32, #tpu.memory_space<vmem>>) attributes {dimension_semantics = [#tpu.dimension_semantics<parallel>], iteration_bounds = array<i64: 2>, scalar_prefetch = 0 : i64, scratch_operands = 1 : i64, tpu.core_type = #tpu.core_type<tc>, window_params = [{transform_indices = @transform_0, window_bounds = array<i64: 1, 16, 16, 4>}, {transform_indices = @transform_1, window_bounds = array<i64: 1, 16, 16, 32>}, {pipeline_mode = #tpu.pipeline_mode<synchronous>, transform_indices = @transform_2, window_bounds = array<i64: 324, 64>}, {pipeline_mode = #tpu.pipeline_mode<synchronous>, transform_indices = @transform_3, window_bounds = array<i64: 1, 64>}, {pipeline_mode = #tpu.pipeline_mode<synchronous>, transform_indices = @transform_4, window_bounds = array<i64: 324, 32>}, {pipeline_mode = #tpu.pipeline_mode<synchronous>, transform_indices = @transform_5, window_bounds = array<i64: 1, 32>}, {transform_indices = @transform_6, window_bounds = array<i64: 1, 16, 16, 32>}]} {
    %c0 = arith.constant 0 : index
    %c0_0 = arith.constant 0 : index
    %c0_1 = arith.constant 0 : index
    %c0_2 = arith.constant 0 : index
    %0 = vector.load %arg1[%c0, %c0_0, %c0_1, %c0_2] : memref<1x16x16x4xf32, #tpu.memory_space<vmem>>, vector<1x16x16x4xf32>
    %c0_3 = arith.constant 0 : index
    %c0_4 = arith.constant 0 : index
    %c0_5 = arith.constant 0 : index
    %c0_6 = arith.constant 0 : index
    %1 = vector.load %arg2[%c0_3, %c0_4, %c0_5, %c0_6] : memref<1x16x16x32xf32, #tpu.memory_space<vmem>>, vector<1x16x16x32xf32>
    %cst = arith.constant 0.000000e+00 : f32
    %2 = vector.broadcast %cst : f32 to vector<1x1x18x36xf32>
    %c0_7 = arith.constant 0 : index
    %c0_8 = arith.constant 0 : index
    %c0_9 = arith.constant 0 : index
    %c0_10 = arith.constant 0 : index
    %3 = vector.load %arg8[%c0_7, %c0_8, %c0_9, %c0_10] : memref<1x18x18x36xf32, #tpu.memory_space<vmem>>, vector<1x1x18x36xf32>
    tpu.vector_store %arg8[%c0_7, %c0_8, %c0_9, %c0_10], %2 {strides = array<i32>} : memref<1x18x18x36xf32, #tpu.memory_space<vmem>>, vector<1x1x18x36xf32>,
    %cst_11 = arith.constant 0.000000e+00 : f32
    %4 = vector.broadcast %cst_11 : f32 to vector<1x1x18x36xf32>
    %c0_12 = arith.constant 0 : index
    %c17 = arith.constant 17 : index
    %c0_13 = arith.constant 0 : index
    %c0_14 = arith.constant 0 : index
    %5 = vector.load %arg8[%c0_12, %c17, %c0_13, %c0_14] : memref<1x18x18x36xf32, #tpu.memory_space<vmem>>, vector<1x1x18x36xf32>
    tpu.vector_store %arg8[%c0_12, %c17, %c0_13, %c0_14], %4 {strides = array<i32>} : memref<1x18x18x36xf32, #tpu.memory_space<vmem>>, vector<1x1x18x36xf32>,
    %cst_15 = arith.constant 0.000000e+00 : f32
    %6 = vector.broadcast %cst_15 : f32 to vector<1x16x1x36xf32>
    %c0_16 = arith.constant 0 : index
    %c1 = arith.constant 1 : index
    %c0_17 = arith.constant 0 : index
    %c0_18 = arith.constant 0 : index
    %7 = vector.load %arg8[%c0_16, %c1, %c0_17, %c0_18] : memref<1x18x18x36xf32, #tpu.memory_space<vmem>>, vector<1x16x1x36xf32>
    tpu.vector_store %arg8[%c0_16, %c1, %c0_17, %c0_18], %6 {strides = array<i32>} : memref<1x18x18x36xf32, #tpu.memory_space<vmem>>, vector<1x16x1x36xf32>,
    %cst_19 = arith.constant 0.000000e+00 : f32
    %8 = vector.broadcast %cst_19 : f32 to vector<1x16x1x36xf32>
    %c0_20 = arith.constant 0 : index
    %c1_21 = arith.constant 1 : index
    %c17_22 = arith.constant 17 : index
    %c0_23 = arith.constant 0 : index
    %9 = vector.load %arg8[%c0_20, %c1_21, %c17_22, %c0_23] : memref<1x18x18x36xf32, #tpu.memory_space<vmem>>, vector<1x16x1x36xf32>
    tpu.vector_store %arg8[%c0_20, %c1_21, %c17_22, %c0_23], %8 {strides = array<i32>} : memref<1x18x18x36xf32, #tpu.memory_space<vmem>>, vector<1x16x1x36xf32>,
    %10 = tpu.concatenate %1, %0 in 3 : vector<1x16x16x32xf32>, vector<1x16x16x4xf32> -> vector<1x16x16x36xf32>
    %c0_24 = arith.constant 0 : index
    %c1_25 = arith.constant 1 : index
    %c1_26 = arith.constant 1 : index
    %c0_27 = arith.constant 0 : index
    %11 = vector.load %arg8[%c0_24, %c1_25, %c1_26, %c0_27] : memref<1x18x18x36xf32, #tpu.memory_space<vmem>>, vector<1x16x16x36xf32>
    tpu.vector_store %arg8[%c0_24, %c1_25, %c1_26, %c0_27], %10 {strides = array<i32>} : memref<1x18x18x36xf32, #tpu.memory_space<vmem>>, vector<1x16x16x36xf32>,
    %c0_28 = arith.constant 0 : index
    %c0_29 = arith.constant 0 : index
    %c0_30 = arith.constant 0 : index
    %c0_31 = arith.constant 0 : index
    %12 = vector.load %arg8[%c0_28, %c0_29, %c0_30, %c0_31] : memref<1x18x18x36xf32, #tpu.memory_space<vmem>>, vector<1x16x18x36xf32>
    %13 = vector.extract_strided_slice %12 {offsets = [0, 0, 0, 0], sizes = [1, 16, 16, 36], strides = [1, 1, 1, 1]} : vector<1x16x18x36xf32> to vector<1x16x16x36xf32>
    %14 = vector.shape_cast %13 : vector<1x16x16x36xf32> to vector<256x36xf32>
    %15 = vector.extract_strided_slice %12 {offsets = [0, 0, 1, 0], sizes = [1, 16, 16, 36], strides = [1, 1, 1, 1]} : vector<1x16x18x36xf32> to vector<1x16x16x36xf32>
    %16 = vector.shape_cast %15 : vector<1x16x16x36xf32> to vector<256x36xf32>
    %17 = vector.extract_strided_slice %12 {offsets = [0, 0, 2, 0], sizes = [1, 16, 16, 36], strides = [1, 1, 1, 1]} : vector<1x16x18x36xf32> to vector<1x16x16x36xf32>
    %18 = vector.shape_cast %17 : vector<1x16x16x36xf32> to vector<256x36xf32>
    %c0_32 = arith.constant 0 : index
    %c1_33 = arith.constant 1 : index
    %c0_34 = arith.constant 0 : index
    %c0_35 = arith.constant 0 : index
    %19 = vector.load %arg8[%c0_32, %c1_33, %c0_34, %c0_35] : memref<1x18x18x36xf32, #tpu.memory_space<vmem>>, vector<1x16x18x36xf32>
    %20 = vector.extract_strided_slice %19 {offsets = [0, 0, 0, 0], sizes = [1, 16, 16, 36], strides = [1, 1, 1, 1]} : vector<1x16x18x36xf32> to vector<1x16x16x36xf32>
    %21 = vector.shape_cast %20 : vector<1x16x16x36xf32> to vector<256x36xf32>
    %22 = vector.extract_strided_slice %19 {offsets = [0, 0, 1, 0], sizes = [1, 16, 16, 36], strides = [1, 1, 1, 1]} : vector<1x16x18x36xf32> to vector<1x16x16x36xf32>
    %23 = vector.shape_cast %22 : vector<1x16x16x36xf32> to vector<256x36xf32>
    %24 = vector.extract_strided_slice %19 {offsets = [0, 0, 2, 0], sizes = [1, 16, 16, 36], strides = [1, 1, 1, 1]} : vector<1x16x18x36xf32> to vector<1x16x16x36xf32>
    %25 = vector.shape_cast %24 : vector<1x16x16x36xf32> to vector<256x36xf32>
    %c0_36 = arith.constant 0 : index
    %c2 = arith.constant 2 : index
    %c0_37 = arith.constant 0 : index
    %c0_38 = arith.constant 0 : index
    %26 = vector.load %arg8[%c0_36, %c2, %c0_37, %c0_38] : memref<1x18x18x36xf32, #tpu.memory_space<vmem>>, vector<1x16x18x36xf32>
    %27 = vector.extract_strided_slice %26 {offsets = [0, 0, 0, 0], sizes = [1, 16, 16, 36], strides = [1, 1, 1, 1]} : vector<1x16x18x36xf32> to vector<1x16x16x36xf32>
    %28 = vector.shape_cast %27 : vector<1x16x16x36xf32> to vector<256x36xf32>
    %29 = vector.extract_strided_slice %26 {offsets = [0, 0, 1, 0], sizes = [1, 16, 16, 36], strides = [1, 1, 1, 1]} : vector<1x16x18x36xf32> to vector<1x16x16x36xf32>
    %30 = vector.shape_cast %29 : vector<1x16x16x36xf32> to vector<256x36xf32>
    %31 = vector.extract_strided_slice %26 {offsets = [0, 0, 2, 0], sizes = [1, 16, 16, 36], strides = [1, 1, 1, 1]} : vector<1x16x18x36xf32> to vector<1x16x16x36xf32>
    %32 = vector.shape_cast %31 : vector<1x16x16x36xf32> to vector<256x36xf32>
    %33 = tpu.concatenate %14, %16, %18, %21, %23, %25, %28, %30, %32 in 1 : vector<256x36xf32>, vector<256x36xf32>, vector<256x36xf32>, vector<256x36xf32>, vector<256x36xf32>, vector<256x36xf32>, vector<256x36xf32>, vector<256x36xf32>, vector<256x36xf32> -> vector<256x324xf32>
    %c0_39 = arith.constant 0 : index
    %c0_40 = arith.constant 0 : index
    %34 = vector.load %arg3[%c0_39, %c0_40] : memref<324x64xf32, #tpu.memory_space<vmem>>, vector<324x64xf32>
    %cst_41 = arith.constant dense<0.000000e+00> : vector<256x64xf32>
    %35 = tpu.matmul %33, %34, %cst_41 {dimension_numbers = #tpu.dot_dimension_numbers<[1], [0], [0], [1], [0, 0, 1, 1], [], []>} : vector<256x324xf32>, vector<324x64xf32>, vector<256x64xf32> -> vector<256x64xf32>
    %c0_42 = arith.constant 0 : index
    %c0_43 = arith.constant 0 : index
    %36 = vector.load %arg4[%c0_42, %c0_43] : memref<1x64xf32, #tpu.memory_space<vmem>>, vector<1x64xf32>
    %37 = vector.broadcast %36 : vector<1x64xf32> to vector<256x64xf32>
    %38 = arith.addf %35, %37 : vector<256x64xf32>
    %39 = arith.negf %38 : vector<256x64xf32>
    %40 = math.exp %39 : vector<256x64xf32>
    %cst_44 = arith.constant 1.000000e+00 : f32
    %41 = vector.broadcast %cst_44 : f32 to vector<256x64xf32>
    %42 = arith.addf %41, %40 : vector<256x64xf32>
    %43 = arith.divf %41, %42 : vector<256x64xf32>
    %44 = vector.extract_strided_slice %43 {offsets = [0, 0], sizes = [256, 32], strides = [1, 1]} : vector<256x64xf32> to vector<256x32xf32>
    %45 = vector.extract_strided_slice %43 {offsets = [0, 32], sizes = [256, 32], strides = [1, 1]} : vector<256x64xf32> to vector<256x32xf32>
    %46 = vector.shape_cast %1 : vector<1x16x16x32xf32> to vector<256x32xf32>
    %47 = arith.mulf %44, %46 : vector<256x32xf32>
    %48 = vector.shape_cast %47 : vector<256x32xf32> to vector<1x16x16x32xf32>
    %c0_45 = arith.constant 0 : index
    %c1_46 = arith.constant 1 : index
    %c1_47 = arith.constant 1 : index
    %c0_48 = arith.constant 0 : index
    %49 = vector.load %arg8[%c0_45, %c1_46, %c1_47, %c0_48] : memref<1x18x18x36xf32, #tpu.memory_space<vmem>>, vector<1x16x16x32xf32>
    tpu.vector_store %arg8[%c0_45, %c1_46, %c1_47, %c0_48], %48 {strides = array<i32>} : memref<1x18x18x36xf32, #tpu.memory_space<vmem>>, vector<1x16x16x32xf32>,
    %c0_49 = arith.constant 0 : index
    %c0_50 = arith.constant 0 : index
    %c0_51 = arith.constant 0 : index
    %c0_52 = arith.constant 0 : index
    %50 = vector.load %arg8[%c0_49, %c0_50, %c0_51, %c0_52] : memref<1x18x18x36xf32, #tpu.memory_space<vmem>>, vector<1x16x18x36xf32>
    %51 = vector.extract_strided_slice %50 {offsets = [0, 0, 0, 0], sizes = [1, 16, 16, 36], strides = [1, 1, 1, 1]} : vector<1x16x18x36xf32> to vector<1x16x16x36xf32>
    %52 = vector.shape_cast %51 : vector<1x16x16x36xf32> to vector<256x36xf32>
    %53 = vector.extract_strided_slice %50 {offsets = [0, 0, 1, 0], sizes = [1, 16, 16, 36], strides = [1, 1, 1, 1]} : vector<1x16x18x36xf32> to vector<1x16x16x36xf32>
    %54 = vector.shape_cast %53 : vector<1x16x16x36xf32> to vector<256x36xf32>
    %55 = vector.extract_strided_slice %50 {offsets = [0, 0, 2, 0], sizes = [1, 16, 16, 36], strides = [1, 1, 1, 1]} : vector<1x16x18x36xf32> to vector<1x16x16x36xf32>
    %56 = vector.shape_cast %55 : vector<1x16x16x36xf32> to vector<256x36xf32>
    %c0_53 = arith.constant 0 : index
    %c1_54 = arith.constant 1 : index
    %c0_55 = arith.constant 0 : index
    %c0_56 = arith.constant 0 : index
    %57 = vector.load %arg8[%c0_53, %c1_54, %c0_55, %c0_56] : memref<1x18x18x36xf32, #tpu.memory_space<vmem>>, vector<1x16x18x36xf32>
    %58 = vector.extract_strided_slice %57 {offsets = [0, 0, 0, 0], sizes = [1, 16, 16, 36], strides = [1, 1, 1, 1]} : vector<1x16x18x36xf32> to vector<1x16x16x36xf32>
    %59 = vector.shape_cast %58 : vector<1x16x16x36xf32> to vector<256x36xf32>
    %60 = vector.extract_strided_slice %57 {offsets = [0, 0, 1, 0], sizes = [1, 16, 16, 36], strides = [1, 1, 1, 1]} : vector<1x16x18x36xf32> to vector<1x16x16x36xf32>
    %61 = vector.shape_cast %60 : vector<1x16x16x36xf32> to vector<256x36xf32>
    %62 = vector.extract_strided_slice %57 {offsets = [0, 0, 2, 0], sizes = [1, 16, 16, 36], strides = [1, 1, 1, 1]} : vector<1x16x18x36xf32> to vector<1x16x16x36xf32>
    %63 = vector.shape_cast %62 : vector<1x16x16x36xf32> to vector<256x36xf32>
    %c0_57 = arith.constant 0 : index
    %c2_58 = arith.constant 2 : index
    %c0_59 = arith.constant 0 : index
    %c0_60 = arith.constant 0 : index
    %64 = vector.load %arg8[%c0_57, %c2_58, %c0_59, %c0_60] : memref<1x18x18x36xf32, #tpu.memory_space<vmem>>, vector<1x16x18x36xf32>
    %65 = vector.extract_strided_slice %64 {offsets = [0, 0, 0, 0], sizes = [1, 16, 16, 36], strides = [1, 1, 1, 1]} : vector<1x16x18x36xf32> to vector<1x16x16x36xf32>
    %66 = vector.shape_cast %65 : vector<1x16x16x36xf32> to vector<256x36xf32>
    %67 = vector.extract_strided_slice %64 {offsets = [0, 0, 1, 0], sizes = [1, 16, 16, 36], strides = [1, 1, 1, 1]} : vector<1x16x18x36xf32> to vector<1x16x16x36xf32>
    %68 = vector.shape_cast %67 : vector<1x16x16x36xf32> to vector<256x36xf32>
    %69 = vector.extract_strided_slice %64 {offsets = [0, 0, 2, 0], sizes = [1, 16, 16, 36], strides = [1, 1, 1, 1]} : vector<1x16x18x36xf32> to vector<1x16x16x36xf32>
    %70 = vector.shape_cast %69 : vector<1x16x16x36xf32> to vector<256x36xf32>
    %71 = tpu.concatenate %52, %54, %56, %59, %61, %63, %66, %68, %70 in 1 : vector<256x36xf32>, vector<256x36xf32>, vector<256x36xf32>, vector<256x36xf32>, vector<256x36xf32>, vector<256x36xf32>, vector<256x36xf32>, vector<256x36xf32>, vector<256x36xf32> -> vector<256x324xf32>
    %c0_61 = arith.constant 0 : index
    %c0_62 = arith.constant 0 : index
    %72 = vector.load %arg5[%c0_61, %c0_62] : memref<324x32xf32, #tpu.memory_space<vmem>>, vector<324x32xf32>
    %cst_63 = arith.constant dense<0.000000e+00> : vector<256x32xf32>
    %73 = tpu.matmul %71, %72, %cst_63 {dimension_numbers = #tpu.dot_dimension_numbers<[1], [0], [0], [1], [0, 0, 1, 1], [], []>} : vector<256x324xf32>, vector<324x32xf32>, vector<256x32xf32> -> vector<256x32xf32>
    %c0_64 = arith.constant 0 : index
    %c0_65 = arith.constant 0 : index
    %74 = vector.load %arg6[%c0_64, %c0_65] : memref<1x32xf32, #tpu.memory_space<vmem>>, vector<1x32xf32>
    %75 = vector.broadcast %74 : vector<1x32xf32> to vector<256x32xf32>
    %76 = arith.addf %73, %75 : vector<256x32xf32>
    %77 = math.tanh %76 : vector<256x32xf32>
    %78 = arith.subf %77, %46 : vector<256x32xf32>
    %79 = arith.mulf %45, %78 : vector<256x32xf32>
    %80 = arith.addf %46, %79 : vector<256x32xf32>
    %81 = vector.shape_cast %80 : vector<256x32xf32> to vector<1x16x16x32xf32>
    %c0_66 = arith.constant 0 : index
    %c0_67 = arith.constant 0 : index
    %c0_68 = arith.constant 0 : index
    %c0_69 = arith.constant 0 : index
    %82 = vector.load %arg7[%c0_66, %c0_67, %c0_68, %c0_69] : memref<1x16x16x32xf32, #tpu.memory_space<vmem>>, vector<1x16x16x32xf32>
    tpu.vector_store %arg7[%c0_66, %c0_67, %c0_68, %c0_69], %81 {strides = array<i32>} : memref<1x16x16x32xf32, #tpu.memory_space<vmem>>, vector<1x16x16x32xf32>,
    return
  }
  func.func @transform_0(%arg0: i32) -> (i32, i32, i32, i32) {
    %c0_i32 = arith.constant 0 : i32
    %c0_i32_0 = arith.constant 0 : i32
    %c0_i32_1 = arith.constant 0 : i32
    %c0_i32_2 = arith.constant 0 : i32
    return %arg0, %c0_i32, %c0_i32_0, %c0_i32_1 : i32, i32, i32, i32
  }
  func.func @transform_1(%arg0: i32) -> (i32, i32, i32, i32) {
    %c0_i32 = arith.constant 0 : i32
    %c0_i32_0 = arith.constant 0 : i32
    %c0_i32_1 = arith.constant 0 : i32
    %c0_i32_2 = arith.constant 0 : i32
    return %arg0, %c0_i32, %c0_i32_0, %c0_i32_1 : i32, i32, i32, i32
  }
  func.func @transform_2(%arg0: i32) -> (i32, i32) {
    %c0_i32 = arith.constant 0 : i32
    %c0_i32_0 = arith.constant 0 : i32
    %c0_i32_1 = arith.constant 0 : i32
    return %c0_i32, %c0_i32_0 : i32, i32
  }
  func.func @transform_3(%arg0: i32) -> (i32, i32) {
    %c0_i32 = arith.constant 0 : i32
    %c0_i32_0 = arith.constant 0 : i32
    %c0_i32_1 = arith.constant 0 : i32
    return %c0_i32, %c0_i32_0 : i32, i32
  }
  func.func @transform_4(%arg0: i32) -> (i32, i32) {
    %c0_i32 = arith.constant 0 : i32
    %c0_i32_0 = arith.constant 0 : i32
    %c0_i32_1 = arith.constant 0 : i32
    return %c0_i32, %c0_i32_0 : i32, i32
  }
  func.func @transform_5(%arg0: i32) -> (i32, i32) {
    %c0_i32 = arith.constant 0 : i32
    %c0_i32_0 = arith.constant 0 : i32
    %c0_i32_1 = arith.constant 0 : i32
    return %c0_i32, %c0_i32_0 : i32, i32
  }
  func.func @transform_6(%arg0: i32) -> (i32, i32, i32, i32) {
    %c0_i32 = arith.constant 0 : i32
    %c0_i32_0 = arith.constant 0 : i32
    %c0_i32_1 = arith.constant 0 : i32
    %c0_i32_2 = arith.constant 0 : i32
    return %arg0, %c0_i32, %c0_i32_0, %c0_i32_1 : i32, i32, i32, i32
  }
}

</mosaic_0001>

<llo_original>
// kernel: tpu_custom_call.1
$region0: #{tpu_custom_call.1}
  #allocation0 [shape = 'u32[]', space=smem, size = 0x4, offset = 0x4, fixed_abs, tag = 'smem constant byte address 0x4 - core index']
  #allocation1 [shape = 'u32[144,128]{1,0:T(1,128)}', space=vmem, size = 0x12000, scoped, tag = 'internal scratch']
  #allocation2 [shape = 'f32[1,18,18,36]{3,2,1,0:T(8,128)}', space=vmem, size = 0x36000, scoped, tag = 'scratch operand']
  %s0 = inlined_call_operand.vmem [shape: f32[2,16,16,4], index: 0, kind: input, shape index: {}]
  %s1 = inlined_call_operand.vmem [shape: f32[2,16,16,32], index: 1, kind: input, shape index: {}]
  %s2 = inlined_call_operand.vmem [shape: f32[324,64], index: 2, kind: input, shape index: {}]
  %s3 = inlined_call_operand.vmem [shape: f32[1,64], index: 3, kind: input, shape index: {}]
  %s4 = inlined_call_operand.vmem [shape: f32[324,32], index: 4, kind: input, shape index: {}]
  %s5 = inlined_call_operand.vmem [shape: f32[1,32], index: 5, kind: input, shape index: {}]
  %s6 = inlined_call_operand.hbm [shape: f32[2,16,16,32], index: 6, kind: output, shape index: {}]
  %s7 = sld [smem:[#allocation0]]
  $region57: #{tpu_custom_call.1} parent=0
    _
  %s9 = ssub.s32 1, %s7
  %s10 = scalar_select 0, %s9, %s7
  $region1: #{tpu_custom_call.1} parent=0
    #allocation3 [shape = 'u8[262144]{0}', space=vmem, size = 0x40000, scoped, tag = 'output window, operand 0']
    #allocation4 [shape = 's32[2]{0}', space=sflag, size = 0x8, scoped, tag = 'scoped memory for tpu_custom_call.1']
    %11 = vsyncpa [#allocation4], 0
    %s12 = scalar_lea.sflag [#allocation4], 1
    %13 = vsyncpa %s12, 0
    loop: start=0, step=1, limit=4
    $region2: #{tpu_custom_call.1} parent=1 // loop_pre_header
      _
    $region3: #{tpu_custom_call.1} parent=1 // loop_header
      %s15 = sphi 0, %s19
      %p16 = scmp.ge.s32.totalorder %s15, 4
      %s25 = sphi 0, %s27
      %s28 = sphi 0, %s25
      %s29 = sphi 0, %s28
      %s45 = sphi 0, %s29
      %s51 = sphi 0, %s53
      %s54 = sphi 0, %s51
      %s55 = sphi 0, %s54
      %s71 = sphi 0, %s55
      %s75 = sphi 0, %s75
      %s77 = sphi 0, %s75
      %s78 = sphi 0, %s77
      %s92 = sphi 0, %s78
      %s96 = sphi 0, %s96
      %s98 = sphi 0, %s96
      %s99 = sphi 0, %s98
      %s113 = sphi 0, %s99
      %s117 = sphi 0, %s117
      %s119 = sphi 0, %s117
      %s120 = sphi 0, %s119
      %s134 = sphi 0, %s120
      %s138 = sphi 0, %s138
      %s140 = sphi 0, %s138
      %s141 = sphi 0, %s140
      %s155 = sphi 0, %s141
      %s161 = sphi 0, %s163
      %s164 = sphi 0, %s161
      %s165 = sphi 0, %s164
      %s181 = sphi 0, %s165
    $region4: #{tpu_custom_call.1} parent=1 // loop_header_branch
      %18 = sbr.rel (%p16) target = $region8
    $region5: #{tpu_custom_call.1} parent=1 // loop_body
      %s20 = ssub.s32 %s15, 1
      %s21 = ssub.s32 %s15, 2
      %s22 = sadd.s32 %s15, 1
      %s23 = ssub.s32 %s15, %s22
      %p24 = scmp.eq.s32.totalorder %s23, 0
      %s26 = sadd.s32 %s25, 1
      %s27 = scalar_select %p24, %s25, %s26
      %p30 = pneg %p24
      %p31 = scmp.eq.s32.totalorder %s15, 1
      %p32 = por %p30, %p31
      %p33 = scmp.ne.s32.totalorder %s25, %s28
      %p34 = scmp.eq.s32.totalorder %s15, 0
      %p35 = por %p33, %p34
      %p36 = scmp.ne.s32.totalorder %s25, %s28
      %p37 = scmp.eq.s32.totalorder %s20, 1
      %p38 = por %p36, %p37
      %p39 = scmp.ne.s32.totalorder %s28, %s29
      %p40 = scmp.eq.s32.totalorder %s20, 0
      %p41 = por %p39, %p40
      %p42 = scmp.ne.s32.totalorder %s28, %s29
      %p43 = scmp.eq.s32.totalorder %s21, 1
      %p44 = por %p42, %p43
      %p46 = scmp.ne.s32.totalorder %s29, %s45
      %p47 = scmp.eq.s32.totalorder %s21, 0
      %p48 = por %p46, %p47
      %s49 = ssub.s32 %s15, %s22
      %p50 = scmp.eq.s32.totalorder %s49, 0
      %s52 = sadd.s32 %s51, 1
      %s53 = scalar_select %p50, %s51, %s52
      %p56 = pneg %p50
      %p57 = scmp.eq.s32.totalorder %s15, 1
      %p58 = por %p56, %p57
      %p59 = scmp.ne.s32.totalorder %s51, %s54
      %p60 = scmp.eq.s32.totalorder %s15, 0
      %p61 = por %p59, %p60
      %p62 = scmp.ne.s32.totalorder %s51, %s54
      %p63 = scmp.eq.s32.totalorder %s20, 1
      %p64 = por %p62, %p63
      %p65 = scmp.ne.s32.totalorder %s54, %s55
      %p66 = scmp.eq.s32.totalorder %s20, 0
      %p67 = por %p65, %p66
      %p68 = scmp.ne.s32.totalorder %s54, %s55
      %p69 = scmp.eq.s32.totalorder %s21, 1
      %p70 = por %p68, %p69
      %p72 = scmp.ne.s32.totalorder %s55, %s71
      %p73 = scmp.eq.s32.totalorder %s21, 0
      %p74 = por %p72, %p73
      %s76 = sadd.s32 %s75, 1
      %p79 = scmp.eq.s32.totalorder %s15, 1
      %p80 = scmp.ne.s32.totalorder %s75, %s77
      %p81 = scmp.eq.s32.totalorder %s15, 0
      %p82 = por %p80, %p81
      %p83 = scmp.ne.s32.totalorder %s75, %s77
      %p84 = scmp.eq.s32.totalorder %s20, 1
      %p85 = por %p83, %p84
      %p86 = scmp.ne.s32.totalorder %s77, %s78
      %p87 = scmp.eq.s32.totalorder %s20, 0
      %p88 = por %p86, %p87
      %p89 = scmp.ne.s32.totalorder %s77, %s78
      %p90 = scmp.eq.s32.totalorder %s21, 1
      %p91 = por %p89, %p90
      %p93 = scmp.ne.s32.totalorder %s78, %s92
      %p94 = scmp.eq.s32.totalorder %s21, 0
      %p95 = por %p93, %p94
      %s97 = sadd.s32 %s96, 1
      %p100 = scmp.eq.s32.totalorder %s15, 1
      %p101 = scmp.ne.s32.totalorder %s96, %s98
      %p102 = scmp.eq.s32.totalorder %s15, 0
      %p103 = por %p101, %p102
      %p104 = scmp.ne.s32.totalorder %s96, %s98
      %p105 = scmp.eq.s32.totalorder %s20, 1
      %p106 = por %p104, %p105
      %p107 = scmp.ne.s32.totalorder %s98, %s99
      %p108 = scmp.eq.s32.totalorder %s20, 0
      %p109 = por %p107, %p108
      %p110 = scmp.ne.s32.totalorder %s98, %s99
      %p111 = scmp.eq.s32.totalorder %s21, 1
      %p112 = por %p110, %p111
      %p114 = scmp.ne.s32.totalorder %s99, %s113
      %p115 = scmp.eq.s32.totalorder %s21, 0
      %p116 = por %p114, %p115
      %s118 = sadd.s32 %s117, 1
      %p121 = scmp.eq.s32.totalorder %s15, 1
      %p122 = scmp.ne.s32.totalorder %s117, %s119
      %p123 = scmp.eq.s32.totalorder %s15, 0
      %p124 = por %p122, %p123
      %p125 = scmp.ne.s32.totalorder %s117, %s119
      %p126 = scmp.eq.s32.totalorder %s20, 1
      %p127 = por %p125, %p126
      %p128 = scmp.ne.s32.totalorder %s119, %s120
      %p129 = scmp.eq.s32.totalorder %s20, 0
      %p130 = por %p128, %p129
      %p131 = scmp.ne.s32.totalorder %s119, %s120
      %p132 = scmp.eq.s32.totalorder %s21, 1
      %p133 = por %p131, %p132
      %p135 = scmp.ne.s32.totalorder %s120, %s134
      %p136 = scmp.eq.s32.totalorder %s21, 0
      %p137 = por %p135, %p136
      %s139 = sadd.s32 %s138, 1
      %p142 = scmp.eq.s32.totalorder %s15, 1
      %p143 = scmp.ne.s32.totalorder %s138, %s140
      %p144 = scmp.eq.s32.totalorder %s15, 0
      %p145 = por %p143, %p144
      %p146 = scmp.ne.s32.totalorder %s138, %s140
      %p147 = scmp.eq.s32.totalorder %s20, 1
      %p148 = por %p146, %p147
      %p149 = scmp.ne.s32.totalorder %s140, %s141
      %p150 = scmp.eq.s32.totalorder %s20, 0
      %p151 = por %p149, %p150
      %p152 = scmp.ne.s32.totalorder %s140, %s141
      %p153 = scmp.eq.s32.totalorder %s21, 1
      %p154 = por %p152, %p153
      %p156 = scmp.ne.s32.totalorder %s141, %s155
      %p157 = scmp.eq.s32.totalorder %s21, 0
      %p158 = por %p156, %p157
      %s159 = ssub.s32 %s15, %s22
      %p160 = scmp.eq.s32.totalorder %s159, 0
      %s162 = sadd.s32 %s161, 1
      %s163 = scalar_select %p160, %s161, %s162
      %p166 = pneg %p160
      %p167 = scmp.eq.s32.totalorder %s15, 1
      %p168 = por %p166, %p167
      %p169 = scmp.ne.s32.totalorder %s161, %s164
      %p170 = scmp.eq.s32.totalorder %s15, 0
      %p171 = por %p169, %p170
      %p172 = scmp.ne.s32.totalorder %s161, %s164
      %p173 = scmp.eq.s32.totalorder %s20, 1
      %p174 = por %p172, %p173
      %p175 = scmp.ne.s32.totalorder %s164, %s165
      %p176 = scmp.eq.s32.totalorder %s20, 0
      %p177 = por %p175, %p176
      %p178 = scmp.ne.s32.totalorder %s164, %s165
      %p179 = scmp.eq.s32.totalorder %s21, 1
      %p180 = por %p178, %p179
      %p182 = scmp.ne.s32.totalorder %s165, %s181
      %p183 = scmp.eq.s32.totalorder %s21, 0
      %p184 = por %p182, %p183
      %p185 = scmp.le.s32.totalorder 1, %s15
      %p186 = scmp.lt.s32.totalorder %s15, 3
      %p187 = pnand %p185, %p186
      %p188 = pneg %p187
      // Predicated region
      $region9: #{tpu_custom_call.1} parent=5 // pred_check
        _
      $region10: #{tpu_custom_call.1} parent=5 // pred_check_branch
        %190 = sbr.rel (%p187) target = $region12
      $region11: #{tpu_custom_call.1} parent=5 // pred_region
        %s191 = ssub.s32 %s15, 1
        // Predicated region
        $region13: #{tpu_custom_call.1} parent=11 // pred_check
          %p192 = pneg %p88
        $region14: #{tpu_custom_call.1} parent=11 // pred_check_branch
          %194 = sbr.rel (%p192) target = $region16
        $region15: #{tpu_custom_call.1} parent=11 // pred_region
          _
        $region16: #{tpu_custom_call.1} parent=11 // pred_fallthru
          _
        // Predicated region
        $region17: #{tpu_custom_call.1} parent=11 // pred_check
          %p195 = pneg %p109
        $region18: #{tpu_custom_call.1} parent=11 // pred_check_branch
          %197 = sbr.rel (%p195) target = $region20
        $region19: #{tpu_custom_call.1} parent=11 // pred_region
          _
        $region20: #{tpu_custom_call.1} parent=11 // pred_fallthru
          _
        // Predicated region
        $region21: #{tpu_custom_call.1} parent=11 // pred_check
          %p198 = pneg %p130
        $region22: #{tpu_custom_call.1} parent=11 // pred_check_branch
          %200 = sbr.rel (%p198) target = $region24
        $region23: #{tpu_custom_call.1} parent=11 // pred_region
          _
        $region24: #{tpu_custom_call.1} parent=11 // pred_fallthru
          _
        // Predicated region
        $region25: #{tpu_custom_call.1} parent=11 // pred_check
          %p201 = pneg %p151
        $region26: #{tpu_custom_call.1} parent=11 // pred_check_branch
          %203 = sbr.rel (%p201) target = $region28
        $region27: #{tpu_custom_call.1} parent=11 // pred_region
          _
        $region28: #{tpu_custom_call.1} parent=11 // pred_fallthru
          _
      $region12: #{tpu_custom_call.1} parent=5 // pred_fallthru
        _
      %p204 = scmp.lt.s32.totalorder %s15, 2
      // Predicated region
      $region29: #{tpu_custom_call.1} parent=5 // pred_check
        %p205 = pneg %p204
      $region30: #{tpu_custom_call.1} parent=5 // pred_check_branch
        %207 = sbr.rel (%p205) target = $region32
      $region31: #{tpu_custom_call.1} parent=5 // pred_region
        // Predicated region
        $region33: #{tpu_custom_call.1} parent=31 // pred_check
          %p208 = pneg %p35
        $region34: #{tpu_custom_call.1} parent=31 // pred_check_branch
          %210 = sbr.rel (%p208) target = $region36
        $region35: #{tpu_custom_call.1} parent=31 // pred_region
          %p211 = scmp.lt.s32.totalorder %s15, 1
          %s212 = scalar_select %p211, %s15, 1
          %s213 = smul.addr %s212, 32
          %s214 = smul.addr %s213, 8
          %s215 = scalar_lea.vmem %s0, %s214
        $region36: #{tpu_custom_call.1} parent=31 // pred_fallthru
          _
        // Predicated region
        $region37: #{tpu_custom_call.1} parent=31 // pred_check
          %p216 = pneg %p61
        $region38: #{tpu_custom_call.1} parent=31 // pred_check_branch
          %218 = sbr.rel (%p216) target = $region40
        $region39: #{tpu_custom_call.1} parent=31 // pred_region
          %p219 = scmp.lt.s32.totalorder %s15, 1
          %s220 = scalar_select %p219, %s15, 1
          %s221 = smul.addr %s220, 32
          %s222 = smul.addr %s221, 8
          %s223 = scalar_lea.vmem %s1, %s222
        $region40: #{tpu_custom_call.1} parent=31 // pred_fallthru
          _
      $region32: #{tpu_custom_call.1} parent=5 // pred_fallthru
        _
      %p224 = scmp.le.s32.totalorder 1, %s15
      %p225 = scmp.lt.s32.totalorder %s15, 3
      %p226 = pnand %p224, %p225
      %p227 = pneg %p226
      // Predicated region
      $region41: #{tpu_custom_call.1} parent=5 // pred_check
        _
      $region42: #{tpu_custom_call.1} parent=5 // pred_check_branch
        %229 = sbr.rel (%p226) target = $region44
      $region43: #{tpu_custom_call.1} parent=5 // pred_region
        %s230 = ssub.s32 %s15, 1
        %p231 = scmp.lt.s32.totalorder %s20, 1
        %s232 = scalar_select %p231, %s20, 1
        %s233 = smul.addr %s232, 32
        %s234 = smul.addr %s233, 8
        %s235 = scalar_lea.vmem %s0, %s234
        %p236 = pneg %p41
        %p237 = pneg %p38
        %p238 = scmp.lt.s32.totalorder %s20, 1
        %s239 = scalar_select %p238, %s20, 1
        %s240 = smul.addr %s239, 32
        %s241 = smul.addr %s240, 8
        %s242 = scalar_lea.vmem %s1, %s241
        %p243 = pneg %p67
        %p244 = pneg %p64
        %p245 = pneg %p88
        %p246 = pneg %p85
        %p247 = pneg %p109
        %p248 = pneg %p106
        %p249 = pneg %p130
        %p250 = pneg %p127
        %p251 = pneg %p151
        %p252 = pneg %p148
        %p253 = pneg %p177
        %p254 = pneg %p174
        %s255 = sand.u32 %s164, 1
        %s256 = scalar_lea.sflag [#allocation4], %s255
        %s257 = sand.u32 %s164, 1
        %s258 = smul.addr %s257, 256
        %s259 = scalar_lea.vmem [#allocation3], %s258
        %p260 = scmp.lt.s32.totalorder %s20, 1
        %s261 = scalar_select %p260, %s20, 1
        %s262 = smul.addr %s261, 32
        %s263 = smul.addr %s262, 8
        %s264 = scalar_lea.vmem %s0, %s263
        %p265 = scmp.lt.s32.totalorder %s20, 1
        %s266 = scalar_select %p265, %s20, 1
        %s267 = smul.addr %s266, 32
        %s268 = smul.addr %s267, 8
        %s269 = scalar_lea.vmem %s1, %s268
        %v270 = vld [vmem:[%s264] sm:$0xff]
        %v271 = vld [vmem:[%s264 + $0x8] sm:$0xff]
        %v272 = vld [vmem:[%s264 + $0x10] sm:$0xff]
        %v273 = vld [vmem:[%s264 + $0x18] sm:$0xff]
        %v274 = vld [vmem:[%s264 + $0x20] sm:$0xff]
        %v275 = vld [vmem:[%s264 + $0x28] sm:$0xff]
        %v276 = vld [vmem:[%s264 + $0x30] sm:$0xff]
        %v277 = vld [vmem:[%s264 + $0x38] sm:$0xff]
        %v278 = vld [vmem:[%s264 + $0x40] sm:$0xff]
        %v279 = vld [vmem:[%s264 + $0x48] sm:$0xff]
        %v280 = vld [vmem:[%s264 + $0x50] sm:$0xff]
        %v281 = vld [vmem:[%s264 + $0x58] sm:$0xff]
        %v282 = vld [vmem:[%s264 + $0x60] sm:$0xff]
        %v283 = vld [vmem:[%s264 + $0x68] sm:$0xff]
        %v284 = vld [vmem:[%s264 + $0x70] sm:$0xff]
        %v285 = vld [vmem:[%s264 + $0x78] sm:$0xff]
        %v286 = vld [vmem:[%s264 + $0x80] sm:$0xff]
        %v287 = vld [vmem:[%s264 + $0x88] sm:$0xff]
        %v288 = vld [vmem:[%s264 + $0x90] sm:$0xff]
        %v289 = vld [vmem:[%s264 + $0x98] sm:$0xff]
        %v290 = vld [vmem:[%s264 + $0xa0] sm:$0xff]
        %v291 = vld [vmem:[%s264 + $0xa8] sm:$0xff]
        %v292 = vld [vmem:[%s264 + $0xb0] sm:$0xff]
        %v293 = vld [vmem:[%s264 + $0xb8] sm:$0xff]
        %v294 = vld [vmem:[%s264 + $0xc0] sm:$0xff]
        %v295 = vld [vmem:[%s264 + $0xc8] sm:$0xff]
        %v296 = vld [vmem:[%s264 + $0xd0] sm:$0xff]
        %v297 = vld [vmem:[%s264 + $0xd8] sm:$0xff]
        %v298 = vld [vmem:[%s264 + $0xe0] sm:$0xff]
        %v299 = vld [vmem:[%s264 + $0xe8] sm:$0xff]
        %v300 = vld [vmem:[%s264 + $0xf0] sm:$0xff]
        %v301 = vld [vmem:[%s264 + $0xf8] sm:$0xff]
        %v302 = vld [vmem:[%s269] sm:$0xff]
        %v303 = vld [vmem:[%s269 + $0x8] sm:$0xff]
        %v304 = vld [vmem:[%s269 + $0x10] sm:$0xff]
        %v305 = vld [vmem:[%s269 + $0x18] sm:$0xff]
        %v306 = vld [vmem:[%s269 + $0x20] sm:$0xff]
        %v307 = vld [vmem:[%s269 + $0x28] sm:$0xff]
        %v308 = vld [vmem:[%s269 + $0x30] sm:$0xff]
        %v309 = vld [vmem:[%s269 + $0x38] sm:$0xff]
        %v310 = vld [vmem:[%s269 + $0x40] sm:$0xff]
        %v311 = vld [vmem:[%s269 + $0x48] sm:$0xff]
        %v312 = vld [vmem:[%s269 + $0x50] sm:$0xff]
        %v313 = vld [vmem:[%s269 + $0x58] sm:$0xff]
        %v314 = vld [vmem:[%s269 + $0x60] sm:$0xff]
        %v315 = vld [vmem:[%s269 + $0x68] sm:$0xff]
        %v316 = vld [vmem:[%s269 + $0x70] sm:$0xff]
        %v317 = vld [vmem:[%s269 + $0x78] sm:$0xff]
        %v318 = vld [vmem:[%s269 + $0x80] sm:$0xff]
        %v319 = vld [vmem:[%s269 + $0x88] sm:$0xff]
        %v320 = vld [vmem:[%s269 + $0x90] sm:$0xff]
        %v321 = vld [vmem:[%s269 + $0x98] sm:$0xff]
        %v322 = vld [vmem:[%s269 + $0xa0] sm:$0xff]
        %v323 = vld [vmem:[%s269 + $0xa8] sm:$0xff]
        %v324 = vld [vmem:[%s269 + $0xb0] sm:$0xff]
        %v325 = vld [vmem:[%s269 + $0xb8] sm:$0xff]
        %v326 = vld [vmem:[%s269 + $0xc0] sm:$0xff]
        %v327 = vld [vmem:[%s269 + $0xc8] sm:$0xff]
        %v328 = vld [vmem:[%s269 + $0xd0] sm:$0xff]
        %v329 = vld [vmem:[%s269 + $0xd8] sm:$0xff]
        %v330 = vld [vmem:[%s269 + $0xe0] sm:$0xff]
        %v331 = vld [vmem:[%s269 + $0xe8] sm:$0xff]
        %v332 = vld [vmem:[%s269 + $0xf0] sm:$0xff]
        %v333 = vld [vmem:[%s269 + $0xf8] sm:$0xff]
        %vm334 = vcmask 293888
        %335 = vst.msk [vmem:[#allocation2] sm:$0xff] %vm334, 0.0
        %336 = vst.msk [vmem:[#allocation2 + $0x8] sm:$0xff] %vm334, 0.0
        %vm337 = vcmask 287744
        %338 = vst.msk [vmem:[#allocation2 + $0x10] sm:$0x3] %vm337, 0.0
        %s339 = scalar_lea.vmem [#allocation2], 408
        %340 = vst.msk [vmem:[%s339] sm:$0xff] %vm334, 0.0
        %341 = vst.msk [vmem:[%s339 + $0x8] sm:$0xff] %vm334, 0.0
        %342 = vst.msk [vmem:[%s339 + $0x10] sm:$0x3] %vm337, 0.0
        %s343 = scalar_lea.vmem [#allocation2], 24
        %vm344 = vcmask 286720
        %345 = vst.msk [vmem:[%s343] sm:$0x1] %vm344, 0.0
        %346 = vst.msk [vmem:[%s343 + $0x18] sm:$0x1] %vm344, 0.0
        %347 = vst.msk [vmem:[%s343 + $0x30] sm:$0x1] %vm344, 0.0
        %348 = vst.msk [vmem:[%s343 + $0x48] sm:$0x1] %vm344, 0.0
        %349 = vst.msk [vmem:[%s343 + $0x60] sm:$0x1] %vm344, 0.0
        %350 = vst.msk [vmem:[%s343 + $0x78] sm:$0x1] %vm344, 0.0
        %351 = vst.msk [vmem:[%s343 + $0x90] sm:$0x1] %vm344, 0.0
        %352 = vst.msk [vmem:[%s343 + $0xa8] sm:$0x1] %vm344, 0.0
        %353 = vst.msk [vmem:[%s343 + $0xc0] sm:$0x1] %vm344, 0.0
        %354 = vst.msk [vmem:[%s343 + $0xd8] sm:$0x1] %vm344, 0.0
        %355 = vst.msk [vmem:[%s343 + $0xf0] sm:$0x1] %vm344, 0.0
        %356 = vst.msk [vmem:[%s343 + $0x108] sm:$0x1] %vm344, 0.0
        %357 = vst.msk [vmem:[%s343 + $0x120] sm:$0x1] %vm344, 0.0
        %358 = vst.msk [vmem:[%s343 + $0x138] sm:$0x1] %vm344, 0.0
        %359 = vst.msk [vmem:[%s343 + $0x150] sm:$0x1] %vm344, 0.0
        %360 = vst.msk [vmem:[%s343 + $0x168] sm:$0x1] %vm344, 0.0
        %361 = vst.msk [vmem:[%s343 + $0x11] sm:$0x1] %vm344, 0.0
        %362 = vst.msk [vmem:[%s343 + $0x29] sm:$0x1] %vm344, 0.0
        %363 = vst.msk [vmem:[%s343 + $0x41] sm:$0x1] %vm344, 0.0
        %364 = vst.msk [vmem:[%s343 + $0x59] sm:$0x1] %vm344, 0.0
        %365 = vst.msk [vmem:[%s343 + $0x71] sm:$0x1] %vm344, 0.0
        %366 = vst.msk [vmem:[%s343 + $0x89] sm:$0x1] %vm344, 0.0
        %367 = vst.msk [vmem:[%s343 + $0xa1] sm:$0x1] %vm344, 0.0
        %368 = vst.msk [vmem:[%s343 + $0xb9] sm:$0x1] %vm344, 0.0
        %369 = vst.msk [vmem:[%s343 + $0xd1] sm:$0x1] %vm344, 0.0
        %370 = vst.msk [vmem:[%s343 + $0xe9] sm:$0x1] %vm344, 0.0
        %371 = vst.msk [vmem:[%s343 + $0x101] sm:$0x1] %vm344, 0.0
        %372 = vst.msk [vmem:[%s343 + $0x119] sm:$0x1] %vm344, 0.0
        %373 = vst.msk [vmem:[%s343 + $0x131] sm:$0x1] %vm344, 0.0
        %374 = vst.msk [vmem:[%s343 + $0x149] sm:$0x1] %vm344, 0.0
        %375 = vst.msk [vmem:[%s343 + $0x161] sm:$0x1] %vm344, 0.0
        %376 = vst.msk [vmem:[%s343 + $0x179] sm:$0x1] %vm344, 0.0
        %409 = vrot.lane.b32.xlu0 %v270, 32
        %v410 = vpop.permute.xlu0 %409
        %411 = vrot.lane.b32.xlu0 %v271, 32
        %v412 = vpop.permute.xlu0 %411
        %413 = vrot.lane.b32.xlu0 %v272, 32
        %v414 = vpop.permute.xlu0 %413
        %415 = vrot.lane.b32.xlu0 %v273, 32
        %v416 = vpop.permute.xlu0 %415
        %417 = vrot.lane.b32.xlu0 %v274, 32
        %v418 = vpop.permute.xlu0 %417
        %419 = vrot.lane.b32.xlu0 %v275, 32
        %v420 = vpop.permute.xlu0 %419
        %421 = vrot.lane.b32.xlu0 %v276, 32
        %v422 = vpop.permute.xlu0 %421
        %423 = vrot.lane.b32.xlu0 %v277, 32
        %v424 = vpop.permute.xlu0 %423
        %425 = vrot.lane.b32.xlu0 %v278, 32
        %v426 = vpop.permute.xlu0 %425
        %427 = vrot.lane.b32.xlu0 %v279, 32
        %v428 = vpop.permute.xlu0 %427
        %429 = vrot.lane.b32.xlu0 %v280, 32
        %v430 = vpop.permute.xlu0 %429
        %431 = vrot.lane.b32.xlu0 %v281, 32
        %v432 = vpop.permute.xlu0 %431
        %433 = vrot.lane.b32.xlu0 %v282, 32
        %v434 = vpop.permute.xlu0 %433
        %435 = vrot.lane.b32.xlu0 %v283, 32
        %v436 = vpop.permute.xlu0 %435
        %437 = vrot.lane.b32.xlu0 %v284, 32
        %v438 = vpop.permute.xlu0 %437
        %439 = vrot.lane.b32.xlu0 %v285, 32
        %v440 = vpop.permute.xlu0 %439
        %441 = vrot.lane.b32.xlu0 %v286, 32
        %v442 = vpop.permute.xlu0 %441
        %443 = vrot.lane.b32.xlu0 %v287, 32
        %v444 = vpop.permute.xlu0 %443
        %445 = vrot.lane.b32.xlu0 %v288, 32
        %v446 = vpop.permute.xlu0 %445
        %447 = vrot.lane.b32.xlu0 %v289, 32
        %v448 = vpop.permute.xlu0 %447
        %449 = vrot.lane.b32.xlu0 %v290, 32
        %v450 = vpop.permute.xlu0 %449
        %451 = vrot.lane.b32.xlu0 %v291, 32
        %v452 = vpop.permute.xlu0 %451
        %453 = vrot.lane.b32.xlu0 %v292, 32
        %v454 = vpop.permute.xlu0 %453
        %455 = vrot.lane.b32.xlu0 %v293, 32
        %v456 = vpop.permute.xlu0 %455
        %457 = vrot.lane.b32.xlu0 %v294, 32
        %v458 = vpop.permute.xlu0 %457
        %459 = vrot.lane.b32.xlu0 %v295, 32
        %v460 = vpop.permute.xlu0 %459
        %461 = vrot.lane.b32.xlu0 %v296, 32
        %v462 = vpop.permute.xlu0 %461
        %463 = vrot.lane.b32.xlu0 %v297, 32
        %v464 = vpop.permute.xlu0 %463
        %465 = vrot.lane.b32.xlu0 %v298, 32
        %v466 = vpop.permute.xlu0 %465
        %467 = vrot.lane.b32.xlu0 %v299, 32
        %v468 = vpop.permute.xlu0 %467
        %469 = vrot.lane.b32.xlu0 %v300, 32
        %v470 = vpop.permute.xlu0 %469
        %471 = vrot.lane.b32.xlu0 %v301, 32
        %v472 = vpop.permute.xlu0 %471
        %vm505 = vcmask 261120
        %v506 = vsel %vm505, %v302, %v410
        %v507 = vsel %vm505, %v303, %v412
        %v508 = vsel %vm505, %v304, %v414
        %v509 = vsel %vm505, %v305, %v416
        %v510 = vsel %vm505, %v306, %v418
        %v511 = vsel %vm505, %v307, %v420
        %v512 = vsel %vm505, %v308, %v422
        %v513 = vsel %vm505, %v309, %v424
        %v514 = vsel %vm505, %v310, %v426
        %v515 = vsel %vm505, %v311, %v428
        %v516 = vsel %vm505, %v312, %v430
        %v517 = vsel %vm505, %v313, %v432
        %v518 = vsel %vm505, %v314, %v434
        %v519 = vsel %vm505, %v315, %v436
        %v520 = vsel %vm505, %v316, %v438
        %v521 = vsel %vm505, %v317, %v440
        %v522 = vsel %vm505, %v318, %v442
        %v523 = vsel %vm505, %v319, %v444
        %v524 = vsel %vm505, %v320, %v446
        %v525 = vsel %vm505, %v321, %v448
        %v526 = vsel %vm505, %v322, %v450
        %v527 = vsel %vm505, %v323, %v452
        %v528 = vsel %vm505, %v324, %v454
        %v529 = vsel %vm505, %v325, %v456
        %v530 = vsel %vm505, %v326, %v458
        %v531 = vsel %vm505, %v327, %v460
        %v532 = vsel %vm505, %v328, %v462
        %v533 = vsel %vm505, %v329, %v464
        %v534 = vsel %vm505, %v330, %v466
        %v535 = vsel %vm505, %v331, %v468
        %v536 = vsel %vm505, %v332, %v470
        %v537 = vsel %vm505, %v333, %v472
        %538 = vst.msk [vmem:[%s343 + $0x1] sm:$0xff] %vm334, %v506
        %539 = vst.msk [vmem:[%s343 + $0x9] sm:$0xff] %vm334, %v507
        %540 = vst.msk [vmem:[%s343 + $0x19] sm:$0xff] %vm334, %v508
        %541 = vst.msk [vmem:[%s343 + $0x21] sm:$0xff] %vm334, %v509
        %542 = vst.msk [vmem:[%s343 + $0x31] sm:$0xff] %vm334, %v510
        %543 = vst.msk [vmem:[%s343 + $0x39] sm:$0xff] %vm334, %v511
        %544 = vst.msk [vmem:[%s343 + $0x49] sm:$0xff] %vm334, %v512
        %545 = vst.msk [vmem:[%s343 + $0x51] sm:$0xff] %vm334, %v513
        %546 = vst.msk [vmem:[%s343 + $0x61] sm:$0xff] %vm334, %v514
        %547 = vst.msk [vmem:[%s343 + $0x69] sm:$0xff] %vm334, %v515
        %548 = vst.msk [vmem:[%s343 + $0x79] sm:$0xff] %vm334, %v516
        %549 = vst.msk [vmem:[%s343 + $0x81] sm:$0xff] %vm334, %v517
        %550 = vst.msk [vmem:[%s343 + $0x91] sm:$0xff] %vm334, %v518
        %551 = vst.msk [vmem:[%s343 + $0x99] sm:$0xff] %vm334, %v519
        %552 = vst.msk [vmem:[%s343 + $0xa9] sm:$0xff] %vm334, %v520
        %553 = vst.msk [vmem:[%s343 + $0xb1] sm:$0xff] %vm334, %v521
        %554 = vst.msk [vmem:[%s343 + $0xc1] sm:$0xff] %vm334, %v522
        %555 = vst.msk [vmem:[%s343 + $0xc9] sm:$0xff] %vm334, %v523
        %556 = vst.msk [vmem:[%s343 + $0xd9] sm:$0xff] %vm334, %v524
        %557 = vst.msk [vmem:[%s343 + $0xe1] sm:$0xff] %vm334, %v525
        %558 = vst.msk [vmem:[%s343 + $0xf1] sm:$0xff] %vm334, %v526
        %559 = vst.msk [vmem:[%s343 + $0xf9] sm:$0xff] %vm334, %v527
        %560 = vst.msk [vmem:[%s343 + $0x109] sm:$0xff] %vm334, %v528
        %561 = vst.msk [vmem:[%s343 + $0x111] sm:$0xff] %vm334, %v529
        %562 = vst.msk [vmem:[%s343 + $0x121] sm:$0xff] %vm334, %v530
        %563 = vst.msk [vmem:[%s343 + $0x129] sm:$0xff] %vm334, %v531
        %564 = vst.msk [vmem:[%s343 + $0x139] sm:$0xff] %vm334, %v532
        %565 = vst.msk [vmem:[%s343 + $0x141] sm:$0xff] %vm334, %v533
        %566 = vst.msk [vmem:[%s343 + $0x151] sm:$0xff] %vm334, %v534
        %567 = vst.msk [vmem:[%s343 + $0x159] sm:$0xff] %vm334, %v535
        %568 = vst.msk [vmem:[%s343 + $0x169] sm:$0xff] %vm334, %v536
        %569 = vst.msk [vmem:[%s343 + $0x171] sm:$0xff] %vm334, %v537
        %v570 = vld [vmem:[#allocation2] sm:$0xff]
        %v571 = vld [vmem:[#allocation2 + $0x8] sm:$0xff]
        %v572 = vld [vmem:[#allocation2 + $0x10] sm:$0x3]
        %v573 = vld [vmem:[#allocation2 + $0x18] sm:$0xff]
        %v574 = vld [vmem:[#allocation2 + $0x20] sm:$0xff]
        %v575 = vld [vmem:[#allocation2 + $0x28] sm:$0x3]
        %v576 = vld [vmem:[#allocation2 + $0x30] sm:$0xff]
        %v577 = vld [vmem:[#allocation2 + $0x38] sm:$0xff]
        %v578 = vld [vmem:[#allocation2 + $0x40] sm:$0x3]
        %v579 = vld [vmem:[#allocation2 + $0x48] sm:$0xff]
        %v580 = vld [vmem:[#allocation2 + $0x50] sm:$0xff]
        %v581 = vld [vmem:[#allocation2 + $0x58] sm:$0x3]
        %v582 = vld [vmem:[#allocation2 + $0x60] sm:$0xff]
        %v583 = vld [vmem:[#allocation2 + $0x68] sm:$0xff]
        %v584 = vld [vmem:[#allocation2 + $0x70] sm:$0x3]
        %v585 = vld [vmem:[#allocation2 + $0x78] sm:$0xff]
        %v586 = vld [vmem:[#allocation2 + $0x80] sm:$0xff]
        %v587 = vld [vmem:[#allocation2 + $0x88] sm:$0x3]
        %v588 = vld [vmem:[#allocation2 + $0x90] sm:$0xff]
        %v589 = vld [vmem:[#allocation2 + $0x98] sm:$0xff]
        %v590 = vld [vmem:[#allocation2 + $0xa0] sm:$0x3]
        %v591 = vld [vmem:[#allocation2 + $0xa8] sm:$0xff]
        %v592 = vld [vmem:[#allocation2 + $0xb0] sm:$0xff]
        %v593 = vld [vmem:[#allocation2 + $0xb8] sm:$0x3]
        %v594 = vld [vmem:[#allocation2 + $0xc0] sm:$0xff]
        %v595 = vld [vmem:[#allocation2 + $0xc8] sm:$0xff]
        %v596 = vld [vmem:[#allocation2 + $0xd0] sm:$0x3]
        %v597 = vld [vmem:[#allocation2 + $0xd8] sm:$0xff]
        %v598 = vld [vmem:[#allocation2 + $0xe0] sm:$0xff]
        %v599 = vld [vmem:[#allocation2 + $0xe8] sm:$0x3]
        %v600 = vld [vmem:[#allocation2 + $0xf0] sm:$0xff]
        %v601 = vld [vmem:[#allocation2 + $0xf8] sm:$0xff]
        %v602 = vld [vmem:[#allocation2 + $0x100] sm:$0x3]
        %v603 = vld [vmem:[#allocation2 + $0x108] sm:$0xff]
        %v604 = vld [vmem:[#allocation2 + $0x110] sm:$0xff]
        %v605 = vld [vmem:[#allocation2 + $0x118] sm:$0x3]
        %v606 = vld [vmem:[#allocation2 + $0x120] sm:$0xff]
        %v607 = vld [vmem:[#allocation2 + $0x128] sm:$0xff]
        %v608 = vld [vmem:[#allocation2 + $0x130] sm:$0x3]
        %v609 = vld [vmem:[#allocation2 + $0x138] sm:$0xff]
        %v610 = vld [vmem:[#allocation2 + $0x140] sm:$0xff]
        %v611 = vld [vmem:[#allocation2 + $0x148] sm:$0x3]
        %v612 = vld [vmem:[#allocation2 + $0x150] sm:$0xff]
        %v613 = vld [vmem:[#allocation2 + $0x158] sm:$0xff]
        %v614 = vld [vmem:[#allocation2 + $0x160] sm:$0x3]
        %v615 = vld [vmem:[#allocation2 + $0x168] sm:$0xff]
        %v616 = vld [vmem:[#allocation2 + $0x170] sm:$0xff]
        %v617 = vld [vmem:[#allocation2 + $0x178] sm:$0x3]
        %vm666 = vcmask 1046528
        %v667 = vrot.slane %v570, 1
        %v668 = vrot.slane %v571, 1
        %v669 = vsel %vm666, %v667, %v668
        %v670 = vrot.slane %v572, 1
        %v671 = vsel %vm666, %v668, %v670
        %v672 = vrot.slane %v573, 1
        %v673 = vrot.slane %v574, 1
        %v674 = vsel %vm666, %v672, %v673
        %v675 = vrot.slane %v575, 1
        %v676 = vsel %vm666, %v673, %v675
        %v677 = vrot.slane %v576, 1
        %v678 = vrot.slane %v577, 1
        %v679 = vsel %vm666, %v677, %v678
        %v680 = vrot.slane %v578, 1
        %v681 = vsel %vm666, %v678, %v680
        %v682 = vrot.slane %v579, 1
        %v683 = vrot.slane %v580, 1
        %v684 = vsel %vm666, %v682, %v683
        %v685 = vrot.slane %v581, 1
        %v686 = vsel %vm666, %v683, %v685
        %v687 = vrot.slane %v582, 1
        %v688 = vrot.slane %v583, 1
        %v689 = vsel %vm666, %v687, %v688
        %v690 = vrot.slane %v584, 1
        %v691 = vsel %vm666, %v688, %v690
        %v692 = vrot.slane %v585, 1
        %v693 = vrot.slane %v586, 1
        %v694 = vsel %vm666, %v692, %v693
        %v695 = vrot.slane %v587, 1
        %v696 = vsel %vm666, %v693, %v695
        %v697 = vrot.slane %v588, 1
        %v698 = vrot.slane %v589, 1
        %v699 = vsel %vm666, %v697, %v698
        %v700 = vrot.slane %v590, 1
        %v701 = vsel %vm666, %v698, %v700
        %v702 = vrot.slane %v591, 1
        %v703 = vrot.slane %v592, 1
        %v704 = vsel %vm666, %v702, %v703
        %v705 = vrot.slane %v593, 1
        %v706 = vsel %vm666, %v703, %v705
        %v707 = vrot.slane %v594, 1
        %v708 = vrot.slane %v595, 1
        %v709 = vsel %vm666, %v707, %v708
        %v710 = vrot.slane %v596, 1
        %v711 = vsel %vm666, %v708, %v710
        %v712 = vrot.slane %v597, 1
        %v713 = vrot.slane %v598, 1
        %v714 = vsel %vm666, %v712, %v713
        %v715 = vrot.slane %v599, 1
        %v716 = vsel %vm666, %v713, %v715
        %v717 = vrot.slane %v600, 1
        %v718 = vrot.slane %v601, 1
        %v719 = vsel %vm666, %v717, %v718
        %v720 = vrot.slane %v602, 1
        %v721 = vsel %vm666, %v718, %v720
        %v722 = vrot.slane %v603, 1
        %v723 = vrot.slane %v604, 1
        %v724 = vsel %vm666, %v722, %v723
        %v725 = vrot.slane %v605, 1
        %v726 = vsel %vm666, %v723, %v725
        %v727 = vrot.slane %v606, 1
        %v728 = vrot.slane %v607, 1
        %v729 = vsel %vm666, %v727, %v728
        %v730 = vrot.slane %v608, 1
        %v731 = vsel %vm666, %v728, %v730
        %v732 = vrot.slane %v609, 1
        %v733 = vrot.slane %v610, 1
        %v734 = vsel %vm666, %v732, %v733
        %v735 = vrot.slane %v611, 1
        %v736 = vsel %vm666, %v733, %v735
        %v737 = vrot.slane %v612, 1
        %v738 = vrot.slane %v613, 1
        %v739 = vsel %vm666, %v737, %v738
        %v740 = vrot.slane %v614, 1
        %v741 = vsel %vm666, %v738, %v740
        %v742 = vrot.slane %v615, 1
        %v743 = vrot.slane %v616, 1
        %v744 = vsel %vm666, %v742, %v743
        %v745 = vrot.slane %v617, 1
        %v746 = vsel %vm666, %v743, %v745
        %vm747 = vcmask 1045504
        %v748 = vrot.slane %v570, 2
        %v749 = vrot.slane %v571, 2
        %v750 = vsel %vm747, %v748, %v749
        %v751 = vrot.slane %v572, 2
        %v752 = vsel %vm747, %v749, %v751
        %v753 = vrot.slane %v573, 2
        %v754 = vrot.slane %v574, 2
        %v755 = vsel %vm747, %v753, %v754
        %v756 = vrot.slane %v575, 2
        %v757 = vsel %vm747, %v754, %v756
        %v758 = vrot.slane %v576, 2
        %v759 = vrot.slane %v577, 2
        %v760 = vsel %vm747, %v758, %v759
        %v761 = vrot.slane %v578, 2
        %v762 = vsel %vm747, %v759, %v761
        %v763 = vrot.slane %v579, 2
        %v764 = vrot.slane %v580, 2
        %v765 = vsel %vm747, %v763, %v764
        %v766 = vrot.slane %v581, 2
        %v767 = vsel %vm747, %v764, %v766
        %v768 = vrot.slane %v582, 2
        %v769 = vrot.slane %v583, 2
        %v770 = vsel %vm747, %v768, %v769
        %v771 = vrot.slane %v584, 2
        %v772 = vsel %vm747, %v769, %v771
        %v773 = vrot.slane %v585, 2
        %v774 = vrot.slane %v586, 2
        %v775 = vsel %vm747, %v773, %v774
        %v776 = vrot.slane %v587, 2
        %v777 = vsel %vm747, %v774, %v776
        %v778 = vrot.slane %v588, 2
        %v779 = vrot.slane %v589, 2
        %v780 = vsel %vm747, %v778, %v779
        %v781 = vrot.slane %v590, 2
        %v782 = vsel %vm747, %v779, %v781
        %v783 = vrot.slane %v591, 2
        %v784 = vrot.slane %v592, 2
        %v785 = vsel %vm747, %v783, %v784
        %v786 = vrot.slane %v593, 2
        %v787 = vsel %vm747, %v784, %v786
        %v788 = vrot.slane %v594, 2
        %v789 = vrot.slane %v595, 2
        %v790 = vsel %vm747, %v788, %v789
        %v791 = vrot.slane %v596, 2
        %v792 = vsel %vm747, %v789, %v791
        %v793 = vrot.slane %v597, 2
        %v794 = vrot.slane %v598, 2
        %v795 = vsel %vm747, %v793, %v794
        %v796 = vrot.slane %v599, 2
        %v797 = vsel %vm747, %v794, %v796
        %v798 = vrot.slane %v600, 2
        %v799 = vrot.slane %v601, 2
        %v800 = vsel %vm747, %v798, %v799
        %v801 = vrot.slane %v602, 2
        %v802 = vsel %vm747, %v799, %v801
        %v803 = vrot.slane %v603, 2
        %v804 = vrot.slane %v604, 2
        %v805 = vsel %vm747, %v803, %v804
        %v806 = vrot.slane %v605, 2
        %v807 = vsel %vm747, %v804, %v806
        %v808 = vrot.slane %v606, 2
        %v809 = vrot.slane %v607, 2
        %v810 = vsel %vm747, %v808, %v809
        %v811 = vrot.slane %v608, 2
        %v812 = vsel %vm747, %v809, %v811
        %v813 = vrot.slane %v609, 2
        %v814 = vrot.slane %v610, 2
        %v815 = vsel %vm747, %v813, %v814
        %v816 = vrot.slane %v611, 2
        %v817 = vsel %vm747, %v814, %v816
        %v818 = vrot.slane %v612, 2
        %v819 = vrot.slane %v613, 2
        %v820 = vsel %vm747, %v818, %v819
        %v821 = vrot.slane %v614, 2
        %v822 = vsel %vm747, %v819, %v821
        %v823 = vrot.slane %v615, 2
        %v824 = vrot.slane %v616, 2
        %v825 = vsel %vm747, %v823, %v824
        %v826 = vrot.slane %v617, 2
        %v827 = vsel %vm747, %v824, %v826
        %v828 = vld [vmem:[%s343] sm:$0xff]
        %v829 = vld [vmem:[%s343 + $0x8] sm:$0xff]
        %v830 = vld [vmem:[%s343 + $0x10] sm:$0x3]
        %v831 = vld [vmem:[%s343 + $0x18] sm:$0xff]
        %v832 = vld [vmem:[%s343 + $0x20] sm:$0xff]
        %v833 = vld [vmem:[%s343 + $0x28] sm:$0x3]
        %v834 = vld [vmem:[%s343 + $0x30] sm:$0xff]
        %v835 = vld [vmem:[%s343 + $0x38] sm:$0xff]
        %v836 = vld [vmem:[%s343 + $0x40] sm:$0x3]
        %v837 = vld [vmem:[%s343 + $0x48] sm:$0xff]
        %v838 = vld [vmem:[%s343 + $0x50] sm:$0xff]
        %v839 = vld [vmem:[%s343 + $0x58] sm:$0x3]
        %v840 = vld [vmem:[%s343 + $0x60] sm:$0xff]
        %v841 = vld [vmem:[%s343 + $0x68] sm:$0xff]
        %v842 = vld [vmem:[%s343 + $0x70] sm:$0x3]
        %v843 = vld [vmem:[%s343 + $0x78] sm:$0xff]
        %v844 = vld [vmem:[%s343 + $0x80] sm:$0xff]
        %v845 = vld [vmem:[%s343 + $0x88] sm:$0x3]
        %v846 = vld [vmem:[%s343 + $0x90] sm:$0xff]
        %v847 = vld [vmem:[%s343 + $0x98] sm:$0xff]
        %v848 = vld [vmem:[%s343 + $0xa0] sm:$0x3]
        %v849 = vld [vmem:[%s343 + $0xa8] sm:$0xff]
        %v850 = vld [vmem:[%s343 + $0xb0] sm:$0xff]
        %v851 = vld [vmem:[%s343 + $0xb8] sm:$0x3]
        %v852 = vld [vmem:[%s343 + $0xc0] sm:$0xff]
        %v853 = vld [vmem:[%s343 + $0xc8] sm:$0xff]
        %v854 = vld [vmem:[%s343 + $0xd0] sm:$0x3]
        %v855 = vld [vmem:[%s343 + $0xd8] sm:$0xff]
        %v856 = vld [vmem:[%s343 + $0xe0] sm:$0xff]
        %v857 = vld [vmem:[%s343 + $0xe8] sm:$0x3]
        %v858 = vld [vmem:[%s343 + $0xf0] sm:$0xff]
        %v859 = vld [vmem:[%s343 + $0xf8] sm:$0xff]
        %v860 = vld [vmem:[%s343 + $0x100] sm:$0x3]
        %v861 = vld [vmem:[%s343 + $0x108] sm:$0xff]
        %v862 = vld [vmem:[%s343 + $0x110] sm:$0xff]
        %v863 = vld [vmem:[%s343 + $0x118] sm:$0x3]
        %v864 = vld [vmem:[%s343 + $0x120] sm:$0xff]
        %v865 = vld [vmem:[%s343 + $0x128] sm:$0xff]
        %v866 = vld [vmem:[%s343 + $0x130] sm:$0x3]
        %v867 = vld [vmem:[%s343 + $0x138] sm:$0xff]
        %v868 = vld [vmem:[%s343 + $0x140] sm:$0xff]
        %v869 = vld [vmem:[%s343 + $0x148] sm:$0x3]
        %v870 = vld [vmem:[%s343 + $0x150] sm:$0xff]
        %v871 = vld [vmem:[%s343 + $0x158] sm:$0xff]
        %v872 = vld [vmem:[%s343 + $0x160] sm:$0x3]
        %v873 = vld [vmem:[%s343 + $0x168] sm:$0xff]
        %v874 = vld [vmem:[%s343 + $0x170] sm:$0xff]
        %v875 = vld [vmem:[%s343 + $0x178] sm:$0x3]
        %v924 = vrot.slane %v828, 1
        %v925 = vrot.slane %v829, 1
        %v926 = vsel %vm666, %v924, %v925
        %v927 = vrot.slane %v830, 1
        %v928 = vsel %vm666, %v925, %v927
        %v929 = vrot.slane %v831, 1
        %v930 = vrot.slane %v832, 1
        %v931 = vsel %vm666, %v929, %v930
        %v932 = vrot.slane %v833, 1
        %v933 = vsel %vm666, %v930, %v932
        %v934 = vrot.slane %v834, 1
        %v935 = vrot.slane %v835, 1
        %v936 = vsel %vm666, %v934, %v935
        %v937 = vrot.slane %v836, 1
        %v938 = vsel %vm666, %v935, %v937
        %v939 = vrot.slane %v837, 1
        %v940 = vrot.slane %v838, 1
        %v941 = vsel %vm666, %v939, %v940
        %v942 = vrot.slane %v839, 1
        %v943 = vsel %vm666, %v940, %v942
        %v944 = vrot.slane %v840, 1
        %v945 = vrot.slane %v841, 1
        %v946 = vsel %vm666, %v944, %v945
        %v947 = vrot.slane %v842, 1
        %v948 = vsel %vm666, %v945, %v947
        %v949 = vrot.slane %v843, 1
        %v950 = vrot.slane %v844, 1
        %v951 = vsel %vm666, %v949, %v950
        %v952 = vrot.slane %v845, 1
        %v953 = vsel %vm666, %v950, %v952
        %v954 = vrot.slane %v846, 1
        %v955 = vrot.slane %v847, 1
        %v956 = vsel %vm666, %v954, %v955
        %v957 = vrot.slane %v848, 1
        %v958 = vsel %vm666, %v955, %v957
        %v959 = vrot.slane %v849, 1
        %v960 = vrot.slane %v850, 1
        %v961 = vsel %vm666, %v959, %v960
        %v962 = vrot.slane %v851, 1
        %v963 = vsel %vm666, %v960, %v962
        %v964 = vrot.slane %v852, 1
        %v965 = vrot.slane %v853, 1
        %v966 = vsel %vm666, %v964, %v965
        %v967 = vrot.slane %v854, 1
        %v968 = vsel %vm666, %v965, %v967
        %v969 = vrot.slane %v855, 1
        %v970 = vrot.slane %v856, 1
        %v971 = vsel %vm666, %v969, %v970
        %v972 = vrot.slane %v857, 1
        %v973 = vsel %vm666, %v970, %v972
        %v974 = vrot.slane %v858, 1
        %v975 = vrot.slane %v859, 1
        %v976 = vsel %vm666, %v974, %v975
        %v977 = vrot.slane %v860, 1
        %v978 = vsel %vm666, %v975, %v977
        %v979 = vrot.slane %v861, 1
        %v980 = vrot.slane %v862, 1
        %v981 = vsel %vm666, %v979, %v980
        %v982 = vrot.slane %v863, 1
        %v983 = vsel %vm666, %v980, %v982
        %v984 = vrot.slane %v864, 1
        %v985 = vrot.slane %v865, 1
        %v986 = vsel %vm666, %v984, %v985
        %v987 = vrot.slane %v866, 1
        %v988 = vsel %vm666, %v985, %v987
        %v989 = vrot.slane %v867, 1
        %v990 = vrot.slane %v868, 1
        %v991 = vsel %vm666, %v989, %v990
        %v992 = vrot.slane %v869, 1
        %v993 = vsel %vm666, %v990, %v992
        %v994 = vrot.slane %v870, 1
        %v995 = vrot.slane %v871, 1
        %v996 = vsel %vm666, %v994, %v995
        %v997 = vrot.slane %v872, 1
        %v998 = vsel %vm666, %v995, %v997
        %v999 = vrot.slane %v873, 1
        %v1000 = vrot.slane %v874, 1
        %v1001 = vsel %vm666, %v999, %v1000
        %v1002 = vrot.slane %v875, 1
        %v1003 = vsel %vm666, %v1000, %v1002
        %v1004 = vrot.slane %v828, 2
        %v1005 = vrot.slane %v829, 2
        %v1006 = vsel %vm747, %v1004, %v1005
        %v1007 = vrot.slane %v830, 2
        %v1008 = vsel %vm747, %v1005, %v1007
        %v1009 = vrot.slane %v831, 2
        %v1010 = vrot.slane %v832, 2
        %v1011 = vsel %vm747, %v1009, %v1010
        %v1012 = vrot.slane %v833, 2
        %v1013 = vsel %vm747, %v1010, %v1012
        %v1014 = vrot.slane %v834, 2
        %v1015 = vrot.slane %v835, 2
        %v1016 = vsel %vm747, %v1014, %v1015
        %v1017 = vrot.slane %v836, 2
        %v1018 = vsel %vm747, %v1015, %v1017
        %v1019 = vrot.slane %v837, 2
        %v1020 = vrot.slane %v838, 2
        %v1021 = vsel %vm747, %v1019, %v1020
        %v1022 = vrot.slane %v839, 2
        %v1023 = vsel %vm747, %v1020, %v1022
        %v1024 = vrot.slane %v840, 2
        %v1025 = vrot.slane %v841, 2
        %v1026 = vsel %vm747, %v1024, %v1025
        %v1027 = vrot.slane %v842, 2
        %v1028 = vsel %vm747, %v1025, %v1027
        %v1029 = vrot.slane %v843, 2
        %v1030 = vrot.slane %v844, 2
        %v1031 = vsel %vm747, %v1029, %v1030
        %v1032 = vrot.slane %v845, 2
        %v1033 = vsel %vm747, %v1030, %v1032
        %v1034 = vrot.slane %v846, 2
        %v1035 = vrot.slane %v847, 2
        %v1036 = vsel %vm747, %v1034, %v1035
        %v1037 = vrot.slane %v848, 2
        %v1038 = vsel %vm747, %v1035, %v1037
        %v1039 = vrot.slane %v849, 2
        %v1040 = vrot.slane %v850, 2
        %v1041 = vsel %vm747, %v1039, %v1040
        %v1042 = vrot.slane %v851, 2
        %v1043 = vsel %vm747, %v1040, %v1042
        %v1044 = vrot.slane %v852, 2
        %v1045 = vrot.slane %v853, 2
        %v1046 = vsel %vm747, %v1044, %v1045
        %v1047 = vrot.slane %v854, 2
        %v1048 = vsel %vm747, %v1045, %v1047
        %v1049 = vrot.slane %v855, 2
        %v1050 = vrot.slane %v856, 2
        %v1051 = vsel %vm747, %v1049, %v1050
        %v1052 = vrot.slane %v857, 2
        %v1053 = vsel %vm747, %v1050, %v1052
        %v1054 = vrot.slane %v858, 2
        %v1055 = vrot.slane %v859, 2
        %v1056 = vsel %vm747, %v1054, %v1055
        %v1057 = vrot.slane %v860, 2
        %v1058 = vsel %vm747, %v1055, %v1057
        %v1059 = vrot.slane %v861, 2
        %v1060 = vrot.slane %v862, 2
        %v1061 = vsel %vm747, %v1059, %v1060
        %v1062 = vrot.slane %v863, 2
        %v1063 = vsel %vm747, %v1060, %v1062
        %v1064 = vrot.slane %v864, 2
        %v1065 = vrot.slane %v865, 2
        %v1066 = vsel %vm747, %v1064, %v1065
        %v1067 = vrot.slane %v866, 2
        %v1068 = vsel %vm747, %v1065, %v1067
        %v1069 = vrot.slane %v867, 2
        %v1070 = vrot.slane %v868, 2
        %v1071 = vsel %vm747, %v1069, %v1070
        %v1072 = vrot.slane %v869, 2
        %v1073 = vsel %vm747, %v1070, %v1072
        %v1074 = vrot.slane %v870, 2
        %v1075 = vrot.slane %v871, 2
        %v1076 = vsel %vm747, %v1074, %v1075
        %v1077 = vrot.slane %v872, 2
        %v1078 = vsel %vm747, %v1075, %v1077
        %v1079 = vrot.slane %v873, 2
        %v1080 = vrot.slane %v874, 2
        %v1081 = vsel %vm747, %v1079, %v1080
        %v1082 = vrot.slane %v875, 2
        %v1083 = vsel %vm747, %v1080, %v1082
        %s1084 = scalar_lea.vmem [#allocation2], 48
        %v1085 = vld [vmem:[%s1084] sm:$0xff]
        %v1086 = vld [vmem:[%s1084 + $0x8] sm:$0xff]
        %v1087 = vld [vmem:[%s1084 + $0x10] sm:$0x3]
        %v1088 = vld [vmem:[%s1084 + $0x18] sm:$0xff]
        %v1089 = vld [vmem:[%s1084 + $0x20] sm:$0xff]
        %v1090 = vld [vmem:[%s1084 + $0x28] sm:$0x3]
        %v1091 = vld [vmem:[%s1084 + $0x30] sm:$0xff]
        %v1092 = vld [vmem:[%s1084 + $0x38] sm:$0xff]
        %v1093 = vld [vmem:[%s1084 + $0x40] sm:$0x3]
        %v1094 = vld [vmem:[%s1084 + $0x48] sm:$0xff]
        %v1095 = vld [vmem:[%s1084 + $0x50] sm:$0xff]
        %v1096 = vld [vmem:[%s1084 + $0x58] sm:$0x3]
        %v1097 = vld [vmem:[%s1084 + $0x60] sm:$0xff]
        %v1098 = vld [vmem:[%s1084 + $0x68] sm:$0xff]
        %v1099 = vld [vmem:[%s1084 + $0x70] sm:$0x3]
        %v1100 = vld [vmem:[%s1084 + $0x78] sm:$0xff]
        %v1101 = vld [vmem:[%s1084 + $0x80] sm:$0xff]
        %v1102 = vld [vmem:[%s1084 + $0x88] sm:$0x3]
        %v1103 = vld [vmem:[%s1084 + $0x90] sm:$0xff]
        %v1104 = vld [vmem:[%s1084 + $0x98] sm:$0xff]
        %v1105 = vld [vmem:[%s1084 + $0xa0] sm:$0x3]
        %v1106 = vld [vmem:[%s1084 + $0xa8] sm:$0xff]
        %v1107 = vld [vmem:[%s1084 + $0xb0] sm:$0xff]
        %v1108 = vld [vmem:[%s1084 + $0xb8] sm:$0x3]
        %v1109 = vld [vmem:[%s1084 + $0xc0] sm:$0xff]
        %v1110 = vld [vmem:[%s1084 + $0xc8] sm:$0xff]
        %v1111 = vld [vmem:[%s1084 + $0xd0] sm:$0x3]
        %v1112 = vld [vmem:[%s1084 + $0xd8] sm:$0xff]
        %v1113 = vld [vmem:[%s1084 + $0xe0] sm:$0xff]
        %v1114 = vld [vmem:[%s1084 + $0xe8] sm:$0x3]
        %v1115 = vld [vmem:[%s1084 + $0xf0] sm:$0xff]
        %v1116 = vld [vmem:[%s1084 + $0xf8] sm:$0xff]
        %v1117 = vld [vmem:[%s1084 + $0x100] sm:$0x3]
        %v1118 = vld [vmem:[%s1084 + $0x108] sm:$0xff]
        %v1119 = vld [vmem:[%s1084 + $0x110] sm:$0xff]
        %v1120 = vld [vmem:[%s1084 + $0x118] sm:$0x3]
        %v1121 = vld [vmem:[%s1084 + $0x120] sm:$0xff]
        %v1122 = vld [vmem:[%s1084 + $0x128] sm:$0xff]
        %v1123 = vld [vmem:[%s1084 + $0x130] sm:$0x3]
        %v1124 = vld [vmem:[%s1084 + $0x138] sm:$0xff]
        %v1125 = vld [vmem:[%s1084 + $0x140] sm:$0xff]
        %v1126 = vld [vmem:[%s1084 + $0x148] sm:$0x3]
        %v1127 = vld [vmem:[%s1084 + $0x150] sm:$0xff]
        %v1128 = vld [vmem:[%s1084 + $0x158] sm:$0xff]
        %v1129 = vld [vmem:[%s1084 + $0x160] sm:$0x3]
        %v1130 = vld [vmem:[%s1084 + $0x168] sm:$0xff]
        %v1131 = vld [vmem:[%s1084 + $0x170] sm:$0xff]
        %v1132 = vld [vmem:[%s1084 + $0x178] sm:$0x3]
        %v1181 = vrot.slane %v1085, 1
        %v1182 = vrot.slane %v1086, 1
        %v1183 = vsel %vm666, %v1181, %v1182
        %v1184 = vrot.slane %v1087, 1
        %v1185 = vsel %vm666, %v1182, %v1184
        %v1186 = vrot.slane %v1088, 1
        %v1187 = vrot.slane %v1089, 1
        %v1188 = vsel %vm666, %v1186, %v1187
        %v1189 = vrot.slane %v1090, 1
        %v1190 = vsel %vm666, %v1187, %v1189
        %v1191 = vrot.slane %v1091, 1
        %v1192 = vrot.slane %v1092, 1
        %v1193 = vsel %vm666, %v1191, %v1192
        %v1194 = vrot.slane %v1093, 1
        %v1195 = vsel %vm666, %v1192, %v1194
        %v1196 = vrot.slane %v1094, 1
        %v1197 = vrot.slane %v1095, 1
        %v1198 = vsel %vm666, %v1196, %v1197
        %v1199 = vrot.slane %v1096, 1
        %v1200 = vsel %vm666, %v1197, %v1199
        %v1201 = vrot.slane %v1097, 1
        %v1202 = vrot.slane %v1098, 1
        %v1203 = vsel %vm666, %v1201, %v1202
        %v1204 = vrot.slane %v1099, 1
        %v1205 = vsel %vm666, %v1202, %v1204
        %v1206 = vrot.slane %v1100, 1
        %v1207 = vrot.slane %v1101, 1
        %v1208 = vsel %vm666, %v1206, %v1207
        %v1209 = vrot.slane %v1102, 1
        %v1210 = vsel %vm666, %v1207, %v1209
        %v1211 = vrot.slane %v1103, 1
        %v1212 = vrot.slane %v1104, 1
        %v1213 = vsel %vm666, %v1211, %v1212
        %v1214 = vrot.slane %v1105, 1
        %v1215 = vsel %vm666, %v1212, %v1214
        %v1216 = vrot.slane %v1106, 1
        %v1217 = vrot.slane %v1107, 1
        %v1218 = vsel %vm666, %v1216, %v1217
        %v1219 = vrot.slane %v1108, 1
        %v1220 = vsel %vm666, %v1217, %v1219
        %v1221 = vrot.slane %v1109, 1
        %v1222 = vrot.slane %v1110, 1
        %v1223 = vsel %vm666, %v1221, %v1222
        %v1224 = vrot.slane %v1111, 1
        %v1225 = vsel %vm666, %v1222, %v1224
        %v1226 = vrot.slane %v1112, 1
        %v1227 = vrot.slane %v1113, 1
        %v1228 = vsel %vm666, %v1226, %v1227
        %v1229 = vrot.slane %v1114, 1
        %v1230 = vsel %vm666, %v1227, %v1229
        %v1231 = vrot.slane %v1115, 1
        %v1232 = vrot.slane %v1116, 1
        %v1233 = vsel %vm666, %v1231, %v1232
        %v1234 = vrot.slane %v1117, 1
        %v1235 = vsel %vm666, %v1232, %v1234
        %v1236 = vrot.slane %v1118, 1
        %v1237 = vrot.slane %v1119, 1
        %v1238 = vsel %vm666, %v1236, %v1237
        %v1239 = vrot.slane %v1120, 1
        %v1240 = vsel %vm666, %v1237, %v1239
        %v1241 = vrot.slane %v1121, 1
        %v1242 = vrot.slane %v1122, 1
        %v1243 = vsel %vm666, %v1241, %v1242
        %v1244 = vrot.slane %v1123, 1
        %v1245 = vsel %vm666, %v1242, %v1244
        %v1246 = vrot.slane %v1124, 1
        %v1247 = vrot.slane %v1125, 1
        %v1248 = vsel %vm666, %v1246, %v1247
        %v1249 = vrot.slane %v1126, 1
        %v1250 = vsel %vm666, %v1247, %v1249
        %v1251 = vrot.slane %v1127, 1
        %v1252 = vrot.slane %v1128, 1
        %v1253 = vsel %vm666, %v1251, %v1252
        %v1254 = vrot.slane %v1129, 1
        %v1255 = vsel %vm666, %v1252, %v1254
        %v1256 = vrot.slane %v1130, 1
        %v1257 = vrot.slane %v1131, 1
        %v1258 = vsel %vm666, %v1256, %v1257
        %v1259 = vrot.slane %v1132, 1
        %v1260 = vsel %vm666, %v1257, %v1259
        %v1261 = vrot.slane %v1085, 2
        %v1262 = vrot.slane %v1086, 2
        %v1263 = vsel %vm747, %v1261, %v1262
        %v1264 = vrot.slane %v1087, 2
        %v1265 = vsel %vm747, %v1262, %v1264
        %v1266 = vrot.slane %v1088, 2
        %v1267 = vrot.slane %v1089, 2
        %v1268 = vsel %vm747, %v1266, %v1267
        %v1269 = vrot.slane %v1090, 2
        %v1270 = vsel %vm747, %v1267, %v1269
        %v1271 = vrot.slane %v1091, 2
        %v1272 = vrot.slane %v1092, 2
        %v1273 = vsel %vm747, %v1271, %v1272
        %v1274 = vrot.slane %v1093, 2
        %v1275 = vsel %vm747, %v1272, %v1274
        %v1276 = vrot.slane %v1094, 2
        %v1277 = vrot.slane %v1095, 2
        %v1278 = vsel %vm747, %v1276, %v1277
        %v1279 = vrot.slane %v1096, 2
        %v1280 = vsel %vm747, %v1277, %v1279
        %v1281 = vrot.slane %v1097, 2
        %v1282 = vrot.slane %v1098, 2
        %v1283 = vsel %vm747, %v1281, %v1282
        %v1284 = vrot.slane %v1099, 2
        %v1285 = vsel %vm747, %v1282, %v1284
        %v1286 = vrot.slane %v1100, 2
        %v1287 = vrot.slane %v1101, 2
        %v1288 = vsel %vm747, %v1286, %v1287
        %v1289 = vrot.slane %v1102, 2
        %v1290 = vsel %vm747, %v1287, %v1289
        %v1291 = vrot.slane %v1103, 2
        %v1292 = vrot.slane %v1104, 2
        %v1293 = vsel %vm747, %v1291, %v1292
        %v1294 = vrot.slane %v1105, 2
        %v1295 = vsel %vm747, %v1292, %v1294
        %v1296 = vrot.slane %v1106, 2
        %v1297 = vrot.slane %v1107, 2
        %v1298 = vsel %vm747, %v1296, %v1297
        %v1299 = vrot.slane %v1108, 2
        %v1300 = vsel %vm747, %v1297, %v1299
        %v1301 = vrot.slane %v1109, 2
        %v1302 = vrot.slane %v1110, 2
        %v1303 = vsel %vm747, %v1301, %v1302
        %v1304 = vrot.slane %v1111, 2
        %v1305 = vsel %vm747, %v1302, %v1304
        %v1306 = vrot.slane %v1112, 2
        %v1307 = vrot.slane %v1113, 2
        %v1308 = vsel %vm747, %v1306, %v1307
        %v1309 = vrot.slane %v1114, 2
        %v1310 = vsel %vm747, %v1307, %v1309
        %v1311 = vrot.slane %v1115, 2
        %v1312 = vrot.slane %v1116, 2
        %v1313 = vsel %vm747, %v1311, %v1312
        %v1314 = vrot.slane %v1117, 2
        %v1315 = vsel %vm747, %v1312, %v1314
        %v1316 = vrot.slane %v1118, 2
        %v1317 = vrot.slane %v1119, 2
        %v1318 = vsel %vm747, %v1316, %v1317
        %v1319 = vrot.slane %v1120, 2
        %v1320 = vsel %vm747, %v1317, %v1319
        %v1321 = vrot.slane %v1121, 2
        %v1322 = vrot.slane %v1122, 2
        %v1323 = vsel %vm747, %v1321, %v1322
        %v1324 = vrot.slane %v1123, 2
        %v1325 = vsel %vm747, %v1322, %v1324
        %v1326 = vrot.slane %v1124, 2
        %v1327 = vrot.slane %v1125, 2
        %v1328 = vsel %vm747, %v1326, %v1327
        %v1329 = vrot.slane %v1126, 2
        %v1330 = vsel %vm747, %v1327, %v1329
        %v1331 = vrot.slane %v1127, 2
        %v1332 = vrot.slane %v1128, 2
        %v1333 = vsel %vm747, %v1331, %v1332
        %v1334 = vrot.slane %v1129, 2
        %v1335 = vsel %vm747, %v1332, %v1334
        %v1336 = vrot.slane %v1130, 2
        %v1337 = vrot.slane %v1131, 2
        %v1338 = vsel %vm747, %v1336, %v1337
        %v1339 = vrot.slane %v1132, 2
        %v1340 = vsel %vm747, %v1337, %v1339
        %1341 = vrot.lane.b32.xlu0 %v669, 36
        %v1342 = vpop.permute.xlu0 %1341
        %1343 = vrot.lane.b32.xlu0 %v671, 36
        %v1344 = vpop.permute.xlu0 %1343
        %1345 = vrot.lane.b32.xlu0 %v674, 36
        %v1346 = vpop.permute.xlu0 %1345
        %1347 = vrot.lane.b32.xlu0 %v676, 36
        %v1348 = vpop.permute.xlu0 %1347
        %1349 = vrot.lane.b32.xlu0 %v679, 36
        %v1350 = vpop.permute.xlu0 %1349
        %1351 = vrot.lane.b32.xlu0 %v681, 36
        %v1352 = vpop.permute.xlu0 %1351
        %1353 = vrot.lane.b32.xlu0 %v684, 36
        %v1354 = vpop.permute.xlu0 %1353
        %1355 = vrot.lane.b32.xlu0 %v686, 36
        %v1356 = vpop.permute.xlu0 %1355
        %1357 = vrot.lane.b32.xlu0 %v689, 36
        %v1358 = vpop.permute.xlu0 %1357
        %1359 = vrot.lane.b32.xlu0 %v691, 36
        %v1360 = vpop.permute.xlu0 %1359
        %1361 = vrot.lane.b32.xlu0 %v694, 36
        %v1362 = vpop.permute.xlu0 %1361
        %1363 = vrot.lane.b32.xlu0 %v696, 36
        %v1364 = vpop.permute.xlu0 %1363
        %1365 = vrot.lane.b32.xlu0 %v699, 36
        %v1366 = vpop.permute.xlu0 %1365
        %1367 = vrot.lane.b32.xlu0 %v701, 36
        %v1368 = vpop.permute.xlu0 %1367
        %1369 = vrot.lane.b32.xlu0 %v704, 36
        %v1370 = vpop.permute.xlu0 %1369
        %1371 = vrot.lane.b32.xlu0 %v706, 36
        %v1372 = vpop.permute.xlu0 %1371
        %1373 = vrot.lane.b32.xlu0 %v709, 36
        %v1374 = vpop.permute.xlu0 %1373
        %1375 = vrot.lane.b32.xlu0 %v711, 36
        %v1376 = vpop.permute.xlu0 %1375
        %1377 = vrot.lane.b32.xlu0 %v714, 36
        %v1378 = vpop.permute.xlu0 %1377
        %1379 = vrot.lane.b32.xlu0 %v716, 36
        %v1380 = vpop.permute.xlu0 %1379
        %1381 = vrot.lane.b32.xlu0 %v719, 36
        %v1382 = vpop.permute.xlu0 %1381
        %1383 = vrot.lane.b32.xlu0 %v721, 36
        %v1384 = vpop.permute.xlu0 %1383
        %1385 = vrot.lane.b32.xlu0 %v724, 36
        %v1386 = vpop.permute.xlu0 %1385
        %1387 = vrot.lane.b32.xlu0 %v726, 36
        %v1388 = vpop.permute.xlu0 %1387
        %1389 = vrot.lane.b32.xlu0 %v729, 36
        %v1390 = vpop.permute.xlu0 %1389
        %1391 = vrot.lane.b32.xlu0 %v731, 36
        %v1392 = vpop.permute.xlu0 %1391
        %1393 = vrot.lane.b32.xlu0 %v734, 36
        %v1394 = vpop.permute.xlu0 %1393
        %1395 = vrot.lane.b32.xlu0 %v736, 36
        %v1396 = vpop.permute.xlu0 %1395
        %1397 = vrot.lane.b32.xlu0 %v739, 36
        %v1398 = vpop.permute.xlu0 %1397
        %1399 = vrot.lane.b32.xlu0 %v741, 36
        %v1400 = vpop.permute.xlu0 %1399
        %1401 = vrot.lane.b32.xlu0 %v744, 36
        %v1402 = vpop.permute.xlu0 %1401
        %1403 = vrot.lane.b32.xlu0 %v746, 36
        %v1404 = vpop.permute.xlu0 %1403
        %1437 = vrot.lane.b32.xlu0 %v750, 72
        %v1438 = vpop.permute.xlu0 %1437
        %1439 = vrot.lane.b32.xlu0 %v752, 72
        %v1440 = vpop.permute.xlu0 %1439
        %1441 = vrot.lane.b32.xlu0 %v755, 72
        %v1442 = vpop.permute.xlu0 %1441
        %1443 = vrot.lane.b32.xlu0 %v757, 72
        %v1444 = vpop.permute.xlu0 %1443
        %1445 = vrot.lane.b32.xlu0 %v760, 72
        %v1446 = vpop.permute.xlu0 %1445
        %1447 = vrot.lane.b32.xlu0 %v762, 72
        %v1448 = vpop.permute.xlu0 %1447
        %1449 = vrot.lane.b32.xlu0 %v765, 72
        %v1450 = vpop.permute.xlu0 %1449
        %1451 = vrot.lane.b32.xlu0 %v767, 72
        %v1452 = vpop.permute.xlu0 %1451
        %1453 = vrot.lane.b32.xlu0 %v770, 72
        %v1454 = vpop.permute.xlu0 %1453
        %1455 = vrot.lane.b32.xlu0 %v772, 72
        %v1456 = vpop.permute.xlu0 %1455
        %1457 = vrot.lane.b32.xlu0 %v775, 72
        %v1458 = vpop.permute.xlu0 %1457
        %1459 = vrot.lane.b32.xlu0 %v777, 72
        %v1460 = vpop.permute.xlu0 %1459
        %1461 = vrot.lane.b32.xlu0 %v780, 72
        %v1462 = vpop.permute.xlu0 %1461
        %1463 = vrot.lane.b32.xlu0 %v782, 72
        %v1464 = vpop.permute.xlu0 %1463
        %1465 = vrot.lane.b32.xlu0 %v785, 72
        %v1466 = vpop.permute.xlu0 %1465
        %1467 = vrot.lane.b32.xlu0 %v787, 72
        %v1468 = vpop.permute.xlu0 %1467
        %1469 = vrot.lane.b32.xlu0 %v790, 72
        %v1470 = vpop.permute.xlu0 %1469
        %1471 = vrot.lane.b32.xlu0 %v792, 72
        %v1472 = vpop.permute.xlu0 %1471
        %1473 = vrot.lane.b32.xlu0 %v795, 72
        %v1474 = vpop.permute.xlu0 %1473
        %1475 = vrot.lane.b32.xlu0 %v797, 72
        %v1476 = vpop.permute.xlu0 %1475
        %1477 = vrot.lane.b32.xlu0 %v800, 72
        %v1478 = vpop.permute.xlu0 %1477
        %1479 = vrot.lane.b32.xlu0 %v802, 72
        %v1480 = vpop.permute.xlu0 %1479
        %1481 = vrot.lane.b32.xlu0 %v805, 72
        %v1482 = vpop.permute.xlu0 %1481
        %1483 = vrot.lane.b32.xlu0 %v807, 72
        %v1484 = vpop.permute.xlu0 %1483
        %1485 = vrot.lane.b32.xlu0 %v810, 72
        %v1486 = vpop.permute.xlu0 %1485
        %1487 = vrot.lane.b32.xlu0 %v812, 72
        %v1488 = vpop.permute.xlu0 %1487
        %1489 = vrot.lane.b32.xlu0 %v815, 72
        %v1490 = vpop.permute.xlu0 %1489
        %1491 = vrot.lane.b32.xlu0 %v817, 72
        %v1492 = vpop.permute.xlu0 %1491
        %1493 = vrot.lane.b32.xlu0 %v820, 72
        %v1494 = vpop.permute.xlu0 %1493
        %1495 = vrot.lane.b32.xlu0 %v822, 72
        %v1496 = vpop.permute.xlu0 %1495
        %1497 = vrot.lane.b32.xlu0 %v825, 72
        %v1498 = vpop.permute.xlu0 %1497
        %1499 = vrot.lane.b32.xlu0 %v827, 72
        %v1500 = vpop.permute.xlu0 %1499
        %1533 = vrot.lane.b32.xlu0 %v828, 108
        %v1534 = vpop.permute.xlu0 %1533
        %1535 = vrot.lane.b32.xlu0 %v829, 108
        %v1536 = vpop.permute.xlu0 %1535
        %1537 = vrot.lane.b32.xlu0 %v831, 108
        %v1538 = vpop.permute.xlu0 %1537
        %1539 = vrot.lane.b32.xlu0 %v832, 108
        %v1540 = vpop.permute.xlu0 %1539
        %1541 = vrot.lane.b32.xlu0 %v834, 108
        %v1542 = vpop.permute.xlu0 %1541
        %1543 = vrot.lane.b32.xlu0 %v835, 108
        %v1544 = vpop.permute.xlu0 %1543
        %1545 = vrot.lane.b32.xlu0 %v837, 108
        %v1546 = vpop.permute.xlu0 %1545
        %1547 = vrot.lane.b32.xlu0 %v838, 108
        %v1548 = vpop.permute.xlu0 %1547
        %1549 = vrot.lane.b32.xlu0 %v840, 108
        %v1550 = vpop.permute.xlu0 %1549
        %1551 = vrot.lane.b32.xlu0 %v841, 108
        %v1552 = vpop.permute.xlu0 %1551
        %1553 = vrot.lane.b32.xlu0 %v843, 108
        %v1554 = vpop.permute.xlu0 %1553
        %1555 = vrot.lane.b32.xlu0 %v844, 108
        %v1556 = vpop.permute.xlu0 %1555
        %1557 = vrot.lane.b32.xlu0 %v846, 108
        %v1558 = vpop.permute.xlu0 %1557
        %1559 = vrot.lane.b32.xlu0 %v847, 108
        %v1560 = vpop.permute.xlu0 %1559
        %1561 = vrot.lane.b32.xlu0 %v849, 108
        %v1562 = vpop.permute.xlu0 %1561
        %1563 = vrot.lane.b32.xlu0 %v850, 108
        %v1564 = vpop.permute.xlu0 %1563
        %1565 = vrot.lane.b32.xlu0 %v852, 108
        %v1566 = vpop.permute.xlu0 %1565
        %1567 = vrot.lane.b32.xlu0 %v853, 108
        %v1568 = vpop.permute.xlu0 %1567
        %1569 = vrot.lane.b32.xlu0 %v855, 108
        %v1570 = vpop.permute.xlu0 %1569
        %1571 = vrot.lane.b32.xlu0 %v856, 108
        %v1572 = vpop.permute.xlu0 %1571
        %1573 = vrot.lane.b32.xlu0 %v858, 108
        %v1574 = vpop.permute.xlu0 %1573
        %1575 = vrot.lane.b32.xlu0 %v859, 108
        %v1576 = vpop.permute.xlu0 %1575
        %1577 = vrot.lane.b32.xlu0 %v861, 108
        %v1578 = vpop.permute.xlu0 %1577
        %1579 = vrot.lane.b32.xlu0 %v862, 108
        %v1580 = vpop.permute.xlu0 %1579
        %1581 = vrot.lane.b32.xlu0 %v864, 108
        %v1582 = vpop.permute.xlu0 %1581
        %1583 = vrot.lane.b32.xlu0 %v865, 108
        %v1584 = vpop.permute.xlu0 %1583
        %1585 = vrot.lane.b32.xlu0 %v867, 108
        %v1586 = vpop.permute.xlu0 %1585
        %1587 = vrot.lane.b32.xlu0 %v868, 108
        %v1588 = vpop.permute.xlu0 %1587
        %1589 = vrot.lane.b32.xlu0 %v870, 108
        %v1590 = vpop.permute.xlu0 %1589
        %1591 = vrot.lane.b32.xlu0 %v871, 108
        %v1592 = vpop.permute.xlu0 %1591
        %1593 = vrot.lane.b32.xlu0 %v873, 108
        %v1594 = vpop.permute.xlu0 %1593
        %1595 = vrot.lane.b32.xlu0 %v874, 108
        %v1596 = vpop.permute.xlu0 %1595
        %1629 = vrot.lane.b32.xlu0 %v926, 16
        %v1630 = vpop.permute.xlu0 %1629
        %1631 = vrot.lane.b32.xlu0 %v928, 16
        %v1632 = vpop.permute.xlu0 %1631
        %1633 = vrot.lane.b32.xlu0 %v931, 16
        %v1634 = vpop.permute.xlu0 %1633
        %1635 = vrot.lane.b32.xlu0 %v933, 16
        %v1636 = vpop.permute.xlu0 %1635
        %1637 = vrot.lane.b32.xlu0 %v936, 16
        %v1638 = vpop.permute.xlu0 %1637
        %1639 = vrot.lane.b32.xlu0 %v938, 16
        %v1640 = vpop.permute.xlu0 %1639
        %1641 = vrot.lane.b32.xlu0 %v941, 16
        %v1642 = vpop.permute.xlu0 %1641
        %1643 = vrot.lane.b32.xlu0 %v943, 16
        %v1644 = vpop.permute.xlu0 %1643
        %1645 = vrot.lane.b32.xlu0 %v946, 16
        %v1646 = vpop.permute.xlu0 %1645
        %1647 = vrot.lane.b32.xlu0 %v948, 16
        %v1648 = vpop.permute.xlu0 %1647
        %1649 = vrot.lane.b32.xlu0 %v951, 16
        %v1650 = vpop.permute.xlu0 %1649
        %1651 = vrot.lane.b32.xlu0 %v953, 16
        %v1652 = vpop.permute.xlu0 %1651
        %1653 = vrot.lane.b32.xlu0 %v956, 16
        %v1654 = vpop.permute.xlu0 %1653
        %1655 = vrot.lane.b32.xlu0 %v958, 16
        %v1656 = vpop.permute.xlu0 %1655
        %1657 = vrot.lane.b32.xlu0 %v961, 16
        %v1658 = vpop.permute.xlu0 %1657
        %1659 = vrot.lane.b32.xlu0 %v963, 16
        %v1660 = vpop.permute.xlu0 %1659
        %1661 = vrot.lane.b32.xlu0 %v966, 16
        %v1662 = vpop.permute.xlu0 %1661
        %1663 = vrot.lane.b32.xlu0 %v968, 16
        %v1664 = vpop.permute.xlu0 %1663
        %1665 = vrot.lane.b32.xlu0 %v971, 16
        %v1666 = vpop.permute.xlu0 %1665
        %1667 = vrot.lane.b32.xlu0 %v973, 16
        %v1668 = vpop.permute.xlu0 %1667
        %1669 = vrot.lane.b32.xlu0 %v976, 16
        %v1670 = vpop.permute.xlu0 %1669
        %1671 = vrot.lane.b32.xlu0 %v978, 16
        %v1672 = vpop.permute.xlu0 %1671
        %1673 = vrot.lane.b32.xlu0 %v981, 16
        %v1674 = vpop.permute.xlu0 %1673
        %1675 = vrot.lane.b32.xlu0 %v983, 16
        %v1676 = vpop.permute.xlu0 %1675
        %1677 = vrot.lane.b32.xlu0 %v986, 16
        %v1678 = vpop.permute.xlu0 %1677
        %1679 = vrot.lane.b32.xlu0 %v988, 16
        %v1680 = vpop.permute.xlu0 %1679
        %1681 = vrot.lane.b32.xlu0 %v991, 16
        %v1682 = vpop.permute.xlu0 %1681
        %1683 = vrot.lane.b32.xlu0 %v993, 16
        %v1684 = vpop.permute.xlu0 %1683
        %1685 = vrot.lane.b32.xlu0 %v996, 16
        %v1686 = vpop.permute.xlu0 %1685
        %1687 = vrot.lane.b32.xlu0 %v998, 16
        %v1688 = vpop.permute.xlu0 %1687
        %1689 = vrot.lane.b32.xlu0 %v1001, 16
        %v1690 = vpop.permute.xlu0 %1689
        %1691 = vrot.lane.b32.xlu0 %v1003, 16
        %v1692 = vpop.permute.xlu0 %1691
        %1725 = vrot.lane.b32.xlu0 %v1006, 52
        %v1726 = vpop.permute.xlu0 %1725
        %1727 = vrot.lane.b32.xlu0 %v1008, 52
        %v1728 = vpop.permute.xlu0 %1727
        %1729 = vrot.lane.b32.xlu0 %v1011, 52
        %v1730 = vpop.permute.xlu0 %1729
        %1731 = vrot.lane.b32.xlu0 %v1013, 52
        %v1732 = vpop.permute.xlu0 %1731
        %1733 = vrot.lane.b32.xlu0 %v1016, 52
        %v1734 = vpop.permute.xlu0 %1733
        %1735 = vrot.lane.b32.xlu0 %v1018, 52
        %v1736 = vpop.permute.xlu0 %1735
        %1737 = vrot.lane.b32.xlu0 %v1021, 52
        %v1738 = vpop.permute.xlu0 %1737
        %1739 = vrot.lane.b32.xlu0 %v1023, 52
        %v1740 = vpop.permute.xlu0 %1739
        %1741 = vrot.lane.b32.xlu0 %v1026, 52
        %v1742 = vpop.permute.xlu0 %1741
        %1743 = vrot.lane.b32.xlu0 %v1028, 52
        %v1744 = vpop.permute.xlu0 %1743
        %1745 = vrot.lane.b32.xlu0 %v1031, 52
        %v1746 = vpop.permute.xlu0 %1745
        %1747 = vrot.lane.b32.xlu0 %v1033, 52
        %v1748 = vpop.permute.xlu0 %1747
        %1749 = vrot.lane.b32.xlu0 %v1036, 52
        %v1750 = vpop.permute.xlu0 %1749
        %1751 = vrot.lane.b32.xlu0 %v1038, 52
        %v1752 = vpop.permute.xlu0 %1751
        %1753 = vrot.lane.b32.xlu0 %v1041, 52
        %v1754 = vpop.permute.xlu0 %1753
        %1755 = vrot.lane.b32.xlu0 %v1043, 52
        %v1756 = vpop.permute.xlu0 %1755
        %1757 = vrot.lane.b32.xlu0 %v1046, 52
        %v1758 = vpop.permute.xlu0 %1757
        %1759 = vrot.lane.b32.xlu0 %v1048, 52
        %v1760 = vpop.permute.xlu0 %1759
        %1761 = vrot.lane.b32.xlu0 %v1051, 52
        %v1762 = vpop.permute.xlu0 %1761
        %1763 = vrot.lane.b32.xlu0 %v1053, 52
        %v1764 = vpop.permute.xlu0 %1763
        %1765 = vrot.lane.b32.xlu0 %v1056, 52
        %v1766 = vpop.permute.xlu0 %1765
        %1767 = vrot.lane.b32.xlu0 %v1058, 52
        %v1768 = vpop.permute.xlu0 %1767
        %1769 = vrot.lane.b32.xlu0 %v1061, 52
        %v1770 = vpop.permute.xlu0 %1769
        %1771 = vrot.lane.b32.xlu0 %v1063, 52
        %v1772 = vpop.permute.xlu0 %1771
        %1773 = vrot.lane.b32.xlu0 %v1066, 52
        %v1774 = vpop.permute.xlu0 %1773
        %1775 = vrot.lane.b32.xlu0 %v1068, 52
        %v1776 = vpop.permute.xlu0 %1775
        %1777 = vrot.lane.b32.xlu0 %v1071, 52
        %v1778 = vpop.permute.xlu0 %1777
        %1779 = vrot.lane.b32.xlu0 %v1073, 52
        %v1780 = vpop.permute.xlu0 %1779
        %1781 = vrot.lane.b32.xlu0 %v1076, 52
        %v1782 = vpop.permute.xlu0 %1781
        %1783 = vrot.lane.b32.xlu0 %v1078, 52
        %v1784 = vpop.permute.xlu0 %1783
        %1785 = vrot.lane.b32.xlu0 %v1081, 52
        %v1786 = vpop.permute.xlu0 %1785
        %1787 = vrot.lane.b32.xlu0 %v1083, 52
        %v1788 = vpop.permute.xlu0 %1787
        %1821 = vrot.lane.b32.xlu0 %v1085, 88
        %v1822 = vpop.permute.xlu0 %1821
        %1823 = vrot.lane.b32.xlu0 %v1086, 88
        %v1824 = vpop.permute.xlu0 %1823
        %1825 = vrot.lane.b32.xlu0 %v1088, 88
        %v1826 = vpop.permute.xlu0 %1825
        %1827 = vrot.lane.b32.xlu0 %v1089, 88
        %v1828 = vpop.permute.xlu0 %1827
        %1829 = vrot.lane.b32.xlu0 %v1091, 88
        %v1830 = vpop.permute.xlu0 %1829
        %1831 = vrot.lane.b32.xlu0 %v1092, 88
        %v1832 = vpop.permute.xlu0 %1831
        %1833 = vrot.lane.b32.xlu0 %v1094, 88
        %v1834 = vpop.permute.xlu0 %1833
        %1835 = vrot.lane.b32.xlu0 %v1095, 88
        %v1836 = vpop.permute.xlu0 %1835
        %1837 = vrot.lane.b32.xlu0 %v1097, 88
        %v1838 = vpop.permute.xlu0 %1837
        %1839 = vrot.lane.b32.xlu0 %v1098, 88
        %v1840 = vpop.permute.xlu0 %1839
        %1841 = vrot.lane.b32.xlu0 %v1100, 88
        %v1842 = vpop.permute.xlu0 %1841
        %1843 = vrot.lane.b32.xlu0 %v1101, 88
        %v1844 = vpop.permute.xlu0 %1843
        %1845 = vrot.lane.b32.xlu0 %v1103, 88
        %v1846 = vpop.permute.xlu0 %1845
        %1847 = vrot.lane.b32.xlu0 %v1104, 88
        %v1848 = vpop.permute.xlu0 %1847
        %1849 = vrot.lane.b32.xlu0 %v1106, 88
        %v1850 = vpop.permute.xlu0 %1849
        %1851 = vrot.lane.b32.xlu0 %v1107, 88
        %v1852 = vpop.permute.xlu0 %1851
        %1853 = vrot.lane.b32.xlu0 %v1109, 88
        %v1854 = vpop.permute.xlu0 %1853
        %1855 = vrot.lane.b32.xlu0 %v1110, 88
        %v1856 = vpop.permute.xlu0 %1855
        %1857 = vrot.lane.b32.xlu0 %v1112, 88
        %v1858 = vpop.permute.xlu0 %1857
        %1859 = vrot.lane.b32.xlu0 %v1113, 88
        %v1860 = vpop.permute.xlu0 %1859
        %1861 = vrot.lane.b32.xlu0 %v1115, 88
        %v1862 = vpop.permute.xlu0 %1861
        %1863 = vrot.lane.b32.xlu0 %v1116, 88
        %v1864 = vpop.permute.xlu0 %1863
        %1865 = vrot.lane.b32.xlu0 %v1118, 88
        %v1866 = vpop.permute.xlu0 %1865
        %1867 = vrot.lane.b32.xlu0 %v1119, 88
        %v1868 = vpop.permute.xlu0 %1867
        %1869 = vrot.lane.b32.xlu0 %v1121, 88
        %v1870 = vpop.permute.xlu0 %1869
        %1871 = vrot.lane.b32.xlu0 %v1122, 88
        %v1872 = vpop.permute.xlu0 %1871
        %1873 = vrot.lane.b32.xlu0 %v1124, 88
        %v1874 = vpop.permute.xlu0 %1873
        %1875 = vrot.lane.b32.xlu0 %v1125, 88
        %v1876 = vpop.permute.xlu0 %1875
        %1877 = vrot.lane.b32.xlu0 %v1127, 88
        %v1878 = vpop.permute.xlu0 %1877
        %1879 = vrot.lane.b32.xlu0 %v1128, 88
        %v1880 = vpop.permute.xlu0 %1879
        %1881 = vrot.lane.b32.xlu0 %v1130, 88
        %v1882 = vpop.permute.xlu0 %1881
        %1883 = vrot.lane.b32.xlu0 %v1131, 88
        %v1884 = vpop.permute.xlu0 %1883
        %1917 = vrot.lane.b32.xlu0 %v1183, 124
        %v1918 = vpop.permute.xlu0 %1917
        %1919 = vrot.lane.b32.xlu0 %v1185, 124
        %v1920 = vpop.permute.xlu0 %1919
        %1921 = vrot.lane.b32.xlu0 %v1188, 124
        %v1922 = vpop.permute.xlu0 %1921
        %1923 = vrot.lane.b32.xlu0 %v1190, 124
        %v1924 = vpop.permute.xlu0 %1923
        %1925 = vrot.lane.b32.xlu0 %v1193, 124
        %v1926 = vpop.permute.xlu0 %1925
        %1927 = vrot.lane.b32.xlu0 %v1195, 124
        %v1928 = vpop.permute.xlu0 %1927
        %1929 = vrot.lane.b32.xlu0 %v1198, 124
        %v1930 = vpop.permute.xlu0 %1929
        %1931 = vrot.lane.b32.xlu0 %v1200, 124
        %v1932 = vpop.permute.xlu0 %1931
        %1933 = vrot.lane.b32.xlu0 %v1203, 124
        %v1934 = vpop.permute.xlu0 %1933
        %1935 = vrot.lane.b32.xlu0 %v1205, 124
        %v1936 = vpop.permute.xlu0 %1935
        %1937 = vrot.lane.b32.xlu0 %v1208, 124
        %v1938 = vpop.permute.xlu0 %1937
        %1939 = vrot.lane.b32.xlu0 %v1210, 124
        %v1940 = vpop.permute.xlu0 %1939
        %1941 = vrot.lane.b32.xlu0 %v1213, 124
        %v1942 = vpop.permute.xlu0 %1941
        %1943 = vrot.lane.b32.xlu0 %v1215, 124
        %v1944 = vpop.permute.xlu0 %1943
        %1945 = vrot.lane.b32.xlu0 %v1218, 124
        %v1946 = vpop.permute.xlu0 %1945
        %1947 = vrot.lane.b32.xlu0 %v1220, 124
        %v1948 = vpop.permute.xlu0 %1947
        %1949 = vrot.lane.b32.xlu0 %v1223, 124
        %v1950 = vpop.permute.xlu0 %1949
        %1951 = vrot.lane.b32.xlu0 %v1225, 124
        %v1952 = vpop.permute.xlu0 %1951
        %1953 = vrot.lane.b32.xlu0 %v1228, 124
        %v1954 = vpop.permute.xlu0 %1953
        %1955 = vrot.lane.b32.xlu0 %v1230, 124
        %v1956 = vpop.permute.xlu0 %1955
        %1957 = vrot.lane.b32.xlu0 %v1233, 124
        %v1958 = vpop.permute.xlu0 %1957
        %1959 = vrot.lane.b32.xlu0 %v1235, 124
        %v1960 = vpop.permute.xlu0 %1959
        %1961 = vrot.lane.b32.xlu0 %v1238, 124
        %v1962 = vpop.permute.xlu0 %1961
        %1963 = vrot.lane.b32.xlu0 %v1240, 124
        %v1964 = vpop.permute.xlu0 %1963
        %1965 = vrot.lane.b32.xlu0 %v1243, 124
        %v1966 = vpop.permute.xlu0 %1965
        %1967 = vrot.lane.b32.xlu0 %v1245, 124
        %v1968 = vpop.permute.xlu0 %1967
        %1969 = vrot.lane.b32.xlu0 %v1248, 124
        %v1970 = vpop.permute.xlu0 %1969
        %1971 = vrot.lane.b32.xlu0 %v1250, 124
        %v1972 = vpop.permute.xlu0 %1971
        %1973 = vrot.lane.b32.xlu0 %v1253, 124
        %v1974 = vpop.permute.xlu0 %1973
        %1975 = vrot.lane.b32.xlu0 %v1255, 124
        %v1976 = vpop.permute.xlu0 %1975
        %1977 = vrot.lane.b32.xlu0 %v1258, 124
        %v1978 = vpop.permute.xlu0 %1977
        %1979 = vrot.lane.b32.xlu0 %v1260, 124
        %v1980 = vpop.permute.xlu0 %1979
        %2013 = vrot.lane.b32.xlu0 %v1263, 32
        %v2014 = vpop.permute.xlu0 %2013
        %2015 = vrot.lane.b32.xlu0 %v1265, 32
        %v2016 = vpop.permute.xlu0 %2015
        %2017 = vrot.lane.b32.xlu0 %v1268, 32
        %v2018 = vpop.permute.xlu0 %2017
        %2019 = vrot.lane.b32.xlu0 %v1270, 32
        %v2020 = vpop.permute.xlu0 %2019
        %2021 = vrot.lane.b32.xlu0 %v1273, 32
        %v2022 = vpop.permute.xlu0 %2021
        %2023 = vrot.lane.b32.xlu0 %v1275, 32
        %v2024 = vpop.permute.xlu0 %2023
        %2025 = vrot.lane.b32.xlu0 %v1278, 32
        %v2026 = vpop.permute.xlu0 %2025
        %2027 = vrot.lane.b32.xlu0 %v1280, 32
        %v2028 = vpop.permute.xlu0 %2027
        %2029 = vrot.lane.b32.xlu0 %v1283, 32
        %v2030 = vpop.permute.xlu0 %2029
        %2031 = vrot.lane.b32.xlu0 %v1285, 32
        %v2032 = vpop.permute.xlu0 %2031
        %2033 = vrot.lane.b32.xlu0 %v1288, 32
        %v2034 = vpop.permute.xlu0 %2033
        %2035 = vrot.lane.b32.xlu0 %v1290, 32
        %v2036 = vpop.permute.xlu0 %2035
        %2037 = vrot.lane.b32.xlu0 %v1293, 32
        %v2038 = vpop.permute.xlu0 %2037
        %2039 = vrot.lane.b32.xlu0 %v1295, 32
        %v2040 = vpop.permute.xlu0 %2039
        %2041 = vrot.lane.b32.xlu0 %v1298, 32
        %v2042 = vpop.permute.xlu0 %2041
        %2043 = vrot.lane.b32.xlu0 %v1300, 32
        %v2044 = vpop.permute.xlu0 %2043
        %2045 = vrot.lane.b32.xlu0 %v1303, 32
        %v2046 = vpop.permute.xlu0 %2045
        %2047 = vrot.lane.b32.xlu0 %v1305, 32
        %v2048 = vpop.permute.xlu0 %2047
        %2049 = vrot.lane.b32.xlu0 %v1308, 32
        %v2050 = vpop.permute.xlu0 %2049
        %2051 = vrot.lane.b32.xlu0 %v1310, 32
        %v2052 = vpop.permute.xlu0 %2051
        %2053 = vrot.lane.b32.xlu0 %v1313, 32
        %v2054 = vpop.permute.xlu0 %2053
        %2055 = vrot.lane.b32.xlu0 %v1315, 32
        %v2056 = vpop.permute.xlu0 %2055
        %2057 = vrot.lane.b32.xlu0 %v1318, 32
        %v2058 = vpop.permute.xlu0 %2057
        %2059 = vrot.lane.b32.xlu0 %v1320, 32
        %v2060 = vpop.permute.xlu0 %2059
        %2061 = vrot.lane.b32.xlu0 %v1323, 32
        %v2062 = vpop.permute.xlu0 %2061
        %2063 = vrot.lane.b32.xlu0 %v1325, 32
        %v2064 = vpop.permute.xlu0 %2063
        %2065 = vrot.lane.b32.xlu0 %v1328, 32
        %v2066 = vpop.permute.xlu0 %2065
        %2067 = vrot.lane.b32.xlu0 %v1330, 32
        %v2068 = vpop.permute.xlu0 %2067
        %2069 = vrot.lane.b32.xlu0 %v1333, 32
        %v2070 = vpop.permute.xlu0 %2069
        %2071 = vrot.lane.b32.xlu0 %v1335, 32
        %v2072 = vpop.permute.xlu0 %2071
        %2073 = vrot.lane.b32.xlu0 %v1338, 32
        %v2074 = vpop.permute.xlu0 %2073
        %2075 = vrot.lane.b32.xlu0 %v1340, 32
        %v2076 = vpop.permute.xlu0 %2075
        %v2109 = vsel %vm334, %v570, %v1342
        %v2110 = vsel %vm334, %v571, %v1344
        %v2111 = vsel %vm334, %v573, %v1346
        %v2112 = vsel %vm334, %v574, %v1348
        %v2113 = vsel %vm334, %v576, %v1350
        %v2114 = vsel %vm334, %v577, %v1352
        %v2115 = vsel %vm334, %v579, %v1354
        %v2116 = vsel %vm334, %v580, %v1356
        %v2117 = vsel %vm334, %v582, %v1358
        %v2118 = vsel %vm334, %v583, %v1360
        %v2119 = vsel %vm334, %v585, %v1362
        %v2120 = vsel %vm334, %v586, %v1364
        %v2121 = vsel %vm334, %v588, %v1366
        %v2122 = vsel %vm334, %v589, %v1368
        %v2123 = vsel %vm334, %v591, %v1370
        %v2124 = vsel %vm334, %v592, %v1372
        %v2125 = vsel %vm334, %v594, %v1374
        %v2126 = vsel %vm334, %v595, %v1376
        %v2127 = vsel %vm334, %v597, %v1378
        %v2128 = vsel %vm334, %v598, %v1380
        %v2129 = vsel %vm334, %v600, %v1382
        %v2130 = vsel %vm334, %v601, %v1384
        %v2131 = vsel %vm334, %v603, %v1386
        %v2132 = vsel %vm334, %v604, %v1388
        %v2133 = vsel %vm334, %v606, %v1390
        %v2134 = vsel %vm334, %v607, %v1392
        %v2135 = vsel %vm334, %v609, %v1394
        %v2136 = vsel %vm334, %v610, %v1396
        %v2137 = vsel %vm334, %v612, %v1398
        %v2138 = vsel %vm334, %v613, %v1400
        %v2139 = vsel %vm334, %v615, %v1402
        %v2140 = vsel %vm334, %v616, %v1404
        %vm2141 = vcmask 588800
        %v2142 = vsel %vm2141, %v2109, %v1438
        %v2143 = vsel %vm2141, %v2110, %v1440
        %v2144 = vsel %vm2141, %v2111, %v1442
        %v2145 = vsel %vm2141, %v2112, %v1444
        %v2146 = vsel %vm2141, %v2113, %v1446
        %v2147 = vsel %vm2141, %v2114, %v1448
        %v2148 = vsel %vm2141, %v2115, %v1450
        %v2149 = vsel %vm2141, %v2116, %v1452
        %v2150 = vsel %vm2141, %v2117, %v1454
        %v2151 = vsel %vm2141, %v2118, %v1456
        %v2152 = vsel %vm2141, %v2119, %v1458
        %v2153 = vsel %vm2141, %v2120, %v1460
        %v2154 = vsel %vm2141, %v2121, %v1462
        %v2155 = vsel %vm2141, %v2122, %v1464
        %v2156 = vsel %vm2141, %v2123, %v1466
        %v2157 = vsel %vm2141, %v2124, %v1468
        %v2158 = vsel %vm2141, %v2125, %v1470
        %v2159 = vsel %vm2141, %v2126, %v1472
        %v2160 = vsel %vm2141, %v2127, %v1474
        %v2161 = vsel %vm2141, %v2128, %v1476
        %v2162 = vsel %vm2141, %v2129, %v1478
        %v2163 = vsel %vm2141, %v2130, %v1480
        %v2164 = vsel %vm2141, %v2131, %v1482
        %v2165 = vsel %vm2141, %v2132, %v1484
        %v2166 = vsel %vm2141, %v2133, %v1486
        %v2167 = vsel %vm2141, %v2134, %v1488
        %v2168 = vsel %vm2141, %v2135, %v1490
        %v2169 = vsel %vm2141, %v2136, %v1492
        %v2170 = vsel %vm2141, %v2137, %v1494
        %v2171 = vsel %vm2141, %v2138, %v1496
        %v2172 = vsel %vm2141, %v2139, %v1498
        %v2173 = vsel %vm2141, %v2140, %v1500
        %vm2174 = vcmask 883712
        %v2175 = vsel %vm2174, %v2142, %v1534
        %v2176 = vsel %vm2174, %v2143, %v1536
        %v2177 = vsel %vm2174, %v2144, %v1538
        %v2178 = vsel %vm2174, %v2145, %v1540
        %v2179 = vsel %vm2174, %v2146, %v1542
        %v2180 = vsel %vm2174, %v2147, %v1544
        %v2181 = vsel %vm2174, %v2148, %v1546
        %v2182 = vsel %vm2174, %v2149, %v1548
        %v2183 = vsel %vm2174, %v2150, %v1550
        %v2184 = vsel %vm2174, %v2151, %v1552
        %v2185 = vsel %vm2174, %v2152, %v1554
        %v2186 = vsel %vm2174, %v2153, %v1556
        %v2187 = vsel %vm2174, %v2154, %v1558
        %v2188 = vsel %vm2174, %v2155, %v1560
        %v2189 = vsel %vm2174, %v2156, %v1562
        %v2190 = vsel %vm2174, %v2157, %v1564
        %v2191 = vsel %vm2174, %v2158, %v1566
        %v2192 = vsel %vm2174, %v2159, %v1568
        %v2193 = vsel %vm2174, %v2160, %v1570
        %v2194 = vsel %vm2174, %v2161, %v1572
        %v2195 = vsel %vm2174, %v2162, %v1574
        %v2196 = vsel %vm2174, %v2163, %v1576
        %v2197 = vsel %vm2174, %v2164, %v1578
        %v2198 = vsel %vm2174, %v2165, %v1580
        %v2199 = vsel %vm2174, %v2166, %v1582
        %v2200 = vsel %vm2174, %v2167, %v1584
        %v2201 = vsel %vm2174, %v2168, %v1586
        %v2202 = vsel %vm2174, %v2169, %v1588
        %v2203 = vsel %vm2174, %v2170, %v1590
        %v2204 = vsel %vm2174, %v2171, %v1592
        %v2205 = vsel %vm2174, %v2172, %v1594
        %v2206 = vsel %vm2174, %v2173, %v1596
        %vm2207 = vcmask 130048
        %v2208 = vsel %vm2207, %v1534, %v1630
        %v2209 = vsel %vm2207, %v1536, %v1632
        %v2210 = vsel %vm2207, %v1538, %v1634
        %v2211 = vsel %vm2207, %v1540, %v1636
        %v2212 = vsel %vm2207, %v1542, %v1638
        %v2213 = vsel %vm2207, %v1544, %v1640
        %v2214 = vsel %vm2207, %v1546, %v1642
        %v2215 = vsel %vm2207, %v1548, %v1644
        %v2216 = vsel %vm2207, %v1550, %v1646
        %v2217 = vsel %vm2207, %v1552, %v1648
        %v2218 = vsel %vm2207, %v1554, %v1650
        %v2219 = vsel %vm2207, %v1556, %v1652
        %v2220 = vsel %vm2207, %v1558, %v1654
        %v2221 = vsel %vm2207, %v1560, %v1656
        %v2222 = vsel %vm2207, %v1562, %v1658
        %v2223 = vsel %vm2207, %v1564, %v1660
        %v2224 = vsel %vm2207, %v1566, %v1662
        %v2225 = vsel %vm2207, %v1568, %v1664
        %v2226 = vsel %vm2207, %v1570, %v1666
        %v2227 = vsel %vm2207, %v1572, %v1668
        %v2228 = vsel %vm2207, %v1574, %v1670
        %v2229 = vsel %vm2207, %v1576, %v1672
        %v2230 = vsel %vm2207, %v1578, %v1674
        %v2231 = vsel %vm2207, %v1580, %v1676
        %v2232 = vsel %vm2207, %v1582, %v1678
        %v2233 = vsel %vm2207, %v1584, %v1680
        %v2234 = vsel %vm2207, %v1586, %v1682
        %v2235 = vsel %vm2207, %v1588, %v1684
        %v2236 = vsel %vm2207, %v1590, %v1686
        %v2237 = vsel %vm2207, %v1592, %v1688
        %v2238 = vsel %vm2207, %v1594, %v1690
        %v2239 = vsel %vm2207, %v1596, %v1692
        %vm2240 = vcmask 424960
        %v2241 = vsel %vm2240, %v2208, %v1726
        %v2242 = vsel %vm2240, %v2209, %v1728
        %v2243 = vsel %vm2240, %v2210, %v1730
        %v2244 = vsel %vm2240, %v2211, %v1732
        %v2245 = vsel %vm2240, %v2212, %v1734
        %v2246 = vsel %vm2240, %v2213, %v1736
        %v2247 = vsel %vm2240, %v2214, %v1738
        %v2248 = vsel %vm2240, %v2215, %v1740
        %v2249 = vsel %vm2240, %v2216, %v1742
        %v2250 = vsel %vm2240, %v2217, %v1744
        %v2251 = vsel %vm2240, %v2218, %v1746
        %v2252 = vsel %vm2240, %v2219, %v1748
        %v2253 = vsel %vm2240, %v2220, %v1750
        %v2254 = vsel %vm2240, %v2221, %v1752
        %v2255 = vsel %vm2240, %v2222, %v1754
        %v2256 = vsel %vm2240, %v2223, %v1756
        %v2257 = vsel %vm2240, %v2224, %v1758
        %v2258 = vsel %vm2240, %v2225, %v1760
        %v2259 = vsel %vm2240, %v2226, %v1762
        %v2260 = vsel %vm2240, %v2227, %v1764
        %v2261 = vsel %vm2240, %v2228, %v1766
        %v2262 = vsel %vm2240, %v2229, %v1768
        %v2263 = vsel %vm2240, %v2230, %v1770
        %v2264 = vsel %vm2240, %v2231, %v1772
        %v2265 = vsel %vm2240, %v2232, %v1774
        %v2266 = vsel %vm2240, %v2233, %v1776
        %v2267 = vsel %vm2240, %v2234, %v1778
        %v2268 = vsel %vm2240, %v2235, %v1780
        %v2269 = vsel %vm2240, %v2236, %v1782
        %v2270 = vsel %vm2240, %v2237, %v1784
        %v2271 = vsel %vm2240, %v2238, %v1786
        %v2272 = vsel %vm2240, %v2239, %v1788
        %vm2273 = vcmask 719872
        %v2274 = vsel %vm2273, %v2241, %v1822
        %v2275 = vsel %vm2273, %v2242, %v1824
        %v2276 = vsel %vm2273, %v2243, %v1826
        %v2277 = vsel %vm2273, %v2244, %v1828
        %v2278 = vsel %vm2273, %v2245, %v1830
        %v2279 = vsel %vm2273, %v2246, %v1832
        %v2280 = vsel %vm2273, %v2247, %v1834
        %v2281 = vsel %vm2273, %v2248, %v1836
        %v2282 = vsel %vm2273, %v2249, %v1838
        %v2283 = vsel %vm2273, %v2250, %v1840
        %v2284 = vsel %vm2273, %v2251, %v1842
        %v2285 = vsel %vm2273, %v2252, %v1844
        %v2286 = vsel %vm2273, %v2253, %v1846
        %v2287 = vsel %vm2273, %v2254, %v1848
        %v2288 = vsel %vm2273, %v2255, %v1850
        %v2289 = vsel %vm2273, %v2256, %v1852
        %v2290 = vsel %vm2273, %v2257, %v1854
        %v2291 = vsel %vm2273, %v2258, %v1856
        %v2292 = vsel %vm2273, %v2259, %v1858
        %v2293 = vsel %vm2273, %v2260, %v1860
        %v2294 = vsel %vm2273, %v2261, %v1862
        %v2295 = vsel %vm2273, %v2262, %v1864
        %v2296 = vsel %vm2273, %v2263, %v1866
        %v2297 = vsel %vm2273, %v2264, %v1868
        %v2298 = vsel %vm2273, %v2265, %v1870
        %v2299 = vsel %vm2273, %v2266, %v1872
        %v2300 = vsel %vm2273, %v2267, %v1874
        %v2301 = vsel %vm2273, %v2268, %v1876
        %v2302 = vsel %vm2273, %v2269, %v1878
        %v2303 = vsel %vm2273, %v2270, %v1880
        %v2304 = vsel %vm2273, %v2271, %v1882
        %v2305 = vsel %vm2273, %v2272, %v1884
        %vm2306 = vcmask 1014784
        %v2307 = vsel %vm2306, %v2274, %v1918
        %v2308 = vsel %vm2306, %v2275, %v1920
        %v2309 = vsel %vm2306, %v2276, %v1922
        %v2310 = vsel %vm2306, %v2277, %v1924
        %v2311 = vsel %vm2306, %v2278, %v1926
        %v2312 = vsel %vm2306, %v2279, %v1928
        %v2313 = vsel %vm2306, %v2280, %v1930
        %v2314 = vsel %vm2306, %v2281, %v1932
        %v2315 = vsel %vm2306, %v2282, %v1934
        %v2316 = vsel %vm2306, %v2283, %v1936
        %v2317 = vsel %vm2306, %v2284, %v1938
        %v2318 = vsel %vm2306, %v2285, %v1940
        %v2319 = vsel %vm2306, %v2286, %v1942
        %v2320 = vsel %vm2306, %v2287, %v1944
        %v2321 = vsel %vm2306, %v2288, %v1946
        %v2322 = vsel %vm2306, %v2289, %v1948
        %v2323 = vsel %vm2306, %v2290, %v1950
        %v2324 = vsel %vm2306, %v2291, %v1952
        %v2325 = vsel %vm2306, %v2292, %v1954
        %v2326 = vsel %vm2306, %v2293, %v1956
        %v2327 = vsel %vm2306, %v2294, %v1958
        %v2328 = vsel %vm2306, %v2295, %v1960
        %v2329 = vsel %vm2306, %v2296, %v1962
        %v2330 = vsel %vm2306, %v2297, %v1964
        %v2331 = vsel %vm2306, %v2298, %v1966
        %v2332 = vsel %vm2306, %v2299, %v1968
        %v2333 = vsel %vm2306, %v2300, %v1970
        %v2334 = vsel %vm2306, %v2301, %v1972
        %v2335 = vsel %vm2306, %v2302, %v1974
        %v2336 = vsel %vm2306, %v2303, %v1976
        %v2337 = vsel %vm2306, %v2304, %v1978
        %v2338 = vsel %vm2306, %v2305, %v1980
        %v2339 = vsel %vm505, %v1918, %v2014
        %v2340 = vsel %vm505, %v1920, %v2016
        %v2341 = vsel %vm505, %v1922, %v2018
        %v2342 = vsel %vm505, %v1924, %v2020
        %v2343 = vsel %vm505, %v1926, %v2022
        %v2344 = vsel %vm505, %v1928, %v2024
        %v2345 = vsel %vm505, %v1930, %v2026
        %v2346 = vsel %vm505, %v1932, %v2028
        %v2347 = vsel %vm505, %v1934, %v2030
        %v2348 = vsel %vm505, %v1936, %v2032
        %v2349 = vsel %vm505, %v1938, %v2034
        %v2350 = vsel %vm505, %v1940, %v2036
        %v2351 = vsel %vm505, %v1942, %v2038
        %v2352 = vsel %vm505, %v1944, %v2040
        %v2353 = vsel %vm505, %v1946, %v2042
        %v2354 = vsel %vm505, %v1948, %v2044
        %v2355 = vsel %vm505, %v1950, %v2046
        %v2356 = vsel %vm505, %v1952, %v2048
        %v2357 = vsel %vm505, %v1954, %v2050
        %v2358 = vsel %vm505, %v1956, %v2052
        %v2359 = vsel %vm505, %v1958, %v2054
        %v2360 = vsel %vm505, %v1960, %v2056
        %v2361 = vsel %vm505, %v1962, %v2058
        %v2362 = vsel %vm505, %v1964, %v2060
        %v2363 = vsel %vm505, %v1966, %v2062
        %v2364 = vsel %vm505, %v1968, %v2064
        %v2365 = vsel %vm505, %v1970, %v2066
        %v2366 = vsel %vm505, %v1972, %v2068
        %v2367 = vsel %vm505, %v1974, %v2070
        %v2368 = vsel %vm505, %v1976, %v2072
        %v2369 = vsel %vm505, %v1978, %v2074
        %v2370 = vsel %vm505, %v1980, %v2076
        %v2371 = vld [vmem:[%s2] sm:$0xff]
        %v2372 = vld [vmem:[%s2 + $0x8] sm:$0xff]
        %v2373 = vld [vmem:[%s2 + $0x10] sm:$0xff]
        %v2374 = vld [vmem:[%s2 + $0x18] sm:$0xff]
        %v2375 = vld [vmem:[%s2 + $0x20] sm:$0xff]
        %v2376 = vld [vmem:[%s2 + $0x28] sm:$0xff]
        %v2377 = vld [vmem:[%s2 + $0x30] sm:$0xff]
        %v2378 = vld [vmem:[%s2 + $0x38] sm:$0xff]
        %v2379 = vld [vmem:[%s2 + $0x40] sm:$0xff]
        %v2380 = vld [vmem:[%s2 + $0x48] sm:$0xff]
        %v2381 = vld [vmem:[%s2 + $0x50] sm:$0xff]
        %v2382 = vld [vmem:[%s2 + $0x58] sm:$0xff]
        %v2383 = vld [vmem:[%s2 + $0x60] sm:$0xff]
        %v2384 = vld [vmem:[%s2 + $0x68] sm:$0xff]
        %v2385 = vld [vmem:[%s2 + $0x70] sm:$0xff]
        %v2386 = vld [vmem:[%s2 + $0x78] sm:$0xff]
        %v2387 = vld [vmem:[%s2 + $0x80] sm:$0xff]
        %v2388 = vld [vmem:[%s2 + $0x88] sm:$0xff]
        %v2389 = vld [vmem:[%s2 + $0x90] sm:$0xff]
        %v2390 = vld [vmem:[%s2 + $0x98] sm:$0xff]
        %v2391 = vld [vmem:[%s2 + $0xa0] sm:$0xff]
        %v2392 = vld [vmem:[%s2 + $0xa8] sm:$0xff]
        %v2393 = vld [vmem:[%s2 + $0xb0] sm:$0xff]
        %v2394 = vld [vmem:[%s2 + $0xb8] sm:$0xff]
        %v2395 = vld [vmem:[%s2 + $0xc0] sm:$0xff]
        %v2396 = vld [vmem:[%s2 + $0xc8] sm:$0xff]
        %v2397 = vld [vmem:[%s2 + $0xd0] sm:$0xff]
        %v2398 = vld [vmem:[%s2 + $0xd8] sm:$0xff]
        %v2399 = vld [vmem:[%s2 + $0xe0] sm:$0xff]
        %v2400 = vld [vmem:[%s2 + $0xe8] sm:$0xff]
        %v2401 = vld [vmem:[%s2 + $0xf0] sm:$0xff]
        %v2402 = vld [vmem:[%s2 + $0xf8] sm:$0xff]
        %v2403 = vld [vmem:[%s2 + $0x100] sm:$0xff]
        %v2404 = vld [vmem:[%s2 + $0x108] sm:$0xff]
        %v2405 = vld [vmem:[%s2 + $0x110] sm:$0xff]
        %v2406 = vld [vmem:[%s2 + $0x118] sm:$0xff]
        %v2407 = vld [vmem:[%s2 + $0x120] sm:$0xff]
        %v2408 = vld [vmem:[%s2 + $0x128] sm:$0xff]
        %v2409 = vld [vmem:[%s2 + $0x130] sm:$0xff]
        %v2410 = vld [vmem:[%s2 + $0x138] sm:$0xff]
        %v2411 = vld [vmem:[%s2 + $0x140] sm:$0xf]
        %v2412 = vld [vmem:[%s3] sm:$0x1]
        %v2414 = vlaneseq
        %v2415 = vshrl.u32 %v2414, 7
        %v2416 = vsub.s32 0, %v2415
        %v2417 = vrot.slane %v2412, %v2416
        %vm2419 = vcmask 556032
        %v2421 = vsel %vm2419, %v2339, 0
        %v2424 = vsel %vm2419, %v2340, 0
        %v2427 = vsel %vm2419, %v2341, 0
        %v2430 = vsel %vm2419, %v2342, 0
        %v2433 = vsel %vm2419, %v2343, 0
        %v2436 = vsel %vm2419, %v2344, 0
        %v2439 = vsel %vm2419, %v2345, 0
        %v2442 = vsel %vm2419, %v2346, 0
        %v2445 = vsel %vm2419, %v2347, 0
        %v2448 = vsel %vm2419, %v2348, 0
        %v2451 = vsel %vm2419, %v2349, 0
        %v2454 = vsel %vm2419, %v2350, 0
        %v2457 = vsel %vm2419, %v2351, 0
        %v2460 = vsel %vm2419, %v2352, 0
        %v2463 = vsel %vm2419, %v2353, 0
        %v2466 = vsel %vm2419, %v2354, 0
        %v2469 = vsel %vm2419, %v2355, 0
        %v2472 = vsel %vm2419, %v2356, 0
        %v2475 = vsel %vm2419, %v2357, 0
        %v2478 = vsel %vm2419, %v2358, 0
        %v2481 = vsel %vm2419, %v2359, 0
        %v2484 = vsel %vm2419, %v2360, 0
        %v2487 = vsel %vm2419, %v2361, 0
        %v2490 = vsel %vm2419, %v2362, 0
        %v2493 = vsel %vm2419, %v2363, 0
        %v2496 = vsel %vm2419, %v2364, 0
        %v2499 = vsel %vm2419, %v2365, 0
        %v2502 = vsel %vm2419, %v2366, 0
        %v2505 = vsel %vm2419, %v2367, 0
        %v2508 = vsel %vm2419, %v2368, 0
        %v2511 = vsel %vm2419, %v2369, 0
        %v2514 = vsel %vm2419, %v2370, 0
        %vm2516 = vcmask 1043456
        %v2518 = vsel %vm2516, %v2411, 0
        %2520 = vmatprep.subr.mxu0 0.0
        %2521 = vmatpush1.msra.mxu0 %v2371
        %2522 = vmatprep.subr.mxu0 0.0
        %2523 = vmatpush1.msra.mxu0 %v2372
        %2524 = vmatprep.subr.mxu0 0.0
        %2525 = vmatpush1.msra.mxu0 %v2373
        %2526 = vmatprep.subr.mxu0 0.0
        %2527 = vmatpush1.msra.mxu0 %v2374
        %2528 = vmatprep.subr.mxu0 0.0
        %2529 = vmatpush1.msra.mxu0 %v2375
        %2530 = vmatprep.subr.mxu0 0.0
        %2531 = vmatpush1.msra.mxu0 %v2376
        %2532 = vmatprep.subr.mxu0 0.0
        %2533 = vmatpush1.msra.mxu0 %v2377
        %2534 = vmatprep.subr.mxu0 0.0
        %2535 = vmatpush1.msra.mxu0 %v2378
        %2536 = vmatprep.subr.mxu0 0.0
        %2537 = vmatpush1.msra.mxu0 %v2379
        %2538 = vmatprep.subr.mxu0 0.0
        %2539 = vmatpush1.msra.mxu0 %v2380
        %2540 = vmatprep.subr.mxu0 0.0
        %2541 = vmatpush1.msra.mxu0 %v2381
        %2542 = vmatprep.subr.mxu0 0.0
        %2543 = vmatpush1.msra.mxu0 %v2382
        %2544 = vmatprep.subr.mxu0 0.0
        %2545 = vmatpush1.msra.mxu0 %v2383
        %2546 = vmatprep.subr.mxu0 0.0
        %2547 = vmatpush1.msra.mxu0 %v2384
        %2548 = vmatprep.subr.mxu0 0.0
        %2549 = vmatpush1.msra.mxu0 %v2385
        %2550 = vmatprep.subr.mxu0 0.0
        %2551 = vmatpush1.msra.mxu0 %v2386
        %2552 = vmatprep.subr.mxu0 0.0
        %2553 = vmatpush1.msra.mxu0 %v2387
        %2554 = vmatprep.subr.mxu0 0.0
        %2555 = vmatpush1.msra.mxu0 %v2388
        %2556 = vmatprep.subr.mxu0 0.0
        %2557 = vmatpush1.msra.mxu0 %v2389
        %2558 = vmatprep.subr.mxu0 0.0
        %2559 = vmatpush1.msra.mxu0 %v2390
        %2560 = vmatprep.subr.mxu0 0.0
        %2561 = vmatpush1.msra.mxu0 %v2391
        %2562 = vmatprep.subr.mxu0 0.0
        %2563 = vmatpush1.msra.mxu0 %v2392
        %2564 = vmatprep.subr.mxu0 0.0
        %2565 = vmatpush1.msra.mxu0 %v2393
        %2566 = vmatprep.subr.mxu0 0.0
        %2567 = vmatpush1.msra.mxu0 %v2394
        %2568 = vmatprep.subr.mxu0 0.0
        %2569 = vmatpush1.msra.mxu0 %v2395
        %2570 = vmatprep.subr.mxu0 0.0
        %2571 = vmatpush1.msra.mxu0 %v2396
        %2572 = vmatprep.subr.mxu0 0.0
        %2573 = vmatpush1.msra.mxu0 %v2397
        %2574 = vmatprep.subr.mxu0 0.0
        %2575 = vmatpush1.msra.mxu0 %v2398
        %2576 = vmatprep.subr.mxu0 0.0
        %2577 = vmatpush1.msra.mxu0 %v2399
        %2578 = vmatprep.subr.mxu0 0.0
        %2579 = vmatpush1.msra.mxu0 %v2400
        %2580 = vmatprep.subr.mxu0 0.0
        %2581 = vmatpush1.msra.mxu0 %v2401
        %2582 = vmatprep.subr.mxu0 0.0
        %2583 = vmatpush1.msra.mxu0 %v2402
        %2584 = vmatprep.mubr.f32.mxu0 %v2307
        %2585 = vmatmul.mubr.f32.gmra.mrb[0].mxu0 %v2175
        %v2586 = vpop.f32.mrb[0].mxu0
        %v2587 = vadd.f32 %v2417, %v2586
        %v2588 = vpop.f32.mrb[0].mxu0
        %2589 = vmatprep.mubr.f32.mxu0 %v2308
        %2590 = vmatmul.mubr.f32.gmra.mrb[0].mxu0 %v2176
        %v2591 = vpop.f32.mrb[0].mxu0
        %v2592 = vadd.f32 %v2417, %v2591
        %v2593 = vpop.f32.mrb[0].mxu0
        %2594 = vmatprep.mubr.f32.mxu0 %v2309
        %2595 = vmatmul.mubr.f32.gmra.mrb[0].mxu0 %v2177
        %v2596 = vpop.f32.mrb[0].mxu0
        %v2597 = vadd.f32 %v2417, %v2596
        %v2598 = vpop.f32.mrb[0].mxu0
        %2599 = vmatprep.mubr.f32.mxu0 %v2310
        %2600 = vmatmul.mubr.f32.gmra.mrb[0].mxu0 %v2178
        %v2601 = vpop.f32.mrb[0].mxu0
        %v2602 = vadd.f32 %v2417, %v2601
        %v2603 = vpop.f32.mrb[0].mxu0
        %2604 = vmatprep.mubr.f32.mxu0 %v2311
        %2605 = vmatmul.mubr.f32.gmra.mrb[0].mxu0 %v2179
        %v2606 = vpop.f32.mrb[0].mxu0
        %v2607 = vadd.f32 %v2417, %v2606
        %v2608 = vpop.f32.mrb[0].mxu0
        %2609 = vmatprep.mubr.f32.mxu0 %v2312
        %2610 = vmatmul.mubr.f32.gmra.mrb[0].mxu0 %v2180
        %v2611 = vpop.f32.mrb[0].mxu0
        %v2612 = vadd.f32 %v2417, %v2611
        %v2613 = vpop.f32.mrb[0].mxu0
        %2614 = vmatprep.mubr.f32.mxu0 %v2313
        %2615 = vmatmul.mubr.f32.gmra.mrb[0].mxu0 %v2181
        %v2616 = vpop.f32.mrb[0].mxu0
        %v2617 = vadd.f32 %v2417, %v2616
        %v2618 = vpop.f32.mrb[0].mxu0
        %2619 = vmatprep.mubr.f32.mxu0 %v2314
        %2620 = vmatmul.mubr.f32.gmra.mrb[0].mxu0 %v2182
        %v2621 = vpop.f32.mrb[0].mxu0
        %v2622 = vadd.f32 %v2417, %v2621
        %v2623 = vpop.f32.mrb[0].mxu0
        %2624 = vmatprep.mubr.f32.mxu0 %v2315
        %2625 = vmatmul.mubr.f32.gmra.mrb[0].mxu0 %v2183
        %v2626 = vpop.f32.mrb[0].mxu0
        %v2627 = vadd.f32 %v2417, %v2626
        %v2628 = vpop.f32.mrb[0].mxu0
        %2629 = vmatprep.mubr.f32.mxu0 %v2316
        %2630 = vmatmul.mubr.f32.gmra.mrb[0].mxu0 %v2184
        %v2631 = vpop.f32.mrb[0].mxu0
        %v2632 = vadd.f32 %v2417, %v2631
        %v2633 = vpop.f32.mrb[0].mxu0
        %2634 = vmatprep.mubr.f32.mxu0 %v2317
        %2635 = vmatmul.mubr.f32.gmra.mrb[0].mxu0 %v2185
        %v2636 = vpop.f32.mrb[0].mxu0
        %v2637 = vadd.f32 %v2417, %v2636
        %v2638 = vpop.f32.mrb[0].mxu0
        %2639 = vmatprep.mubr.f32.mxu0 %v2318
        %2640 = vmatmul.mubr.f32.gmra.mrb[0].mxu0 %v2186
        %v2641 = vpop.f32.mrb[0].mxu0
        %v2642 = vadd.f32 %v2417, %v2641
        %v2643 = vpop.f32.mrb[0].mxu0
        %2644 = vmatprep.mubr.f32.mxu0 %v2319
        %2645 = vmatmul.mubr.f32.gmra.mrb[0].mxu0 %v2187
        %v2646 = vpop.f32.mrb[0].mxu0
        %v2647 = vadd.f32 %v2417, %v2646
        %v2648 = vpop.f32.mrb[0].mxu0
        %2649 = vmatprep.mubr.f32.mxu0 %v2320
        %2650 = vmatmul.mubr.f32.gmra.mrb[0].mxu0 %v2188
        %v2651 = vpop.f32.mrb[0].mxu0
        %v2652 = vadd.f32 %v2417, %v2651
        %v2653 = vpop.f32.mrb[0].mxu0
        %2654 = vmatprep.mubr.f32.mxu0 %v2321
        %2655 = vmatmul.mubr.f32.gmra.mrb[0].mxu0 %v2189
        %v2656 = vpop.f32.mrb[0].mxu0
        %v2657 = vadd.f32 %v2417, %v2656
        %v2658 = vpop.f32.mrb[0].mxu0
        %2659 = vmatprep.mubr.f32.mxu0 %v2322
        %2660 = vmatmul.mubr.f32.gmra.mrb[0].mxu0 %v2190
        %v2661 = vpop.f32.mrb[0].mxu0
        %v2662 = vadd.f32 %v2417, %v2661
        %v2663 = vpop.f32.mrb[0].mxu0
        %2664 = vmatprep.mubr.f32.mxu0 %v2323
        %2665 = vmatmul.mubr.f32.gmra.mrb[0].mxu0 %v2191
        %v2666 = vpop.f32.mrb[0].mxu0
        %v2667 = vadd.f32 %v2417, %v2666
        %v2668 = vpop.f32.mrb[0].mxu0
        %2669 = vmatprep.mubr.f32.mxu0 %v2324
        %2670 = vmatmul.mubr.f32.gmra.mrb[0].mxu0 %v2192
        %v2671 = vpop.f32.mrb[0].mxu0
        %v2672 = vadd.f32 %v2417, %v2671
        %v2673 = vpop.f32.mrb[0].mxu0
        %2674 = vmatprep.mubr.f32.mxu0 %v2325
        %2675 = vmatmul.mubr.f32.gmra.mrb[0].mxu0 %v2193
        %v2676 = vpop.f32.mrb[0].mxu0
        %v2677 = vadd.f32 %v2417, %v2676
        %v2678 = vpop.f32.mrb[0].mxu0
        %2679 = vmatprep.mubr.f32.mxu0 %v2326
        %2680 = vmatmul.mubr.f32.gmra.mrb[0].mxu0 %v2194
        %v2681 = vpop.f32.mrb[0].mxu0
        %v2682 = vadd.f32 %v2417, %v2681
        %v2683 = vpop.f32.mrb[0].mxu0
        %2684 = vmatprep.mubr.f32.mxu0 %v2327
        %2685 = vmatmul.mubr.f32.gmra.mrb[0].mxu0 %v2195
        %v2686 = vpop.f32.mrb[0].mxu0
        %v2687 = vadd.f32 %v2417, %v2686
        %v2688 = vpop.f32.mrb[0].mxu0
        %2689 = vmatprep.mubr.f32.mxu0 %v2328
        %2690 = vmatmul.mubr.f32.gmra.mrb[0].mxu0 %v2196
        %v2691 = vpop.f32.mrb[0].mxu0
        %v2692 = vadd.f32 %v2417, %v2691
        %v2693 = vpop.f32.mrb[0].mxu0
        %2694 = vmatprep.mubr.f32.mxu0 %v2329
        %2695 = vmatmul.mubr.f32.gmra.mrb[0].mxu0 %v2197
        %v2696 = vpop.f32.mrb[0].mxu0
        %v2697 = vadd.f32 %v2417, %v2696
        %v2698 = vpop.f32.mrb[0].mxu0
        %2699 = vmatprep.mubr.f32.mxu0 %v2330
        %2700 = vmatmul.mubr.f32.gmra.mrb[0].mxu0 %v2198
        %v2701 = vpop.f32.mrb[0].mxu0
        %v2702 = vadd.f32 %v2417, %v2701
        %v2703 = vpop.f32.mrb[0].mxu0
        %2704 = vmatprep.mubr.f32.mxu0 %v2331
        %2705 = vmatmul.mubr.f32.gmra.mrb[0].mxu0 %v2199
        %v2706 = vpop.f32.mrb[0].mxu0
        %v2707 = vadd.f32 %v2417, %v2706
        %v2708 = vpop.f32.mrb[0].mxu0
        %2709 = vmatprep.mubr.f32.mxu0 %v2332
        %2710 = vmatmul.mubr.f32.gmra.mrb[0].mxu0 %v2200
        %v2711 = vpop.f32.mrb[0].mxu0
        %v2712 = vadd.f32 %v2417, %v2711
        %v2713 = vpop.f32.mrb[0].mxu0
        %2714 = vmatprep.mubr.f32.mxu0 %v2333
        %2715 = vmatmul.mubr.f32.gmra.mrb[0].mxu0 %v2201
        %v2716 = vpop.f32.mrb[0].mxu0
        %v2717 = vadd.f32 %v2417, %v2716
        %v2718 = vpop.f32.mrb[0].mxu0
        %2719 = vmatprep.mubr.f32.mxu0 %v2334
        %2720 = vmatmul.mubr.f32.gmra.mrb[0].mxu0 %v2202
        %v2721 = vpop.f32.mrb[0].mxu0
        %v2722 = vadd.f32 %v2417, %v2721
        %v2723 = vpop.f32.mrb[0].mxu0
        %2724 = vmatprep.mubr.f32.mxu0 %v2335
        %2725 = vmatmul.mubr.f32.gmra.mrb[0].mxu0 %v2203
        %v2726 = vpop.f32.mrb[0].mxu0
        %v2727 = vadd.f32 %v2417, %v2726
        %v2728 = vpop.f32.mrb[0].mxu0
        %2729 = vmatprep.mubr.f32.mxu0 %v2336
        %2730 = vmatmul.mubr.f32.gmra.mrb[0].mxu0 %v2204
        %v2731 = vpop.f32.mrb[0].mxu0
        %v2732 = vadd.f32 %v2417, %v2731
        %v2733 = vpop.f32.mrb[0].mxu0
        %2734 = vmatprep.mubr.f32.mxu0 %v2337
        %2735 = vmatmul.mubr.f32.gmra.mrb[0].mxu0 %v2205
        %v2736 = vpop.f32.mrb[0].mxu0
        %v2737 = vadd.f32 %v2417, %v2736
        %v2738 = vpop.f32.mrb[0].mxu0
        %2739 = vmatprep.mubr.f32.mxu0 %v2338
        %2740 = vmatmul.mubr.f32.gmra.mrb[0].mxu0 %v2206
        %v2741 = vpop.f32.mrb[0].mxu0
        %v2742 = vadd.f32 %v2417, %v2741
        %v2743 = vpop.f32.mrb[0].mxu0
        %2744 = vdwg.mxu0
        %2745 = vmatprep.subr.mxu0 0.0
        %2746 = vmatpush1.msra.mxu0 %v2403
        %2747 = vmatprep.subr.mxu0 0.0
        %2748 = vmatpush1.msra.mxu0 %v2404
        %2749 = vmatprep.subr.mxu0 0.0
        %2750 = vmatpush1.msra.mxu0 %v2405
        %2751 = vmatprep.subr.mxu0 0.0
        %2752 = vmatpush1.msra.mxu0 %v2406
        %2753 = vmatprep.subr.mxu0 0.0
        %2754 = vmatpush1.msra.mxu0 %v2407
        %2755 = vmatprep.subr.mxu0 0.0
        %2756 = vmatpush1.msra.mxu0 %v2408
        %2757 = vmatprep.subr.mxu0 0.0
        %2758 = vmatpush1.msra.mxu0 %v2409
        %2759 = vmatprep.subr.mxu0 0.0
        %2760 = vmatpush1.msra.mxu0 %v2410
        %2761 = vmatprep.subr.mxu0 0.0
        %2762 = vmatpush1.msra.mxu0 %v2518
        %2763 = vmatprep.subr.mxu0 0.0
        %2764 = vmatpush1.msra.mxu0 0.0
        %2765 = vmatprep.subr.mxu0 0.0
        %2766 = vmatpush1.msra.mxu0 0.0
        %2767 = vmatprep.subr.mxu0 0.0
        %2768 = vmatpush1.msra.mxu0 0.0
        %2769 = vmatprep.subr.mxu0 0.0
        %2770 = vmatpush1.msra.mxu0 0.0
        %2771 = vmatprep.subr.mxu0 0.0
        %2772 = vmatpush1.msra.mxu0 0.0
        %2773 = vmatprep.subr.mxu0 0.0
        %2774 = vmatpush1.msra.mxu0 0.0
        %2775 = vmatprep.subr.mxu0 0.0
        %2776 = vmatpush1.msra.mxu0 0.0
        %2777 = vmatprep.subr.mxu0 0.0
        %2778 = vmatpush1.msra.mxu0 0.0
        %2779 = vmatprep.subr.mxu0 0.0
        %2780 = vmatpush1.msra.mxu0 0.0
        %2781 = vmatprep.subr.mxu0 0.0
        %2782 = vmatpush1.msra.mxu0 0.0
        %2783 = vmatprep.subr.mxu0 0.0
        %2784 = vmatpush1.msra.mxu0 0.0
        %2785 = vmatprep.subr.mxu0 0.0
        %2786 = vmatpush1.msra.mxu0 0.0
        %2787 = vmatprep.subr.mxu0 0.0
        %2788 = vmatpush1.msra.mxu0 0.0
        %2789 = vmatprep.subr.mxu0 0.0
        %2790 = vmatpush1.msra.mxu0 0.0
        %2791 = vmatprep.subr.mxu0 0.0
        %2792 = vmatpush1.msra.mxu0 0.0
        %2793 = vmatprep.subr.mxu0 0.0
        %2794 = vmatpush1.msra.mxu0 0.0
        %2795 = vmatprep.subr.mxu0 0.0
        %2796 = vmatpush1.msra.mxu0 0.0
        %2797 = vmatprep.subr.mxu0 0.0
        %2798 = vmatpush1.msra.mxu0 0.0
        %2799 = vmatprep.subr.mxu0 0.0
        %2800 = vmatpush1.msra.mxu0 0.0
        %2801 = vmatprep.subr.mxu0 0.0
        %2802 = vmatpush1.msra.mxu0 0.0
        %2803 = vmatprep.subr.mxu0 0.0
        %2804 = vmatpush1.msra.mxu0 0.0
        %2805 = vmatprep.subr.mxu0 0.0
        %2806 = vmatpush1.msra.mxu0 0.0
        %2807 = vmatprep.subr.mxu0 0.0
        %2808 = vmatpush1.msra.mxu0 0.0
        %2809 = vmatprep.mubr.f32.mxu0 0.0
        %2810 = vmatmul.mubr.f32.gmra.mrb[0].mxu0 %v2421
        %v2811 = vpop.f32.mrb[0].mxu0
        %v2812 = vadd.f32 %v2587, %v2811
        %v2813 = vpop.f32.mrb[0].mxu0
        %2814 = vmatprep.mubr.f32.mxu0 0.0
        %2815 = vmatmul.mubr.f32.gmra.mrb[0].mxu0 %v2424
        %v2816 = vpop.f32.mrb[0].mxu0
        %v2817 = vadd.f32 %v2592, %v2816
        %v2818 = vpop.f32.mrb[0].mxu0
        %2819 = vmatprep.mubr.f32.mxu0 0.0
        %2820 = vmatmul.mubr.f32.gmra.mrb[0].mxu0 %v2427
        %v2821 = vpop.f32.mrb[0].mxu0
        %v2822 = vadd.f32 %v2597, %v2821
        %v2823 = vpop.f32.mrb[0].mxu0
        %2824 = vmatprep.mubr.f32.mxu0 0.0
        %2825 = vmatmul.mubr.f32.gmra.mrb[0].mxu0 %v2430
        %v2826 = vpop.f32.mrb[0].mxu0
        %v2827 = vadd.f32 %v2602, %v2826
        %v2828 = vpop.f32.mrb[0].mxu0
        %2829 = vmatprep.mubr.f32.mxu0 0.0
        %2830 = vmatmul.mubr.f32.gmra.mrb[0].mxu0 %v2433
        %v2831 = vpop.f32.mrb[0].mxu0
        %v2832 = vadd.f32 %v2607, %v2831
        %v2833 = vpop.f32.mrb[0].mxu0
        %2834 = vmatprep.mubr.f32.mxu0 0.0
        %2835 = vmatmul.mubr.f32.gmra.mrb[0].mxu0 %v2436
        %v2836 = vpop.f32.mrb[0].mxu0
        %v2837 = vadd.f32 %v2612, %v2836
        %v2838 = vpop.f32.mrb[0].mxu0
        %2839 = vmatprep.mubr.f32.mxu0 0.0
        %2840 = vmatmul.mubr.f32.gmra.mrb[0].mxu0 %v2439
        %v2841 = vpop.f32.mrb[0].mxu0
        %v2842 = vadd.f32 %v2617, %v2841
        %v2843 = vpop.f32.mrb[0].mxu0
        %2844 = vmatprep.mubr.f32.mxu0 0.0
        %2845 = vmatmul.mubr.f32.gmra.mrb[0].mxu0 %v2442
        %v2846 = vpop.f32.mrb[0].mxu0
        %v2847 = vadd.f32 %v2622, %v2846
        %v2848 = vpop.f32.mrb[0].mxu0
        %2849 = vmatprep.mubr.f32.mxu0 0.0
        %2850 = vmatmul.mubr.f32.gmra.mrb[0].mxu0 %v2445
        %v2851 = vpop.f32.mrb[0].mxu0
        %v2852 = vadd.f32 %v2627, %v2851
        %v2853 = vpop.f32.mrb[0].mxu0
        %2854 = vmatprep.mubr.f32.mxu0 0.0
        %2855 = vmatmul.mubr.f32.gmra.mrb[0].mxu0 %v2448
        %v2856 = vpop.f32.mrb[0].mxu0
        %v2857 = vadd.f32 %v2632, %v2856
        %v2858 = vpop.f32.mrb[0].mxu0
        %2859 = vmatprep.mubr.f32.mxu0 0.0
        %2860 = vmatmul.mubr.f32.gmra.mrb[0].mxu0 %v2451
        %v2861 = vpop.f32.mrb[0].mxu0
        %v2862 = vadd.f32 %v2637, %v2861
        %v2863 = vpop.f32.mrb[0].mxu0
        %2864 = vmatprep.mubr.f32.mxu0 0.0
        %2865 = vmatmul.mubr.f32.gmra.mrb[0].mxu0 %v2454
        %v2866 = vpop.f32.mrb[0].mxu0
        %v2867 = vadd.f32 %v2642, %v2866
        %v2868 = vpop.f32.mrb[0].mxu0
        %2869 = vmatprep.mubr.f32.mxu0 0.0
        %2870 = vmatmul.mubr.f32.gmra.mrb[0].mxu0 %v2457
        %v2871 = vpop.f32.mrb[0].mxu0
        %v2872 = vadd.f32 %v2647, %v2871
        %v2873 = vpop.f32.mrb[0].mxu0
        %2874 = vmatprep.mubr.f32.mxu0 0.0
        %2875 = vmatmul.mubr.f32.gmra.mrb[0].mxu0 %v2460
        %v2876 = vpop.f32.mrb[0].mxu0
        %v2877 = vadd.f32 %v2652, %v2876
        %v2878 = vpop.f32.mrb[0].mxu0
        %2879 = vmatprep.mubr.f32.mxu0 0.0
        %2880 = vmatmul.mubr.f32.gmra.mrb[0].mxu0 %v2463
        %v2881 = vpop.f32.mrb[0].mxu0
        %v2882 = vadd.f32 %v2657, %v2881
        %v2883 = vpop.f32.mrb[0].mxu0
        %2884 = vmatprep.mubr.f32.mxu0 0.0
        %2885 = vmatmul.mubr.f32.gmra.mrb[0].mxu0 %v2466
        %v2886 = vpop.f32.mrb[0].mxu0
        %v2887 = vadd.f32 %v2662, %v2886
        %v2888 = vpop.f32.mrb[0].mxu0
        %2889 = vmatprep.mubr.f32.mxu0 0.0
        %2890 = vmatmul.mubr.f32.gmra.mrb[0].mxu0 %v2469
        %v2891 = vpop.f32.mrb[0].mxu0
        %v2892 = vadd.f32 %v2667, %v2891
        %v2893 = vpop.f32.mrb[0].mxu0
        %2894 = vmatprep.mubr.f32.mxu0 0.0
        %2895 = vmatmul.mubr.f32.gmra.mrb[0].mxu0 %v2472
        %v2896 = vpop.f32.mrb[0].mxu0
        %v2897 = vadd.f32 %v2672, %v2896
        %v2898 = vpop.f32.mrb[0].mxu0
        %2899 = vmatprep.mubr.f32.mxu0 0.0
        %2900 = vmatmul.mubr.f32.gmra.mrb[0].mxu0 %v2475
        %v2901 = vpop.f32.mrb[0].mxu0
        %v2902 = vadd.f32 %v2677, %v2901
        %v2903 = vpop.f32.mrb[0].mxu0
        %2904 = vmatprep.mubr.f32.mxu0 0.0
        %2905 = vmatmul.mubr.f32.gmra.mrb[0].mxu0 %v2478
        %v2906 = vpop.f32.mrb[0].mxu0
        %v2907 = vadd.f32 %v2682, %v2906
        %v2908 = vpop.f32.mrb[0].mxu0
        %2909 = vmatprep.mubr.f32.mxu0 0.0
        %2910 = vmatmul.mubr.f32.gmra.mrb[0].mxu0 %v2481
        %v2911 = vpop.f32.mrb[0].mxu0
        %v2912 = vadd.f32 %v2687, %v2911
        %v2913 = vpop.f32.mrb[0].mxu0
        %2914 = vmatprep.mubr.f32.mxu0 0.0
        %2915 = vmatmul.mubr.f32.gmra.mrb[0].mxu0 %v2484
        %v2916 = vpop.f32.mrb[0].mxu0
        %v2917 = vadd.f32 %v2692, %v2916
        %v2918 = vpop.f32.mrb[0].mxu0
        %2919 = vmatprep.mubr.f32.mxu0 0.0
        %2920 = vmatmul.mubr.f32.gmra.mrb[0].mxu0 %v2487
        %v2921 = vpop.f32.mrb[0].mxu0
        %v2922 = vadd.f32 %v2697, %v2921
        %v2923 = vpop.f32.mrb[0].mxu0
        %2924 = vmatprep.mubr.f32.mxu0 0.0
        %2925 = vmatmul.mubr.f32.gmra.mrb[0].mxu0 %v2490
        %v2926 = vpop.f32.mrb[0].mxu0
        %v2927 = vadd.f32 %v2702, %v2926
        %v2928 = vpop.f32.mrb[0].mxu0
        %2929 = vmatprep.mubr.f32.mxu0 0.0
        %2930 = vmatmul.mubr.f32.gmra.mrb[0].mxu0 %v2493
        %v2931 = vpop.f32.mrb[0].mxu0
        %v2932 = vadd.f32 %v2707, %v2931
        %v2933 = vpop.f32.mrb[0].mxu0
        %2934 = vmatprep.mubr.f32.mxu0 0.0
        %2935 = vmatmul.mubr.f32.gmra.mrb[0].mxu0 %v2496
        %v2936 = vpop.f32.mrb[0].mxu0
        %v2937 = vadd.f32 %v2712, %v2936
        %v2938 = vpop.f32.mrb[0].mxu0
        %2939 = vmatprep.mubr.f32.mxu0 0.0
        %2940 = vmatmul.mubr.f32.gmra.mrb[0].mxu0 %v2499
        %v2941 = vpop.f32.mrb[0].mxu0
        %v2942 = vadd.f32 %v2717, %v2941
        %v2943 = vpop.f32.mrb[0].mxu0
        %2944 = vmatprep.mubr.f32.mxu0 0.0
        %2945 = vmatmul.mubr.f32.gmra.mrb[0].mxu0 %v2502
        %v2946 = vpop.f32.mrb[0].mxu0
        %v2947 = vadd.f32 %v2722, %v2946
        %v2948 = vpop.f32.mrb[0].mxu0
        %2949 = vmatprep.mubr.f32.mxu0 0.0
        %2950 = vmatmul.mubr.f32.gmra.mrb[0].mxu0 %v2505
        %v2951 = vpop.f32.mrb[0].mxu0
        %v2952 = vadd.f32 %v2727, %v2951
        %v2953 = vpop.f32.mrb[0].mxu0
        %2954 = vmatprep.mubr.f32.mxu0 0.0
        %2955 = vmatmul.mubr.f32.gmra.mrb[0].mxu0 %v2508
        %v2956 = vpop.f32.mrb[0].mxu0
        %v2957 = vadd.f32 %v2732, %v2956
        %v2958 = vpop.f32.mrb[0].mxu0
        %2959 = vmatprep.mubr.f32.mxu0 0.0
        %2960 = vmatmul.mubr.f32.gmra.mrb[0].mxu0 %v2511
        %v2961 = vpop.f32.mrb[0].mxu0
        %v2962 = vadd.f32 %v2737, %v2961
        %v2963 = vpop.f32.mrb[0].mxu0
        %2964 = vmatprep.mubr.f32.mxu0 0.0
        %2965 = vmatmul.mubr.f32.gmra.mrb[0].mxu0 %v2514
        %v2966 = vpop.f32.mrb[0].mxu0
        %v2967 = vadd.f32 %v2742, %v2966
        %v2968 = vpop.f32.mrb[0].mxu0
        %2969 = vdwg.mxu0
        %v2970 = vxor.u32 %v2812, 2147483648
        %v2971 = vxor.u32 %v2817, 2147483648
        %v2972 = vxor.u32 %v2822, 2147483648
        %v2973 = vxor.u32 %v2827, 2147483648
        %v2974 = vxor.u32 %v2832, 2147483648
        %v2975 = vxor.u32 %v2837, 2147483648
        %v2976 = vxor.u32 %v2842, 2147483648
        %v2977 = vxor.u32 %v2847, 2147483648
        %v2978 = vxor.u32 %v2852, 2147483648
        %v2979 = vxor.u32 %v2857, 2147483648
        %v2980 = vxor.u32 %v2862, 2147483648
        %v2981 = vxor.u32 %v2867, 2147483648
        %v2982 = vxor.u32 %v2872, 2147483648
        %v2983 = vxor.u32 %v2877, 2147483648
        %v2984 = vxor.u32 %v2882, 2147483648
        %v2985 = vxor.u32 %v2887, 2147483648
        %v2986 = vxor.u32 %v2892, 2147483648
        %v2987 = vxor.u32 %v2897, 2147483648
        %v2988 = vxor.u32 %v2902, 2147483648
        %v2989 = vxor.u32 %v2907, 2147483648
        %v2990 = vxor.u32 %v2912, 2147483648
        %v2991 = vxor.u32 %v2917, 2147483648
        %v2992 = vxor.u32 %v2922, 2147483648
        %v2993 = vxor.u32 %v2927, 2147483648
        %v2994 = vxor.u32 %v2932, 2147483648
        %v2995 = vxor.u32 %v2937, 2147483648
        %v2996 = vxor.u32 %v2942, 2147483648
        %v2997 = vxor.u32 %v2947, 2147483648
        %v2998 = vxor.u32 %v2952, 2147483648
        %v2999 = vxor.u32 %v2957, 2147483648
        %v3000 = vxor.u32 %v2962, 2147483648
        %v3001 = vxor.u32 %v2967, 2147483648
        %v3002 = vmul.f32 %v2970, 1.442695
        %v3003 = vpow.pop %v3002
        %v3004 = vmul.f32 %v2971, 1.442695
        %v3005 = vpow.pop %v3004
        %v3006 = vmul.f32 %v2972, 1.442695
        %v3007 = vpow.pop %v3006
        %v3008 = vmul.f32 %v2973, 1.442695
        %v3009 = vpow.pop %v3008
        %v3010 = vmul.f32 %v2974, 1.442695
        %v3011 = vpow.pop %v3010
        %v3012 = vmul.f32 %v2975, 1.442695
        %v3013 = vpow.pop %v3012
        %v3014 = vmul.f32 %v2976, 1.442695
        %v3015 = vpow.pop %v3014
        %v3016 = vmul.f32 %v2977, 1.442695
        %v3017 = vpow.pop %v3016
        %v3018 = vmul.f32 %v2978, 1.442695
        %v3019 = vpow.pop %v3018
        %v3020 = vmul.f32 %v2979, 1.442695
        %v3021 = vpow.pop %v3020
        %v3022 = vmul.f32 %v2980, 1.442695
        %v3023 = vpow.pop %v3022
        %v3024 = vmul.f32 %v2981, 1.442695
        %v3025 = vpow.pop %v3024
        %v3026 = vmul.f32 %v2982, 1.442695
        %v3027 = vpow.pop %v3026
        %v3028 = vmul.f32 %v2983, 1.442695
        %v3029 = vpow.pop %v3028
        %v3030 = vmul.f32 %v2984, 1.442695
        %v3031 = vpow.pop %v3030
        %v3032 = vmul.f32 %v2985, 1.442695
        %v3033 = vpow.pop %v3032
        %v3034 = vmul.f32 %v2986, 1.442695
        %v3035 = vpow.pop %v3034
        %v3036 = vmul.f32 %v2987, 1.442695
        %v3037 = vpow.pop %v3036
        %v3038 = vmul.f32 %v2988, 1.442695
        %v3039 = vpow.pop %v3038
        %v3040 = vmul.f32 %v2989, 1.442695
        %v3041 = vpow.pop %v3040
        %v3042 = vmul.f32 %v2990, 1.442695
        %v3043 = vpow.pop %v3042
        %v3044 = vmul.f32 %v2991, 1.442695
        %v3045 = vpow.pop %v3044
        %v3046 = vmul.f32 %v2992, 1.442695
        %v3047 = vpow.pop %v3046
        %v3048 = vmul.f32 %v2993, 1.442695
        %v3049 = vpow.pop %v3048
        %v3050 = vmul.f32 %v2994, 1.442695
        %v3051 = vpow.pop %v3050
        %v3052 = vmul.f32 %v2995, 1.442695
        %v3053 = vpow.pop %v3052
        %v3054 = vmul.f32 %v2996, 1.442695
        %v3055 = vpow.pop %v3054
        %v3056 = vmul.f32 %v2997, 1.442695
        %v3057 = vpow.pop %v3056
        %v3058 = vmul.f32 %v2998, 1.442695
        %v3059 = vpow.pop %v3058
        %v3060 = vmul.f32 %v2999, 1.442695
        %v3061 = vpow.pop %v3060
        %v3062 = vmul.f32 %v3000, 1.442695
        %v3063 = vpow.pop %v3062
        %v3064 = vmul.f32 %v3001, 1.442695
        %v3065 = vpow.pop %v3064
        %v3066 = vadd.f32 %v3003, 1.0
        %v3067 = vadd.f32 %v3005, 1.0
        %v3068 = vadd.f32 %v3007, 1.0
        %v3069 = vadd.f32 %v3009, 1.0
        %v3070 = vadd.f32 %v3011, 1.0
        %v3071 = vadd.f32 %v3013, 1.0
        %v3072 = vadd.f32 %v3015, 1.0
        %v3073 = vadd.f32 %v3017, 1.0
        %v3074 = vadd.f32 %v3019, 1.0
        %v3075 = vadd.f32 %v3021, 1.0
        %v3076 = vadd.f32 %v3023, 1.0
        %v3077 = vadd.f32 %v3025, 1.0
        %v3078 = vadd.f32 %v3027, 1.0
        %v3079 = vadd.f32 %v3029, 1.0
        %v3080 = vadd.f32 %v3031, 1.0
        %v3081 = vadd.f32 %v3033, 1.0
        %v3082 = vadd.f32 %v3035, 1.0
        %v3083 = vadd.f32 %v3037, 1.0
        %v3084 = vadd.f32 %v3039, 1.0
        %v3085 = vadd.f32 %v3041, 1.0
        %v3086 = vadd.f32 %v3043, 1.0
        %v3087 = vadd.f32 %v3045, 1.0
        %v3088 = vadd.f32 %v3047, 1.0
        %v3089 = vadd.f32 %v3049, 1.0
        %v3090 = vadd.f32 %v3051, 1.0
        %v3091 = vadd.f32 %v3053, 1.0
        %v3092 = vadd.f32 %v3055, 1.0
        %v3093 = vadd.f32 %v3057, 1.0
        %v3094 = vadd.f32 %v3059, 1.0
        %v3095 = vadd.f32 %v3061, 1.0
        %v3096 = vadd.f32 %v3063, 1.0
        %v3097 = vadd.f32 %v3065, 1.0
        %v3098 = vrcp.pop %v3066
        %v3099 = vmul.f32 1.0, %v3098
        %v3100 = vrcp.pop %v3067
        %v3101 = vmul.f32 1.0, %v3100
        %v3102 = vrcp.pop %v3068
        %v3103 = vmul.f32 1.0, %v3102
        %v3104 = vrcp.pop %v3069
        %v3105 = vmul.f32 1.0, %v3104
        %v3106 = vrcp.pop %v3070
        %v3107 = vmul.f32 1.0, %v3106
        %v3108 = vrcp.pop %v3071
        %v3109 = vmul.f32 1.0, %v3108
        %v3110 = vrcp.pop %v3072
        %v3111 = vmul.f32 1.0, %v3110
        %v3112 = vrcp.pop %v3073
        %v3113 = vmul.f32 1.0, %v3112
        %v3114 = vrcp.pop %v3074
        %v3115 = vmul.f32 1.0, %v3114
        %v3116 = vrcp.pop %v3075
        %v3117 = vmul.f32 1.0, %v3116
        %v3118 = vrcp.pop %v3076
        %v3119 = vmul.f32 1.0, %v3118
        %v3120 = vrcp.pop %v3077
        %v3121 = vmul.f32 1.0, %v3120
        %v3122 = vrcp.pop %v3078
        %v3123 = vmul.f32 1.0, %v3122
        %v3124 = vrcp.pop %v3079
        %v3125 = vmul.f32 1.0, %v3124
        %v3126 = vrcp.pop %v3080
        %v3127 = vmul.f32 1.0, %v3126
        %v3128 = vrcp.pop %v3081
        %v3129 = vmul.f32 1.0, %v3128
        %v3130 = vrcp.pop %v3082
        %v3131 = vmul.f32 1.0, %v3130
        %v3132 = vrcp.pop %v3083
        %v3133 = vmul.f32 1.0, %v3132
        %v3134 = vrcp.pop %v3084
        %v3135 = vmul.f32 1.0, %v3134
        %v3136 = vrcp.pop %v3085
        %v3137 = vmul.f32 1.0, %v3136
        %v3138 = vrcp.pop %v3086
        %v3139 = vmul.f32 1.0, %v3138
        %v3140 = vrcp.pop %v3087
        %v3141 = vmul.f32 1.0, %v3140
        %v3142 = vrcp.pop %v3088
        %v3143 = vmul.f32 1.0, %v3142
        %v3144 = vrcp.pop %v3089
        %v3145 = vmul.f32 1.0, %v3144
        %v3146 = vrcp.pop %v3090
        %v3147 = vmul.f32 1.0, %v3146
        %v3148 = vrcp.pop %v3091
        %v3149 = vmul.f32 1.0, %v3148
        %v3150 = vrcp.pop %v3092
        %v3151 = vmul.f32 1.0, %v3150
        %v3152 = vrcp.pop %v3093
        %v3153 = vmul.f32 1.0, %v3152
        %v3154 = vrcp.pop %v3094
        %v3155 = vmul.f32 1.0, %v3154
        %v3156 = vrcp.pop %v3095
        %v3157 = vmul.f32 1.0, %v3156
        %v3158 = vrcp.pop %v3096
        %v3159 = vmul.f32 1.0, %v3158
        %v3160 = vrcp.pop %v3097
        %v3161 = vmul.f32 1.0, %v3160
        %v3162 = vmul.f32 %v3099, %v302
        %v3163 = vmul.f32 %v3101, %v303
        %v3164 = vmul.f32 %v3103, %v304
        %v3165 = vmul.f32 %v3105, %v305
        %v3166 = vmul.f32 %v3107, %v306
        %v3167 = vmul.f32 %v3109, %v307
        %v3168 = vmul.f32 %v3111, %v308
        %v3169 = vmul.f32 %v3113, %v309
        %v3170 = vmul.f32 %v3115, %v310
        %v3171 = vmul.f32 %v3117, %v311
        %v3172 = vmul.f32 %v3119, %v312
        %v3173 = vmul.f32 %v3121, %v313
        %v3174 = vmul.f32 %v3123, %v314
        %v3175 = vmul.f32 %v3125, %v315
        %v3176 = vmul.f32 %v3127, %v316
        %v3177 = vmul.f32 %v3129, %v317
        %v3178 = vmul.f32 %v3131, %v318
        %v3179 = vmul.f32 %v3133, %v319
        %v3180 = vmul.f32 %v3135, %v320
        %v3181 = vmul.f32 %v3137, %v321
        %v3182 = vmul.f32 %v3139, %v322
        %v3183 = vmul.f32 %v3141, %v323
        %v3184 = vmul.f32 %v3143, %v324
        %v3185 = vmul.f32 %v3145, %v325
        %v3186 = vmul.f32 %v3147, %v326
        %v3187 = vmul.f32 %v3149, %v327
        %v3188 = vmul.f32 %v3151, %v328
        %v3189 = vmul.f32 %v3153, %v329
        %v3190 = vmul.f32 %v3155, %v330
        %v3191 = vmul.f32 %v3157, %v331
        %v3192 = vmul.f32 %v3159, %v332
        %v3193 = vmul.f32 %v3161, %v333
        %3194 = vst.msk [vmem:[%s343 + $0x1] sm:$0xff] %vm505, %v3162
        %3195 = vst.msk [vmem:[%s343 + $0x9] sm:$0xff] %vm505, %v3163
        %3196 = vst.msk [vmem:[%s343 + $0x19] sm:$0xff] %vm505, %v3164
        %3197 = vst.msk [vmem:[%s343 + $0x21] sm:$0xff] %vm505, %v3165
        %3198 = vst.msk [vmem:[%s343 + $0x31] sm:$0xff] %vm505, %v3166
        %3199 = vst.msk [vmem:[%s343 + $0x39] sm:$0xff] %vm505, %v3167
        %3200 = vst.msk [vmem:[%s343 + $0x49] sm:$0xff] %vm505, %v3168
        %3201 = vst.msk [vmem:[%s343 + $0x51] sm:$0xff] %vm505, %v3169
        %3202 = vst.msk [vmem:[%s343 + $0x61] sm:$0xff] %vm505, %v3170
        %3203 = vst.msk [vmem:[%s343 + $0x69] sm:$0xff] %vm505, %v3171
        %3204 = vst.msk [vmem:[%s343 + $0x79] sm:$0xff] %vm505, %v3172
        %3205 = vst.msk [vmem:[%s343 + $0x81] sm:$0xff] %vm505, %v3173
        %3206 = vst.msk [vmem:[%s343 + $0x91] sm:$0xff] %vm505, %v3174
        %3207 = vst.msk [vmem:[%s343 + $0x99] sm:$0xff] %vm505, %v3175
        %3208 = vst.msk [vmem:[%s343 + $0xa9] sm:$0xff] %vm505, %v3176
        %3209 = vst.msk [vmem:[%s343 + $0xb1] sm:$0xff] %vm505, %v3177
        %3210 = vst.msk [vmem:[%s343 + $0xc1] sm:$0xff] %vm505, %v3178
        %3211 = vst.msk [vmem:[%s343 + $0xc9] sm:$0xff] %vm505, %v3179
        %3212 = vst.msk [vmem:[%s343 + $0xd9] sm:$0xff] %vm505, %v3180
        %3213 = vst.msk [vmem:[%s343 + $0xe1] sm:$0xff] %vm505, %v3181
        %3214 = vst.msk [vmem:[%s343 + $0xf1] sm:$0xff] %vm505, %v3182
        %3215 = vst.msk [vmem:[%s343 + $0xf9] sm:$0xff] %vm505, %v3183
        %3216 = vst.msk [vmem:[%s343 + $0x109] sm:$0xff] %vm505, %v3184
        %3217 = vst.msk [vmem:[%s343 + $0x111] sm:$0xff] %vm505, %v3185
        %3218 = vst.msk [vmem:[%s343 + $0x121] sm:$0xff] %vm505, %v3186
        %3219 = vst.msk [vmem:[%s343 + $0x129] sm:$0xff] %vm505, %v3187
        %3220 = vst.msk [vmem:[%s343 + $0x139] sm:$0xff] %vm505, %v3188
        %3221 = vst.msk [vmem:[%s343 + $0x141] sm:$0xff] %vm505, %v3189
        %3222 = vst.msk [vmem:[%s343 + $0x151] sm:$0xff] %vm505, %v3190
        %3223 = vst.msk [vmem:[%s343 + $0x159] sm:$0xff] %vm505, %v3191
        %3224 = vst.msk [vmem:[%s343 + $0x169] sm:$0xff] %vm505, %v3192
        %3225 = vst.msk [vmem:[%s343 + $0x171] sm:$0xff] %vm505, %v3193
        %v3226 = vld [vmem:[#allocation2] sm:$0xff]
        %v3227 = vld [vmem:[#allocation2 + $0x8] sm:$0xff]
        %v3228 = vld [vmem:[#allocation2 + $0x10] sm:$0x3]
        %v3229 = vld [vmem:[#allocation2 + $0x18] sm:$0xff]
        %v3230 = vld [vmem:[#allocation2 + $0x20] sm:$0xff]
        %v3231 = vld [vmem:[#allocation2 + $0x28] sm:$0x3]
        %v3232 = vld [vmem:[#allocation2 + $0x30] sm:$0xff]
        %v3233 = vld [vmem:[#allocation2 + $0x38] sm:$0xff]
        %v3234 = vld [vmem:[#allocation2 + $0x40] sm:$0x3]
        %v3235 = vld [vmem:[#allocation2 + $0x48] sm:$0xff]
        %v3236 = vld [vmem:[#allocation2 + $0x50] sm:$0xff]
        %v3237 = vld [vmem:[#allocation2 + $0x58] sm:$0x3]
        %v3238 = vld [vmem:[#allocation2 + $0x60] sm:$0xff]
        %v3239 = vld [vmem:[#allocation2 + $0x68] sm:$0xff]
        %v3240 = vld [vmem:[#allocation2 + $0x70] sm:$0x3]
        %v3241 = vld [vmem:[#allocation2 + $0x78] sm:$0xff]
        %v3242 = vld [vmem:[#allocation2 + $0x80] sm:$0xff]
        %v3243 = vld [vmem:[#allocation2 + $0x88] sm:$0x3]
        %v3244 = vld [vmem:[#allocation2 + $0x90] sm:$0xff]
        %v3245 = vld [vmem:[#allocation2 + $0x98] sm:$0xff]
        %v3246 = vld [vmem:[#allocation2 + $0xa0] sm:$0x3]
        %v3247 = vld [vmem:[#allocation2 + $0xa8] sm:$0xff]
        %v3248 = vld [vmem:[#allocation2 + $0xb0] sm:$0xff]
        %v3249 = vld [vmem:[#allocation2 + $0xb8] sm:$0x3]
        %v3250 = vld [vmem:[#allocation2 + $0xc0] sm:$0xff]
        %v3251 = vld [vmem:[#allocation2 + $0xc8] sm:$0xff]
        %v3252 = vld [vmem:[#allocation2 + $0xd0] sm:$0x3]
        %v3253 = vld [vmem:[#allocation2 + $0xd8] sm:$0xff]
        %v3254 = vld [vmem:[#allocation2 + $0xe0] sm:$0xff]
        %v3255 = vld [vmem:[#allocation2 + $0xe8] sm:$0x3]
        %v3256 = vld [vmem:[#allocation2 + $0xf0] sm:$0xff]
        %v3257 = vld [vmem:[#allocation2 + $0xf8] sm:$0xff]
        %v3258 = vld [vmem:[#allocation2 + $0x100] sm:$0x3]
        %v3259 = vld [vmem:[#allocation2 + $0x108] sm:$0xff]
        %v3260 = vld [vmem:[#allocation2 + $0x110] sm:$0xff]
        %v3261 = vld [vmem:[#allocation2 + $0x118] sm:$0x3]
        %v3262 = vld [vmem:[#allocation2 + $0x120] sm:$0xff]
        %v3263 = vld [vmem:[#allocation2 + $0x128] sm:$0xff]
        %v3264 = vld [vmem:[#allocation2 + $0x130] sm:$0x3]
        %v3265 = vld [vmem:[#allocation2 + $0x138] sm:$0xff]
        %v3266 = vld [vmem:[#allocation2 + $0x140] sm:$0xff]
        %v3267 = vld [vmem:[#allocation2 + $0x148] sm:$0x3]
        %v3268 = vld [vmem:[#allocation2 + $0x150] sm:$0xff]
        %v3269 = vld [vmem:[#allocation2 + $0x158] sm:$0xff]
        %v3270 = vld [vmem:[#allocation2 + $0x160] sm:$0x3]
        %v3271 = vld [vmem:[#allocation2 + $0x168] sm:$0xff]
        %v3272 = vld [vmem:[#allocation2 + $0x170] sm:$0xff]
        %v3273 = vld [vmem:[#allocation2 + $0x178] sm:$0x3]
        %v3322 = vrot.slane %v3226, 1
        %v3323 = vrot.slane %v3227, 1
        %v3324 = vsel %vm666, %v3322, %v3323
        %v3325 = vrot.slane %v3228, 1
        %v3326 = vsel %vm666, %v3323, %v3325
        %v3327 = vrot.slane %v3229, 1
        %v3328 = vrot.slane %v3230, 1
        %v3329 = vsel %vm666, %v3327, %v3328
        %v3330 = vrot.slane %v3231, 1
        %v3331 = vsel %vm666, %v3328, %v3330
        %v3332 = vrot.slane %v3232, 1
        %v3333 = vrot.slane %v3233, 1
        %v3334 = vsel %vm666, %v3332, %v3333
        %v3335 = vrot.slane %v3234, 1
        %v3336 = vsel %vm666, %v3333, %v3335
        %v3337 = vrot.slane %v3235, 1
        %v3338 = vrot.slane %v3236, 1
        %v3339 = vsel %vm666, %v3337, %v3338
        %v3340 = vrot.slane %v3237, 1
        %v3341 = vsel %vm666, %v3338, %v3340
        %v3342 = vrot.slane %v3238, 1
        %v3343 = vrot.slane %v3239, 1
        %v3344 = vsel %vm666, %v3342, %v3343
        %v3345 = vrot.slane %v3240, 1
        %v3346 = vsel %vm666, %v3343, %v3345
        %v3347 = vrot.slane %v3241, 1
        %v3348 = vrot.slane %v3242, 1
        %v3349 = vsel %vm666, %v3347, %v3348
        %v3350 = vrot.slane %v3243, 1
        %v3351 = vsel %vm666, %v3348, %v3350
        %v3352 = vrot.slane %v3244, 1
        %v3353 = vrot.slane %v3245, 1
        %v3354 = vsel %vm666, %v3352, %v3353
        %v3355 = vrot.slane %v3246, 1
        %v3356 = vsel %vm666, %v3353, %v3355
        %v3357 = vrot.slane %v3247, 1
        %v3358 = vrot.slane %v3248, 1
        %v3359 = vsel %vm666, %v3357, %v3358
        %v3360 = vrot.slane %v3249, 1
        %v3361 = vsel %vm666, %v3358, %v3360
        %v3362 = vrot.slane %v3250, 1
        %v3363 = vrot.slane %v3251, 1
        %v3364 = vsel %vm666, %v3362, %v3363
        %v3365 = vrot.slane %v3252, 1
        %v3366 = vsel %vm666, %v3363, %v3365
        %v3367 = vrot.slane %v3253, 1
        %v3368 = vrot.slane %v3254, 1
        %v3369 = vsel %vm666, %v3367, %v3368
        %v3370 = vrot.slane %v3255, 1
        %v3371 = vsel %vm666, %v3368, %v3370
        %v3372 = vrot.slane %v3256, 1
        %v3373 = vrot.slane %v3257, 1
        %v3374 = vsel %vm666, %v3372, %v3373
        %v3375 = vrot.slane %v3258, 1
        %v3376 = vsel %vm666, %v3373, %v3375
        %v3377 = vrot.slane %v3259, 1
        %v3378 = vrot.slane %v3260, 1
        %v3379 = vsel %vm666, %v3377, %v3378
        %v3380 = vrot.slane %v3261, 1
        %v3381 = vsel %vm666, %v3378, %v3380
        %v3382 = vrot.slane %v3262, 1
        %v3383 = vrot.slane %v3263, 1
        %v3384 = vsel %vm666, %v3382, %v3383
        %v3385 = vrot.slane %v3264, 1
        %v3386 = vsel %vm666, %v3383, %v3385
        %v3387 = vrot.slane %v3265, 1
        %v3388 = vrot.slane %v3266, 1
        %v3389 = vsel %vm666, %v3387, %v3388
        %v3390 = vrot.slane %v3267, 1
        %v3391 = vsel %vm666, %v3388, %v3390
        %v3392 = vrot.slane %v3268, 1
        %v3393 = vrot.slane %v3269, 1
        %v3394 = vsel %vm666, %v3392, %v3393
        %v3395 = vrot.slane %v3270, 1
        %v3396 = vsel %vm666, %v3393, %v3395
        %v3397 = vrot.slane %v3271, 1
        %v3398 = vrot.slane %v3272, 1
        %v3399 = vsel %vm666, %v3397, %v3398
        %v3400 = vrot.slane %v3273, 1
        %v3401 = vsel %vm666, %v3398, %v3400
        %v3402 = vrot.slane %v3226, 2
        %v3403 = vrot.slane %v3227, 2
        %v3404 = vsel %vm747, %v3402, %v3403
        %v3405 = vrot.slane %v3228, 2
        %v3406 = vsel %vm747, %v3403, %v3405
        %v3407 = vrot.slane %v3229, 2
        %v3408 = vrot.slane %v3230, 2
        %v3409 = vsel %vm747, %v3407, %v3408
        %v3410 = vrot.slane %v3231, 2
        %v3411 = vsel %vm747, %v3408, %v3410
        %v3412 = vrot.slane %v3232, 2
        %v3413 = vrot.slane %v3233, 2
        %v3414 = vsel %vm747, %v3412, %v3413
        %v3415 = vrot.slane %v3234, 2
        %v3416 = vsel %vm747, %v3413, %v3415
        %v3417 = vrot.slane %v3235, 2
        %v3418 = vrot.slane %v3236, 2
        %v3419 = vsel %vm747, %v3417, %v3418
        %v3420 = vrot.slane %v3237, 2
        %v3421 = vsel %vm747, %v3418, %v3420
        %v3422 = vrot.slane %v3238, 2
        %v3423 = vrot.slane %v3239, 2
        %v3424 = vsel %vm747, %v3422, %v3423
        %v3425 = vrot.slane %v3240, 2
        %v3426 = vsel %vm747, %v3423, %v3425
        %v3427 = vrot.slane %v3241, 2
        %v3428 = vrot.slane %v3242, 2
        %v3429 = vsel %vm747, %v3427, %v3428
        %v3430 = vrot.slane %v3243, 2
        %v3431 = vsel %vm747, %v3428, %v3430
        %v3432 = vrot.slane %v3244, 2
        %v3433 = vrot.slane %v3245, 2
        %v3434 = vsel %vm747, %v3432, %v3433
        %v3435 = vrot.slane %v3246, 2
        %v3436 = vsel %vm747, %v3433, %v3435
        %v3437 = vrot.slane %v3247, 2
        %v3438 = vrot.slane %v3248, 2
        %v3439 = vsel %vm747, %v3437, %v3438
        %v3440 = vrot.slane %v3249, 2
        %v3441 = vsel %vm747, %v3438, %v3440
        %v3442 = vrot.slane %v3250, 2
        %v3443 = vrot.slane %v3251, 2
        %v3444 = vsel %vm747, %v3442, %v3443
        %v3445 = vrot.slane %v3252, 2
        %v3446 = vsel %vm747, %v3443, %v3445
        %v3447 = vrot.slane %v3253, 2
        %v3448 = vrot.slane %v3254, 2
        %v3449 = vsel %vm747, %v3447, %v3448
        %v3450 = vrot.slane %v3255, 2
        %v3451 = vsel %vm747, %v3448, %v3450
        %v3452 = vrot.slane %v3256, 2
        %v3453 = vrot.slane %v3257, 2
        %v3454 = vsel %vm747, %v3452, %v3453
        %v3455 = vrot.slane %v3258, 2
        %v3456 = vsel %vm747, %v3453, %v3455
        %v3457 = vrot.slane %v3259, 2
        %v3458 = vrot.slane %v3260, 2
        %v3459 = vsel %vm747, %v3457, %v3458
        %v3460 = vrot.slane %v3261, 2
        %v3461 = vsel %vm747, %v3458, %v3460
        %v3462 = vrot.slane %v3262, 2
        %v3463 = vrot.slane %v3263, 2
        %v3464 = vsel %vm747, %v3462, %v3463
        %v3465 = vrot.slane %v3264, 2
        %v3466 = vsel %vm747, %v3463, %v3465
        %v3467 = vrot.slane %v3265, 2
        %v3468 = vrot.slane %v3266, 2
        %v3469 = vsel %vm747, %v3467, %v3468
        %v3470 = vrot.slane %v3267, 2
        %v3471 = vsel %vm747, %v3468, %v3470
        %v3472 = vrot.slane %v3268, 2
        %v3473 = vrot.slane %v3269, 2
        %v3474 = vsel %vm747, %v3472, %v3473
        %v3475 = vrot.slane %v3270, 2
        %v3476 = vsel %vm747, %v3473, %v3475
        %v3477 = vrot.slane %v3271, 2
        %v3478 = vrot.slane %v3272, 2
        %v3479 = vsel %vm747, %v3477, %v3478
        %v3480 = vrot.slane %v3273, 2
        %v3481 = vsel %vm747, %v3478, %v3480
        %v3482 = vld [vmem:[%s343] sm:$0xff]
        %v3483 = vld [vmem:[%s343 + $0x8] sm:$0xff]
        %v3484 = vld [vmem:[%s343 + $0x10] sm:$0x3]
        %v3485 = vld [vmem:[%s343 + $0x18] sm:$0xff]
        %v3486 = vld [vmem:[%s343 + $0x20] sm:$0xff]
        %v3487 = vld [vmem:[%s343 + $0x28] sm:$0x3]
        %v3488 = vld [vmem:[%s343 + $0x30] sm:$0xff]
        %v3489 = vld [vmem:[%s343 + $0x38] sm:$0xff]
        %v3490 = vld [vmem:[%s343 + $0x40] sm:$0x3]
        %v3491 = vld [vmem:[%s343 + $0x48] sm:$0xff]
        %v3492 = vld [vmem:[%s343 + $0x50] sm:$0xff]
        %v3493 = vld [vmem:[%s343 + $0x58] sm:$0x3]
        %v3494 = vld [vmem:[%s343 + $0x60] sm:$0xff]
        %v3495 = vld [vmem:[%s343 + $0x68] sm:$0xff]
        %v3496 = vld [vmem:[%s343 + $0x70] sm:$0x3]
        %v3497 = vld [vmem:[%s343 + $0x78] sm:$0xff]
        %v3498 = vld [vmem:[%s343 + $0x80] sm:$0xff]
        %v3499 = vld [vmem:[%s343 + $0x88] sm:$0x3]
        %v3500 = vld [vmem:[%s343 + $0x90] sm:$0xff]
        %v3501 = vld [vmem:[%s343 + $0x98] sm:$0xff]
        %v3502 = vld [vmem:[%s343 + $0xa0] sm:$0x3]
        %v3503 = vld [vmem:[%s343 + $0xa8] sm:$0xff]
        %v3504 = vld [vmem:[%s343 + $0xb0] sm:$0xff]
        %v3505 = vld [vmem:[%s343 + $0xb8] sm:$0x3]
        %v3506 = vld [vmem:[%s343 + $0xc0] sm:$0xff]
        %v3507 = vld [vmem:[%s343 + $0xc8] sm:$0xff]
        %v3508 = vld [vmem:[%s343 + $0xd0] sm:$0x3]
        %v3509 = vld [vmem:[%s343 + $0xd8] sm:$0xff]
        %v3510 = vld [vmem:[%s343 + $0xe0] sm:$0xff]
        %v3511 = vld [vmem:[%s343 + $0xe8] sm:$0x3]
        %v3512 = vld [vmem:[%s343 + $0xf0] sm:$0xff]
        %v3513 = vld [vmem:[%s343 + $0xf8] sm:$0xff]
        %v3514 = vld [vmem:[%s343 + $0x100] sm:$0x3]
        %v3515 = vld [vmem:[%s343 + $0x108] sm:$0xff]
        %v3516 = vld [vmem:[%s343 + $0x110] sm:$0xff]
        %v3517 = vld [vmem:[%s343 + $0x118] sm:$0x3]
        %v3518 = vld [vmem:[%s343 + $0x120] sm:$0xff]
        %v3519 = vld [vmem:[%s343 + $0x128] sm:$0xff]
        %v3520 = vld [vmem:[%s343 + $0x130] sm:$0x3]
        %v3521 = vld [vmem:[%s343 + $0x138] sm:$0xff]
        %v3522 = vld [vmem:[%s343 + $0x140] sm:$0xff]
        %v3523 = vld [vmem:[%s343 + $0x148] sm:$0x3]
        %v3524 = vld [vmem:[%s343 + $0x150] sm:$0xff]
        %v3525 = vld [vmem:[%s343 + $0x158] sm:$0xff]
        %v3526 = vld [vmem:[%s343 + $0x160] sm:$0x3]
        %v3527 = vld [vmem:[%s343 + $0x168] sm:$0xff]
        %v3528 = vld [vmem:[%s343 + $0x170] sm:$0xff]
        %v3529 = vld [vmem:[%s343 + $0x178] sm:$0x3]
        %v3578 = vrot.slane %v3482, 1
        %v3579 = vrot.slane %v3483, 1
        %v3580 = vsel %vm666, %v3578, %v3579
        %v3581 = vrot.slane %v3484, 1
        %v3582 = vsel %vm666, %v3579, %v3581
        %v3583 = vrot.slane %v3485, 1
        %v3584 = vrot.slane %v3486, 1
        %v3585 = vsel %vm666, %v3583, %v3584
        %v3586 = vrot.slane %v3487, 1
        %v3587 = vsel %vm666, %v3584, %v3586
        %v3588 = vrot.slane %v3488, 1
        %v3589 = vrot.slane %v3489, 1
        %v3590 = vsel %vm666, %v3588, %v3589
        %v3591 = vrot.slane %v3490, 1
        %v3592 = vsel %vm666, %v3589, %v3591
        %v3593 = vrot.slane %v3491, 1
        %v3594 = vrot.slane %v3492, 1
        %v3595 = vsel %vm666, %v3593, %v3594
        %v3596 = vrot.slane %v3493, 1
        %v3597 = vsel %vm666, %v3594, %v3596
        %v3598 = vrot.slane %v3494, 1
        %v3599 = vrot.slane %v3495, 1
        %v3600 = vsel %vm666, %v3598, %v3599
        %v3601 = vrot.slane %v3496, 1
        %v3602 = vsel %vm666, %v3599, %v3601
        %v3603 = vrot.slane %v3497, 1
        %v3604 = vrot.slane %v3498, 1
        %v3605 = vsel %vm666, %v3603, %v3604
        %v3606 = vrot.slane %v3499, 1
        %v3607 = vsel %vm666, %v3604, %v3606
        %v3608 = vrot.slane %v3500, 1
        %v3609 = vrot.slane %v3501, 1
        %v3610 = vsel %vm666, %v3608, %v3609
        %v3611 = vrot.slane %v3502, 1
        %v3612 = vsel %vm666, %v3609, %v3611
        %v3613 = vrot.slane %v3503, 1
        %v3614 = vrot.slane %v3504, 1
        %v3615 = vsel %vm666, %v3613, %v3614
        %v3616 = vrot.slane %v3505, 1
        %v3617 = vsel %vm666, %v3614, %v3616
        %v3618 = vrot.slane %v3506, 1
        %v3619 = vrot.slane %v3507, 1
        %v3620 = vsel %vm666, %v3618, %v3619
        %v3621 = vrot.slane %v3508, 1
        %v3622 = vsel %vm666, %v3619, %v3621
        %v3623 = vrot.slane %v3509, 1
        %v3624 = vrot.slane %v3510, 1
        %v3625 = vsel %vm666, %v3623, %v3624
        %v3626 = vrot.slane %v3511, 1
        %v3627 = vsel %vm666, %v3624, %v3626
        %v3628 = vrot.slane %v3512, 1
        %v3629 = vrot.slane %v3513, 1
        %v3630 = vsel %vm666, %v3628, %v3629
        %v3631 = vrot.slane %v3514, 1
        %v3632 = vsel %vm666, %v3629, %v3631
        %v3633 = vrot.slane %v3515, 1
        %v3634 = vrot.slane %v3516, 1
        %v3635 = vsel %vm666, %v3633, %v3634
        %v3636 = vrot.slane %v3517, 1
        %v3637 = vsel %vm666, %v3634, %v3636
        %v3638 = vrot.slane %v3518, 1
        %v3639 = vrot.slane %v3519, 1
        %v3640 = vsel %vm666, %v3638, %v3639
        %v3641 = vrot.slane %v3520, 1
        %v3642 = vsel %vm666, %v3639, %v3641
        %v3643 = vrot.slane %v3521, 1
        %v3644 = vrot.slane %v3522, 1
        %v3645 = vsel %vm666, %v3643, %v3644
        %v3646 = vrot.slane %v3523, 1
        %v3647 = vsel %vm666, %v3644, %v3646
        %v3648 = vrot.slane %v3524, 1
        %v3649 = vrot.slane %v3525, 1
        %v3650 = vsel %vm666, %v3648, %v3649
        %v3651 = vrot.slane %v3526, 1
        %v3652 = vsel %vm666, %v3649, %v3651
        %v3653 = vrot.slane %v3527, 1
        %v3654 = vrot.slane %v3528, 1
        %v3655 = vsel %vm666, %v3653, %v3654
        %v3656 = vrot.slane %v3529, 1
        %v3657 = vsel %vm666, %v3654, %v3656
        %v3658 = vrot.slane %v3482, 2
        %v3659 = vrot.slane %v3483, 2
        %v3660 = vsel %vm747, %v3658, %v3659
        %v3661 = vrot.slane %v3484, 2
        %v3662 = vsel %vm747, %v3659, %v3661
        %v3663 = vrot.slane %v3485, 2
        %v3664 = vrot.slane %v3486, 2
        %v3665 = vsel %vm747, %v3663, %v3664
        %v3666 = vrot.slane %v3487, 2
        %v3667 = vsel %vm747, %v3664, %v3666
        %v3668 = vrot.slane %v3488, 2
        %v3669 = vrot.slane %v3489, 2
        %v3670 = vsel %vm747, %v3668, %v3669
        %v3671 = vrot.slane %v3490, 2
        %v3672 = vsel %vm747, %v3669, %v3671
        %v3673 = vrot.slane %v3491, 2
        %v3674 = vrot.slane %v3492, 2
        %v3675 = vsel %vm747, %v3673, %v3674
        %v3676 = vrot.slane %v3493, 2
        %v3677 = vsel %vm747, %v3674, %v3676
        %v3678 = vrot.slane %v3494, 2
        %v3679 = vrot.slane %v3495, 2
        %v3680 = vsel %vm747, %v3678, %v3679
        %v3681 = vrot.slane %v3496, 2
        %v3682 = vsel %vm747, %v3679, %v3681
        %v3683 = vrot.slane %v3497, 2
        %v3684 = vrot.slane %v3498, 2
        %v3685 = vsel %vm747, %v3683, %v3684
        %v3686 = vrot.slane %v3499, 2
        %v3687 = vsel %vm747, %v3684, %v3686
        %v3688 = vrot.slane %v3500, 2
        %v3689 = vrot.slane %v3501, 2
        %v3690 = vsel %vm747, %v3688, %v3689
        %v3691 = vrot.slane %v3502, 2
        %v3692 = vsel %vm747, %v3689, %v3691
        %v3693 = vrot.slane %v3503, 2
        %v3694 = vrot.slane %v3504, 2
        %v3695 = vsel %vm747, %v3693, %v3694
        %v3696 = vrot.slane %v3505, 2
        %v3697 = vsel %vm747, %v3694, %v3696
        %v3698 = vrot.slane %v3506, 2
        %v3699 = vrot.slane %v3507, 2
        %v3700 = vsel %vm747, %v3698, %v3699
        %v3701 = vrot.slane %v3508, 2
        %v3702 = vsel %vm747, %v3699, %v3701
        %v3703 = vrot.slane %v3509, 2
        %v3704 = vrot.slane %v3510, 2
        %v3705 = vsel %vm747, %v3703, %v3704
        %v3706 = vrot.slane %v3511, 2
        %v3707 = vsel %vm747, %v3704, %v3706
        %v3708 = vrot.slane %v3512, 2
        %v3709 = vrot.slane %v3513, 2
        %v3710 = vsel %vm747, %v3708, %v3709
        %v3711 = vrot.slane %v3514, 2
        %v3712 = vsel %vm747, %v3709, %v3711
        %v3713 = vrot.slane %v3515, 2
        %v3714 = vrot.slane %v3516, 2
        %v3715 = vsel %vm747, %v3713, %v3714
        %v3716 = vrot.slane %v3517, 2
        %v3717 = vsel %vm747, %v3714, %v3716
        %v3718 = vrot.slane %v3518, 2
        %v3719 = vrot.slane %v3519, 2
        %v3720 = vsel %vm747, %v3718, %v3719
        %v3721 = vrot.slane %v3520, 2
        %v3722 = vsel %vm747, %v3719, %v3721
        %v3723 = vrot.slane %v3521, 2
        %v3724 = vrot.slane %v3522, 2
        %v3725 = vsel %vm747, %v3723, %v3724
        %v3726 = vrot.slane %v3523, 2
        %v3727 = vsel %vm747, %v3724, %v3726
        %v3728 = vrot.slane %v3524, 2
        %v3729 = vrot.slane %v3525, 2
        %v3730 = vsel %vm747, %v3728, %v3729
        %v3731 = vrot.slane %v3526, 2
        %v3732 = vsel %vm747, %v3729, %v3731
        %v3733 = vrot.slane %v3527, 2
        %v3734 = vrot.slane %v3528, 2
        %v3735 = vsel %vm747, %v3733, %v3734
        %v3736 = vrot.slane %v3529, 2
        %v3737 = vsel %vm747, %v3734, %v3736
        %v3738 = vld [vmem:[%s1084] sm:$0xff]
        %v3739 = vld [vmem:[%s1084 + $0x8] sm:$0xff]
        %v3740 = vld [vmem:[%s1084 + $0x10] sm:$0x3]
        %v3741 = vld [vmem:[%s1084 + $0x18] sm:$0xff]
        %v3742 = vld [vmem:[%s1084 + $0x20] sm:$0xff]
        %v3743 = vld [vmem:[%s1084 + $0x28] sm:$0x3]
        %v3744 = vld [vmem:[%s1084 + $0x30] sm:$0xff]
        %v3745 = vld [vmem:[%s1084 + $0x38] sm:$0xff]
        %v3746 = vld [vmem:[%s1084 + $0x40] sm:$0x3]
        %v3747 = vld [vmem:[%s1084 + $0x48] sm:$0xff]
        %v3748 = vld [vmem:[%s1084 + $0x50] sm:$0xff]
        %v3749 = vld [vmem:[%s1084 + $0x58] sm:$0x3]
        %v3750 = vld [vmem:[%s1084 + $0x60] sm:$0xff]
        %v3751 = vld [vmem:[%s1084 + $0x68] sm:$0xff]
        %v3752 = vld [vmem:[%s1084 + $0x70] sm:$0x3]
        %v3753 = vld [vmem:[%s1084 + $0x78] sm:$0xff]
        %v3754 = vld [vmem:[%s1084 + $0x80] sm:$0xff]
        %v3755 = vld [vmem:[%s1084 + $0x88] sm:$0x3]
        %v3756 = vld [vmem:[%s1084 + $0x90] sm:$0xff]
        %v3757 = vld [vmem:[%s1084 + $0x98] sm:$0xff]
        %v3758 = vld [vmem:[%s1084 + $0xa0] sm:$0x3]
        %v3759 = vld [vmem:[%s1084 + $0xa8] sm:$0xff]
        %v3760 = vld [vmem:[%s1084 + $0xb0] sm:$0xff]
        %v3761 = vld [vmem:[%s1084 + $0xb8] sm:$0x3]
        %v3762 = vld [vmem:[%s1084 + $0xc0] sm:$0xff]
        %v3763 = vld [vmem:[%s1084 + $0xc8] sm:$0xff]
        %v3764 = vld [vmem:[%s1084 + $0xd0] sm:$0x3]
        %v3765 = vld [vmem:[%s1084 + $0xd8] sm:$0xff]
        %v3766 = vld [vmem:[%s1084 + $0xe0] sm:$0xff]
        %v3767 = vld [vmem:[%s1084 + $0xe8] sm:$0x3]
        %v3768 = vld [vmem:[%s1084 + $0xf0] sm:$0xff]
        %v3769 = vld [vmem:[%s1084 + $0xf8] sm:$0xff]
        %v3770 = vld [vmem:[%s1084 + $0x100] sm:$0x3]
        %v3771 = vld [vmem:[%s1084 + $0x108] sm:$0xff]
        %v3772 = vld [vmem:[%s1084 + $0x110] sm:$0xff]
        %v3773 = vld [vmem:[%s1084 + $0x118] sm:$0x3]
        %v3774 = vld [vmem:[%s1084 + $0x120] sm:$0xff]
        %v3775 = vld [vmem:[%s1084 + $0x128] sm:$0xff]
        %v3776 = vld [vmem:[%s1084 + $0x130] sm:$0x3]
        %v3777 = vld [vmem:[%s1084 + $0x138] sm:$0xff]
        %v3778 = vld [vmem:[%s1084 + $0x140] sm:$0xff]
        %v3779 = vld [vmem:[%s1084 + $0x148] sm:$0x3]
        %v3780 = vld [vmem:[%s1084 + $0x150] sm:$0xff]
        %v3781 = vld [vmem:[%s1084 + $0x158] sm:$0xff]
        %v3782 = vld [vmem:[%s1084 + $0x160] sm:$0x3]
        %v3783 = vld [vmem:[%s1084 + $0x168] sm:$0xff]
        %v3784 = vld [vmem:[%s1084 + $0x170] sm:$0xff]
        %v3785 = vld [vmem:[%s1084 + $0x178] sm:$0x3]
        %v3834 = vrot.slane %v3738, 1
        %v3835 = vrot.slane %v3739, 1
        %v3836 = vsel %vm666, %v3834, %v3835
        %v3837 = vrot.slane %v3740, 1
        %v3838 = vsel %vm666, %v3835, %v3837
        %v3839 = vrot.slane %v3741, 1
        %v3840 = vrot.slane %v3742, 1
        %v3841 = vsel %vm666, %v3839, %v3840
        %v3842 = vrot.slane %v3743, 1
        %v3843 = vsel %vm666, %v3840, %v3842
        %v3844 = vrot.slane %v3744, 1
        %v3845 = vrot.slane %v3745, 1
        %v3846 = vsel %vm666, %v3844, %v3845
        %v3847 = vrot.slane %v3746, 1
        %v3848 = vsel %vm666, %v3845, %v3847
        %v3849 = vrot.slane %v3747, 1
        %v3850 = vrot.slane %v3748, 1
        %v3851 = vsel %vm666, %v3849, %v3850
        %v3852 = vrot.slane %v3749, 1
        %v3853 = vsel %vm666, %v3850, %v3852
        %v3854 = vrot.slane %v3750, 1
        %v3855 = vrot.slane %v3751, 1
        %v3856 = vsel %vm666, %v3854, %v3855
        %v3857 = vrot.slane %v3752, 1
        %v3858 = vsel %vm666, %v3855, %v3857
        %v3859 = vrot.slane %v3753, 1
        %v3860 = vrot.slane %v3754, 1
        %v3861 = vsel %vm666, %v3859, %v3860
        %v3862 = vrot.slane %v3755, 1
        %v3863 = vsel %vm666, %v3860, %v3862
        %v3864 = vrot.slane %v3756, 1
        %v3865 = vrot.slane %v3757, 1
        %v3866 = vsel %vm666, %v3864, %v3865
        %v3867 = vrot.slane %v3758, 1
        %v3868 = vsel %vm666, %v3865, %v3867
        %v3869 = vrot.slane %v3759, 1
        %v3870 = vrot.slane %v3760, 1
        %v3871 = vsel %vm666, %v3869, %v3870
        %v3872 = vrot.slane %v3761, 1
        %v3873 = vsel %vm666, %v3870, %v3872
        %v3874 = vrot.slane %v3762, 1
        %v3875 = vrot.slane %v3763, 1
        %v3876 = vsel %vm666, %v3874, %v3875
        %v3877 = vrot.slane %v3764, 1
        %v3878 = vsel %vm666, %v3875, %v3877
        %v3879 = vrot.slane %v3765, 1
        %v3880 = vrot.slane %v3766, 1
        %v3881 = vsel %vm666, %v3879, %v3880
        %v3882 = vrot.slane %v3767, 1
        %v3883 = vsel %vm666, %v3880, %v3882
        %v3884 = vrot.slane %v3768, 1
        %v3885 = vrot.slane %v3769, 1
        %v3886 = vsel %vm666, %v3884, %v3885
        %v3887 = vrot.slane %v3770, 1
        %v3888 = vsel %vm666, %v3885, %v3887
        %v3889 = vrot.slane %v3771, 1
        %v3890 = vrot.slane %v3772, 1
        %v3891 = vsel %vm666, %v3889, %v3890
        %v3892 = vrot.slane %v3773, 1
        %v3893 = vsel %vm666, %v3890, %v3892
        %v3894 = vrot.slane %v3774, 1
        %v3895 = vrot.slane %v3775, 1
        %v3896 = vsel %vm666, %v3894, %v3895
        %v3897 = vrot.slane %v3776, 1
        %v3898 = vsel %vm666, %v3895, %v3897
        %v3899 = vrot.slane %v3777, 1
        %v3900 = vrot.slane %v3778, 1
        %v3901 = vsel %vm666, %v3899, %v3900
        %v3902 = vrot.slane %v3779, 1
        %v3903 = vsel %vm666, %v3900, %v3902
        %v3904 = vrot.slane %v3780, 1
        %v3905 = vrot.slane %v3781, 1
        %v3906 = vsel %vm666, %v3904, %v3905
        %v3907 = vrot.slane %v3782, 1
        %v3908 = vsel %vm666, %v3905, %v3907
        %v3909 = vrot.slane %v3783, 1
        %v3910 = vrot.slane %v3784, 1
        %v3911 = vsel %vm666, %v3909, %v3910
        %v3912 = vrot.slane %v3785, 1
        %v3913 = vsel %vm666, %v3910, %v3912
        %v3914 = vrot.slane %v3738, 2
        %v3915 = vrot.slane %v3739, 2
        %v3916 = vsel %vm747, %v3914, %v3915
        %v3917 = vrot.slane %v3740, 2
        %v3918 = vsel %vm747, %v3915, %v3917
        %v3919 = vrot.slane %v3741, 2
        %v3920 = vrot.slane %v3742, 2
        %v3921 = vsel %vm747, %v3919, %v3920
        %v3922 = vrot.slane %v3743, 2
        %v3923 = vsel %vm747, %v3920, %v3922
        %v3924 = vrot.slane %v3744, 2
        %v3925 = vrot.slane %v3745, 2
        %v3926 = vsel %vm747, %v3924, %v3925
        %v3927 = vrot.slane %v3746, 2
        %v3928 = vsel %vm747, %v3925, %v3927
        %v3929 = vrot.slane %v3747, 2
        %v3930 = vrot.slane %v3748, 2
        %v3931 = vsel %vm747, %v3929, %v3930
        %v3932 = vrot.slane %v3749, 2
        %v3933 = vsel %vm747, %v3930, %v3932
        %v3934 = vrot.slane %v3750, 2
        %v3935 = vrot.slane %v3751, 2
        %v3936 = vsel %vm747, %v3934, %v3935
        %v3937 = vrot.slane %v3752, 2
        %v3938 = vsel %vm747, %v3935, %v3937
        %v3939 = vrot.slane %v3753, 2
        %v3940 = vrot.slane %v3754, 2
        %v3941 = vsel %vm747, %v3939, %v3940
        %v3942 = vrot.slane %v3755, 2
        %v3943 = vsel %vm747, %v3940, %v3942
        %v3944 = vrot.slane %v3756, 2
        %v3945 = vrot.slane %v3757, 2
        %v3946 = vsel %vm747, %v3944, %v3945
        %v3947 = vrot.slane %v3758, 2
        %v3948 = vsel %vm747, %v3945, %v3947
        %v3949 = vrot.slane %v3759, 2
        %v3950 = vrot.slane %v3760, 2
        %v3951 = vsel %vm747, %v3949, %v3950
        %v3952 = vrot.slane %v3761, 2
        %v3953 = vsel %vm747, %v3950, %v3952
        %v3954 = vrot.slane %v3762, 2
        %v3955 = vrot.slane %v3763, 2
        %v3956 = vsel %vm747, %v3954, %v3955
        %v3957 = vrot.slane %v3764, 2
        %v3958 = vsel %vm747, %v3955, %v3957
        %v3959 = vrot.slane %v3765, 2
        %v3960 = vrot.slane %v3766, 2
        %v3961 = vsel %vm747, %v3959, %v3960
        %v3962 = vrot.slane %v3767, 2
        %v3963 = vsel %vm747, %v3960, %v3962
        %v3964 = vrot.slane %v3768, 2
        %v3965 = vrot.slane %v3769, 2
        %v3966 = vsel %vm747, %v3964, %v3965
        %v3967 = vrot.slane %v3770, 2
        %v3968 = vsel %vm747, %v3965, %v3967
        %v3969 = vrot.slane %v3771, 2
        %v3970 = vrot.slane %v3772, 2
        %v3971 = vsel %vm747, %v3969, %v3970
        %v3972 = vrot.slane %v3773, 2
        %v3973 = vsel %vm747, %v3970, %v3972
        %v3974 = vrot.slane %v3774, 2
        %v3975 = vrot.slane %v3775, 2
        %v3976 = vsel %vm747, %v3974, %v3975
        %v3977 = vrot.slane %v3776, 2
        %v3978 = vsel %vm747, %v3975, %v3977
        %v3979 = vrot.slane %v3777, 2
        %v3980 = vrot.slane %v3778, 2
        %v3981 = vsel %vm747, %v3979, %v3980
        %v3982 = vrot.slane %v3779, 2
        %v3983 = vsel %vm747, %v3980, %v3982
        %v3984 = vrot.slane %v3780, 2
        %v3985 = vrot.slane %v3781, 2
        %v3986 = vsel %vm747, %v3984, %v3985
        %v3987 = vrot.slane %v3782, 2
        %v3988 = vsel %vm747, %v3985, %v3987
        %v3989 = vrot.slane %v3783, 2
        %v3990 = vrot.slane %v3784, 2
        %v3991 = vsel %vm747, %v3989, %v3990
        %v3992 = vrot.slane %v3785, 2
        %v3993 = vsel %vm747, %v3990, %v3992
        %3994 = vrot.lane.b32.xlu0 %v3324, 36
        %v3995 = vpop.permute.xlu0 %3994
        %3996 = vrot.lane.b32.xlu0 %v3326, 36
        %v3997 = vpop.permute.xlu0 %3996
        %3998 = vrot.lane.b32.xlu0 %v3329, 36
        %v3999 = vpop.permute.xlu0 %3998
        %4000 = vrot.lane.b32.xlu0 %v3331, 36
        %v4001 = vpop.permute.xlu0 %4000
        %4002 = vrot.lane.b32.xlu0 %v3334, 36
        %v4003 = vpop.permute.xlu0 %4002
        %4004 = vrot.lane.b32.xlu0 %v3336, 36
        %v4005 = vpop.permute.xlu0 %4004
        %4006 = vrot.lane.b32.xlu0 %v3339, 36
        %v4007 = vpop.permute.xlu0 %4006
        %4008 = vrot.lane.b32.xlu0 %v3341, 36
        %v4009 = vpop.permute.xlu0 %4008
        %4010 = vrot.lane.b32.xlu0 %v3344, 36
        %v4011 = vpop.permute.xlu0 %4010
        %4012 = vrot.lane.b32.xlu0 %v3346, 36
        %v4013 = vpop.permute.xlu0 %4012
        %4014 = vrot.lane.b32.xlu0 %v3349, 36
        %v4015 = vpop.permute.xlu0 %4014
        %4016 = vrot.lane.b32.xlu0 %v3351, 36
        %v4017 = vpop.permute.xlu0 %4016
        %4018 = vrot.lane.b32.xlu0 %v3354, 36
        %v4019 = vpop.permute.xlu0 %4018
        %4020 = vrot.lane.b32.xlu0 %v3356, 36
        %v4021 = vpop.permute.xlu0 %4020
        %4022 = vrot.lane.b32.xlu0 %v3359, 36
        %v4023 = vpop.permute.xlu0 %4022
        %4024 = vrot.lane.b32.xlu0 %v3361, 36
        %v4025 = vpop.permute.xlu0 %4024
        %4026 = vrot.lane.b32.xlu0 %v3364, 36
        %v4027 = vpop.permute.xlu0 %4026
        %4028 = vrot.lane.b32.xlu0 %v3366, 36
        %v4029 = vpop.permute.xlu0 %4028
        %4030 = vrot.lane.b32.xlu0 %v3369, 36
        %v4031 = vpop.permute.xlu0 %4030
        %4032 = vrot.lane.b32.xlu0 %v3371, 36
        %v4033 = vpop.permute.xlu0 %4032
        %4034 = vrot.lane.b32.xlu0 %v3374, 36
        %v4035 = vpop.permute.xlu0 %4034
        %4036 = vrot.lane.b32.xlu0 %v3376, 36
        %v4037 = vpop.permute.xlu0 %4036
        %4038 = vrot.lane.b32.xlu0 %v3379, 36
        %v4039 = vpop.permute.xlu0 %4038
        %4040 = vrot.lane.b32.xlu0 %v3381, 36
        %v4041 = vpop.permute.xlu0 %4040
        %4042 = vrot.lane.b32.xlu0 %v3384, 36
        %v4043 = vpop.permute.xlu0 %4042
        %4044 = vrot.lane.b32.xlu0 %v3386, 36
        %v4045 = vpop.permute.xlu0 %4044
        %4046 = vrot.lane.b32.xlu0 %v3389, 36
        %v4047 = vpop.permute.xlu0 %4046
        %4048 = vrot.lane.b32.xlu0 %v3391, 36
        %v4049 = vpop.permute.xlu0 %4048
        %4050 = vrot.lane.b32.xlu0 %v3394, 36
        %v4051 = vpop.permute.xlu0 %4050
        %4052 = vrot.lane.b32.xlu0 %v3396, 36
        %v4053 = vpop.permute.xlu0 %4052
        %4054 = vrot.lane.b32.xlu0 %v3399, 36
        %v4055 = vpop.permute.xlu0 %4054
        %4056 = vrot.lane.b32.xlu0 %v3401, 36
        %v4057 = vpop.permute.xlu0 %4056
        %4090 = vrot.lane.b32.xlu0 %v3404, 72
        %v4091 = vpop.permute.xlu0 %4090
        %4092 = vrot.lane.b32.xlu0 %v3406, 72
        %v4093 = vpop.permute.xlu0 %4092
        %4094 = vrot.lane.b32.xlu0 %v3409, 72
        %v4095 = vpop.permute.xlu0 %4094
        %4096 = vrot.lane.b32.xlu0 %v3411, 72
        %v4097 = vpop.permute.xlu0 %4096
        %4098 = vrot.lane.b32.xlu0 %v3414, 72
        %v4099 = vpop.permute.xlu0 %4098
        %4100 = vrot.lane.b32.xlu0 %v3416, 72
        %v4101 = vpop.permute.xlu0 %4100
        %4102 = vrot.lane.b32.xlu0 %v3419, 72
        %v4103 = vpop.permute.xlu0 %4102
        %4104 = vrot.lane.b32.xlu0 %v3421, 72
        %v4105 = vpop.permute.xlu0 %4104
        %4106 = vrot.lane.b32.xlu0 %v3424, 72
        %v4107 = vpop.permute.xlu0 %4106
        %4108 = vrot.lane.b32.xlu0 %v3426, 72
        %v4109 = vpop.permute.xlu0 %4108
        %4110 = vrot.lane.b32.xlu0 %v3429, 72
        %v4111 = vpop.permute.xlu0 %4110
        %4112 = vrot.lane.b32.xlu0 %v3431, 72
        %v4113 = vpop.permute.xlu0 %4112
        %4114 = vrot.lane.b32.xlu0 %v3434, 72
        %v4115 = vpop.permute.xlu0 %4114
        %4116 = vrot.lane.b32.xlu0 %v3436, 72
        %v4117 = vpop.permute.xlu0 %4116
        %4118 = vrot.lane.b32.xlu0 %v3439, 72
        %v4119 = vpop.permute.xlu0 %4118
        %4120 = vrot.lane.b32.xlu0 %v3441, 72
        %v4121 = vpop.permute.xlu0 %4120
        %4122 = vrot.lane.b32.xlu0 %v3444, 72
        %v4123 = vpop.permute.xlu0 %4122
        %4124 = vrot.lane.b32.xlu0 %v3446, 72
        %v4125 = vpop.permute.xlu0 %4124
        %4126 = vrot.lane.b32.xlu0 %v3449, 72
        %v4127 = vpop.permute.xlu0 %4126
        %4128 = vrot.lane.b32.xlu0 %v3451, 72
        %v4129 = vpop.permute.xlu0 %4128
        %4130 = vrot.lane.b32.xlu0 %v3454, 72
        %v4131 = vpop.permute.xlu0 %4130
        %4132 = vrot.lane.b32.xlu0 %v3456, 72
        %v4133 = vpop.permute.xlu0 %4132
        %4134 = vrot.lane.b32.xlu0 %v3459, 72
        %v4135 = vpop.permute.xlu0 %4134
        %4136 = vrot.lane.b32.xlu0 %v3461, 72
        %v4137 = vpop.permute.xlu0 %4136
        %4138 = vrot.lane.b32.xlu0 %v3464, 72
        %v4139 = vpop.permute.xlu0 %4138
        %4140 = vrot.lane.b32.xlu0 %v3466, 72
        %v4141 = vpop.permute.xlu0 %4140
        %4142 = vrot.lane.b32.xlu0 %v3469, 72
        %v4143 = vpop.permute.xlu0 %4142
        %4144 = vrot.lane.b32.xlu0 %v3471, 72
        %v4145 = vpop.permute.xlu0 %4144
        %4146 = vrot.lane.b32.xlu0 %v3474, 72
        %v4147 = vpop.permute.xlu0 %4146
        %4148 = vrot.lane.b32.xlu0 %v3476, 72
        %v4149 = vpop.permute.xlu0 %4148
        %4150 = vrot.lane.b32.xlu0 %v3479, 72
        %v4151 = vpop.permute.xlu0 %4150
        %4152 = vrot.lane.b32.xlu0 %v3481, 72
        %v4153 = vpop.permute.xlu0 %4152
        %4186 = vrot.lane.b32.xlu0 %v3482, 108
        %v4187 = vpop.permute.xlu0 %4186
        %4188 = vrot.lane.b32.xlu0 %v3483, 108
        %v4189 = vpop.permute.xlu0 %4188
        %4190 = vrot.lane.b32.xlu0 %v3485, 108
        %v4191 = vpop.permute.xlu0 %4190
        %4192 = vrot.lane.b32.xlu0 %v3486, 108
        %v4193 = vpop.permute.xlu0 %4192
        %4194 = vrot.lane.b32.xlu0 %v3488, 108
        %v4195 = vpop.permute.xlu0 %4194
        %4196 = vrot.lane.b32.xlu0 %v3489, 108
        %v4197 = vpop.permute.xlu0 %4196
        %4198 = vrot.lane.b32.xlu0 %v3491, 108
        %v4199 = vpop.permute.xlu0 %4198
        %4200 = vrot.lane.b32.xlu0 %v3492, 108
        %v4201 = vpop.permute.xlu0 %4200
        %4202 = vrot.lane.b32.xlu0 %v3494, 108
        %v4203 = vpop.permute.xlu0 %4202
        %4204 = vrot.lane.b32.xlu0 %v3495, 108
        %v4205 = vpop.permute.xlu0 %4204
        %4206 = vrot.lane.b32.xlu0 %v3497, 108
        %v4207 = vpop.permute.xlu0 %4206
        %4208 = vrot.lane.b32.xlu0 %v3498, 108
        %v4209 = vpop.permute.xlu0 %4208
        %4210 = vrot.lane.b32.xlu0 %v3500, 108
        %v4211 = vpop.permute.xlu0 %4210
        %4212 = vrot.lane.b32.xlu0 %v3501, 108
        %v4213 = vpop.permute.xlu0 %4212
        %4214 = vrot.lane.b32.xlu0 %v3503, 108
        %v4215 = vpop.permute.xlu0 %4214
        %4216 = vrot.lane.b32.xlu0 %v3504, 108
        %v4217 = vpop.permute.xlu0 %4216
        %4218 = vrot.lane.b32.xlu0 %v3506, 108
        %v4219 = vpop.permute.xlu0 %4218
        %4220 = vrot.lane.b32.xlu0 %v3507, 108
        %v4221 = vpop.permute.xlu0 %4220
        %4222 = vrot.lane.b32.xlu0 %v3509, 108
        %v4223 = vpop.permute.xlu0 %4222
        %4224 = vrot.lane.b32.xlu0 %v3510, 108
        %v4225 = vpop.permute.xlu0 %4224
        %4226 = vrot.lane.b32.xlu0 %v3512, 108
        %v4227 = vpop.permute.xlu0 %4226
        %4228 = vrot.lane.b32.xlu0 %v3513, 108
        %v4229 = vpop.permute.xlu0 %4228
        %4230 = vrot.lane.b32.xlu0 %v3515, 108
        %v4231 = vpop.permute.xlu0 %4230
        %4232 = vrot.lane.b32.xlu0 %v3516, 108
        %v4233 = vpop.permute.xlu0 %4232
        %4234 = vrot.lane.b32.xlu0 %v3518, 108
        %v4235 = vpop.permute.xlu0 %4234
        %4236 = vrot.lane.b32.xlu0 %v3519, 108
        %v4237 = vpop.permute.xlu0 %4236
        %4238 = vrot.lane.b32.xlu0 %v3521, 108
        %v4239 = vpop.permute.xlu0 %4238
        %4240 = vrot.lane.b32.xlu0 %v3522, 108
        %v4241 = vpop.permute.xlu0 %4240
        %4242 = vrot.lane.b32.xlu0 %v3524, 108
        %v4243 = vpop.permute.xlu0 %4242
        %4244 = vrot.lane.b32.xlu0 %v3525, 108
        %v4245 = vpop.permute.xlu0 %4244
        %4246 = vrot.lane.b32.xlu0 %v3527, 108
        %v4247 = vpop.permute.xlu0 %4246
        %4248 = vrot.lane.b32.xlu0 %v3528, 108
        %v4249 = vpop.permute.xlu0 %4248
        %4282 = vrot.lane.b32.xlu0 %v3580, 16
        %v4283 = vpop.permute.xlu0 %4282
        %4284 = vrot.lane.b32.xlu0 %v3582, 16
        %v4285 = vpop.permute.xlu0 %4284
        %4286 = vrot.lane.b32.xlu0 %v3585, 16
        %v4287 = vpop.permute.xlu0 %4286
        %4288 = vrot.lane.b32.xlu0 %v3587, 16
        %v4289 = vpop.permute.xlu0 %4288
        %4290 = vrot.lane.b32.xlu0 %v3590, 16
        %v4291 = vpop.permute.xlu0 %4290
        %4292 = vrot.lane.b32.xlu0 %v3592, 16
        %v4293 = vpop.permute.xlu0 %4292
        %4294 = vrot.lane.b32.xlu0 %v3595, 16
        %v4295 = vpop.permute.xlu0 %4294
        %4296 = vrot.lane.b32.xlu0 %v3597, 16
        %v4297 = vpop.permute.xlu0 %4296
        %4298 = vrot.lane.b32.xlu0 %v3600, 16
        %v4299 = vpop.permute.xlu0 %4298
        %4300 = vrot.lane.b32.xlu0 %v3602, 16
        %v4301 = vpop.permute.xlu0 %4300
        %4302 = vrot.lane.b32.xlu0 %v3605, 16
        %v4303 = vpop.permute.xlu0 %4302
        %4304 = vrot.lane.b32.xlu0 %v3607, 16
        %v4305 = vpop.permute.xlu0 %4304
        %4306 = vrot.lane.b32.xlu0 %v3610, 16
        %v4307 = vpop.permute.xlu0 %4306
        %4308 = vrot.lane.b32.xlu0 %v3612, 16
        %v4309 = vpop.permute.xlu0 %4308
        %4310 = vrot.lane.b32.xlu0 %v3615, 16
        %v4311 = vpop.permute.xlu0 %4310
        %4312 = vrot.lane.b32.xlu0 %v3617, 16
        %v4313 = vpop.permute.xlu0 %4312
        %4314 = vrot.lane.b32.xlu0 %v3620, 16
        %v4315 = vpop.permute.xlu0 %4314
        %4316 = vrot.lane.b32.xlu0 %v3622, 16
        %v4317 = vpop.permute.xlu0 %4316
        %4318 = vrot.lane.b32.xlu0 %v3625, 16
        %v4319 = vpop.permute.xlu0 %4318
        %4320 = vrot.lane.b32.xlu0 %v3627, 16
        %v4321 = vpop.permute.xlu0 %4320
        %4322 = vrot.lane.b32.xlu0 %v3630, 16
        %v4323 = vpop.permute.xlu0 %4322
        %4324 = vrot.lane.b32.xlu0 %v3632, 16
        %v4325 = vpop.permute.xlu0 %4324
        %4326 = vrot.lane.b32.xlu0 %v3635, 16
        %v4327 = vpop.permute.xlu0 %4326
        %4328 = vrot.lane.b32.xlu0 %v3637, 16
        %v4329 = vpop.permute.xlu0 %4328
        %4330 = vrot.lane.b32.xlu0 %v3640, 16
        %v4331 = vpop.permute.xlu0 %4330
        %4332 = vrot.lane.b32.xlu0 %v3642, 16
        %v4333 = vpop.permute.xlu0 %4332
        %4334 = vrot.lane.b32.xlu0 %v3645, 16
        %v4335 = vpop.permute.xlu0 %4334
        %4336 = vrot.lane.b32.xlu0 %v3647, 16
        %v4337 = vpop.permute.xlu0 %4336
        %4338 = vrot.lane.b32.xlu0 %v3650, 16
        %v4339 = vpop.permute.xlu0 %4338
        %4340 = vrot.lane.b32.xlu0 %v3652, 16
        %v4341 = vpop.permute.xlu0 %4340
        %4342 = vrot.lane.b32.xlu0 %v3655, 16
        %v4343 = vpop.permute.xlu0 %4342
        %4344 = vrot.lane.b32.xlu0 %v3657, 16
        %v4345 = vpop.permute.xlu0 %4344
        %4378 = vrot.lane.b32.xlu0 %v3660, 52
        %v4379 = vpop.permute.xlu0 %4378
        %4380 = vrot.lane.b32.xlu0 %v3662, 52
        %v4381 = vpop.permute.xlu0 %4380
        %4382 = vrot.lane.b32.xlu0 %v3665, 52
        %v4383 = vpop.permute.xlu0 %4382
        %4384 = vrot.lane.b32.xlu0 %v3667, 52
        %v4385 = vpop.permute.xlu0 %4384
        %4386 = vrot.lane.b32.xlu0 %v3670, 52
        %v4387 = vpop.permute.xlu0 %4386
        %4388 = vrot.lane.b32.xlu0 %v3672, 52
        %v4389 = vpop.permute.xlu0 %4388
        %4390 = vrot.lane.b32.xlu0 %v3675, 52
        %v4391 = vpop.permute.xlu0 %4390
        %4392 = vrot.lane.b32.xlu0 %v3677, 52
        %v4393 = vpop.permute.xlu0 %4392
        %4394 = vrot.lane.b32.xlu0 %v3680, 52
        %v4395 = vpop.permute.xlu0 %4394
        %4396 = vrot.lane.b32.xlu0 %v3682, 52
        %v4397 = vpop.permute.xlu0 %4396
        %4398 = vrot.lane.b32.xlu0 %v3685, 52
        %v4399 = vpop.permute.xlu0 %4398
        %4400 = vrot.lane.b32.xlu0 %v3687, 52
        %v4401 = vpop.permute.xlu0 %4400
        %4402 = vrot.lane.b32.xlu0 %v3690, 52
        %v4403 = vpop.permute.xlu0 %4402
        %4404 = vrot.lane.b32.xlu0 %v3692, 52
        %v4405 = vpop.permute.xlu0 %4404
        %4406 = vrot.lane.b32.xlu0 %v3695, 52
        %v4407 = vpop.permute.xlu0 %4406
        %4408 = vrot.lane.b32.xlu0 %v3697, 52
        %v4409 = vpop.permute.xlu0 %4408
        %4410 = vrot.lane.b32.xlu0 %v3700, 52
        %v4411 = vpop.permute.xlu0 %4410
        %4412 = vrot.lane.b32.xlu0 %v3702, 52
        %v4413 = vpop.permute.xlu0 %4412
        %4414 = vrot.lane.b32.xlu0 %v3705, 52
        %v4415 = vpop.permute.xlu0 %4414
        %4416 = vrot.lane.b32.xlu0 %v3707, 52
        %v4417 = vpop.permute.xlu0 %4416
        %4418 = vrot.lane.b32.xlu0 %v3710, 52
        %v4419 = vpop.permute.xlu0 %4418
        %4420 = vrot.lane.b32.xlu0 %v3712, 52
        %v4421 = vpop.permute.xlu0 %4420
        %4422 = vrot.lane.b32.xlu0 %v3715, 52
        %v4423 = vpop.permute.xlu0 %4422
        %4424 = vrot.lane.b32.xlu0 %v3717, 52
        %v4425 = vpop.permute.xlu0 %4424
        %4426 = vrot.lane.b32.xlu0 %v3720, 52
        %v4427 = vpop.permute.xlu0 %4426
        %4428 = vrot.lane.b32.xlu0 %v3722, 52
        %v4429 = vpop.permute.xlu0 %4428
        %4430 = vrot.lane.b32.xlu0 %v3725, 52
        %v4431 = vpop.permute.xlu0 %4430
        %4432 = vrot.lane.b32.xlu0 %v3727, 52
        %v4433 = vpop.permute.xlu0 %4432
        %4434 = vrot.lane.b32.xlu0 %v3730, 52
        %v4435 = vpop.permute.xlu0 %4434
        %4436 = vrot.lane.b32.xlu0 %v3732, 52
        %v4437 = vpop.permute.xlu0 %4436
        %4438 = vrot.lane.b32.xlu0 %v3735, 52
        %v4439 = vpop.permute.xlu0 %4438
        %4440 = vrot.lane.b32.xlu0 %v3737, 52
        %v4441 = vpop.permute.xlu0 %4440
        %4474 = vrot.lane.b32.xlu0 %v3738, 88
        %v4475 = vpop.permute.xlu0 %4474
        %4476 = vrot.lane.b32.xlu0 %v3739, 88
        %v4477 = vpop.permute.xlu0 %4476
        %4478 = vrot.lane.b32.xlu0 %v3741, 88
        %v4479 = vpop.permute.xlu0 %4478
        %4480 = vrot.lane.b32.xlu0 %v3742, 88
        %v4481 = vpop.permute.xlu0 %4480
        %4482 = vrot.lane.b32.xlu0 %v3744, 88
        %v4483 = vpop.permute.xlu0 %4482
        %4484 = vrot.lane.b32.xlu0 %v3745, 88
        %v4485 = vpop.permute.xlu0 %4484
        %4486 = vrot.lane.b32.xlu0 %v3747, 88
        %v4487 = vpop.permute.xlu0 %4486
        %4488 = vrot.lane.b32.xlu0 %v3748, 88
        %v4489 = vpop.permute.xlu0 %4488
        %4490 = vrot.lane.b32.xlu0 %v3750, 88
        %v4491 = vpop.permute.xlu0 %4490
        %4492 = vrot.lane.b32.xlu0 %v3751, 88
        %v4493 = vpop.permute.xlu0 %4492
        %4494 = vrot.lane.b32.xlu0 %v3753, 88
        %v4495 = vpop.permute.xlu0 %4494
        %4496 = vrot.lane.b32.xlu0 %v3754, 88
        %v4497 = vpop.permute.xlu0 %4496
        %4498 = vrot.lane.b32.xlu0 %v3756, 88
        %v4499 = vpop.permute.xlu0 %4498
        %4500 = vrot.lane.b32.xlu0 %v3757, 88
        %v4501 = vpop.permute.xlu0 %4500
        %4502 = vrot.lane.b32.xlu0 %v3759, 88
        %v4503 = vpop.permute.xlu0 %4502
        %4504 = vrot.lane.b32.xlu0 %v3760, 88
        %v4505 = vpop.permute.xlu0 %4504
        %4506 = vrot.lane.b32.xlu0 %v3762, 88
        %v4507 = vpop.permute.xlu0 %4506
        %4508 = vrot.lane.b32.xlu0 %v3763, 88
        %v4509 = vpop.permute.xlu0 %4508
        %4510 = vrot.lane.b32.xlu0 %v3765, 88
        %v4511 = vpop.permute.xlu0 %4510
        %4512 = vrot.lane.b32.xlu0 %v3766, 88
        %v4513 = vpop.permute.xlu0 %4512
        %4514 = vrot.lane.b32.xlu0 %v3768, 88
        %v4515 = vpop.permute.xlu0 %4514
        %4516 = vrot.lane.b32.xlu0 %v3769, 88
        %v4517 = vpop.permute.xlu0 %4516
        %4518 = vrot.lane.b32.xlu0 %v3771, 88
        %v4519 = vpop.permute.xlu0 %4518
        %4520 = vrot.lane.b32.xlu0 %v3772, 88
        %v4521 = vpop.permute.xlu0 %4520
        %4522 = vrot.lane.b32.xlu0 %v3774, 88
        %v4523 = vpop.permute.xlu0 %4522
        %4524 = vrot.lane.b32.xlu0 %v3775, 88
        %v4525 = vpop.permute.xlu0 %4524
        %4526 = vrot.lane.b32.xlu0 %v3777, 88
        %v4527 = vpop.permute.xlu0 %4526
        %4528 = vrot.lane.b32.xlu0 %v3778, 88
        %v4529 = vpop.permute.xlu0 %4528
        %4530 = vrot.lane.b32.xlu0 %v3780, 88
        %v4531 = vpop.permute.xlu0 %4530
        %4532 = vrot.lane.b32.xlu0 %v3781, 88
        %v4533 = vpop.permute.xlu0 %4532
        %4534 = vrot.lane.b32.xlu0 %v3783, 88
        %v4535 = vpop.permute.xlu0 %4534
        %4536 = vrot.lane.b32.xlu0 %v3784, 88
        %v4537 = vpop.permute.xlu0 %4536
        %4570 = vrot.lane.b32.xlu0 %v3836, 124
        %v4571 = vpop.permute.xlu0 %4570
        %4572 = vrot.lane.b32.xlu0 %v3838, 124
        %v4573 = vpop.permute.xlu0 %4572
        %4574 = vrot.lane.b32.xlu0 %v3841, 124
        %v4575 = vpop.permute.xlu0 %4574
        %4576 = vrot.lane.b32.xlu0 %v3843, 124
        %v4577 = vpop.permute.xlu0 %4576
        %4578 = vrot.lane.b32.xlu0 %v3846, 124
        %v4579 = vpop.permute.xlu0 %4578
        %4580 = vrot.lane.b32.xlu0 %v3848, 124
        %v4581 = vpop.permute.xlu0 %4580
        %4582 = vrot.lane.b32.xlu0 %v3851, 124
        %v4583 = vpop.permute.xlu0 %4582
        %4584 = vrot.lane.b32.xlu0 %v3853, 124
        %v4585 = vpop.permute.xlu0 %4584
        %4586 = vrot.lane.b32.xlu0 %v3856, 124
        %v4587 = vpop.permute.xlu0 %4586
        %4588 = vrot.lane.b32.xlu0 %v3858, 124
        %v4589 = vpop.permute.xlu0 %4588
        %4590 = vrot.lane.b32.xlu0 %v3861, 124
        %v4591 = vpop.permute.xlu0 %4590
        %4592 = vrot.lane.b32.xlu0 %v3863, 124
        %v4593 = vpop.permute.xlu0 %4592
        %4594 = vrot.lane.b32.xlu0 %v3866, 124
        %v4595 = vpop.permute.xlu0 %4594
        %4596 = vrot.lane.b32.xlu0 %v3868, 124
        %v4597 = vpop.permute.xlu0 %4596
        %4598 = vrot.lane.b32.xlu0 %v3871, 124
        %v4599 = vpop.permute.xlu0 %4598
        %4600 = vrot.lane.b32.xlu0 %v3873, 124
        %v4601 = vpop.permute.xlu0 %4600
        %4602 = vrot.lane.b32.xlu0 %v3876, 124
        %v4603 = vpop.permute.xlu0 %4602
        %4604 = vrot.lane.b32.xlu0 %v3878, 124
        %v4605 = vpop.permute.xlu0 %4604
        %4606 = vrot.lane.b32.xlu0 %v3881, 124
        %v4607 = vpop.permute.xlu0 %4606
        %4608 = vrot.lane.b32.xlu0 %v3883, 124
        %v4609 = vpop.permute.xlu0 %4608
        %4610 = vrot.lane.b32.xlu0 %v3886, 124
        %v4611 = vpop.permute.xlu0 %4610
        %4612 = vrot.lane.b32.xlu0 %v3888, 124
        %v4613 = vpop.permute.xlu0 %4612
        %4614 = vrot.lane.b32.xlu0 %v3891, 124
        %v4615 = vpop.permute.xlu0 %4614
        %4616 = vrot.lane.b32.xlu0 %v3893, 124
        %v4617 = vpop.permute.xlu0 %4616
        %4618 = vrot.lane.b32.xlu0 %v3896, 124
        %v4619 = vpop.permute.xlu0 %4618
        %4620 = vrot.lane.b32.xlu0 %v3898, 124
        %v4621 = vpop.permute.xlu0 %4620
        %4622 = vrot.lane.b32.xlu0 %v3901, 124
        %v4623 = vpop.permute.xlu0 %4622
        %4624 = vrot.lane.b32.xlu0 %v3903, 124
        %v4625 = vpop.permute.xlu0 %4624
        %4626 = vrot.lane.b32.xlu0 %v3906, 124
        %v4627 = vpop.permute.xlu0 %4626
        %4628 = vrot.lane.b32.xlu0 %v3908, 124
        %v4629 = vpop.permute.xlu0 %4628
        %4630 = vrot.lane.b32.xlu0 %v3911, 124
        %v4631 = vpop.permute.xlu0 %4630
        %4632 = vrot.lane.b32.xlu0 %v3913, 124
        %v4633 = vpop.permute.xlu0 %4632
        %4666 = vrot.lane.b32.xlu0 %v3916, 32
        %v4667 = vpop.permute.xlu0 %4666
        %4668 = vrot.lane.b32.xlu0 %v3918, 32
        %v4669 = vpop.permute.xlu0 %4668
        %4670 = vrot.lane.b32.xlu0 %v3921, 32
        %v4671 = vpop.permute.xlu0 %4670
        %4672 = vrot.lane.b32.xlu0 %v3923, 32
        %v4673 = vpop.permute.xlu0 %4672
        %4674 = vrot.lane.b32.xlu0 %v3926, 32
        %v4675 = vpop.permute.xlu0 %4674
        %4676 = vrot.lane.b32.xlu0 %v3928, 32
        %v4677 = vpop.permute.xlu0 %4676
        %4678 = vrot.lane.b32.xlu0 %v3931, 32
        %v4679 = vpop.permute.xlu0 %4678
        %4680 = vrot.lane.b32.xlu0 %v3933, 32
        %v4681 = vpop.permute.xlu0 %4680
        %4682 = vrot.lane.b32.xlu0 %v3936, 32
        %v4683 = vpop.permute.xlu0 %4682
        %4684 = vrot.lane.b32.xlu0 %v3938, 32
        %v4685 = vpop.permute.xlu0 %4684
        %4686 = vrot.lane.b32.xlu0 %v3941, 32
        %v4687 = vpop.permute.xlu0 %4686
        %4688 = vrot.lane.b32.xlu0 %v3943, 32
        %v4689 = vpop.permute.xlu0 %4688
        %4690 = vrot.lane.b32.xlu0 %v3946, 32
        %v4691 = vpop.permute.xlu0 %4690
        %4692 = vrot.lane.b32.xlu0 %v3948, 32
        %v4693 = vpop.permute.xlu0 %4692
        %4694 = vrot.lane.b32.xlu0 %v3951, 32
        %v4695 = vpop.permute.xlu0 %4694
        %4696 = vrot.lane.b32.xlu0 %v3953, 32
        %v4697 = vpop.permute.xlu0 %4696
        %4698 = vrot.lane.b32.xlu0 %v3956, 32
        %v4699 = vpop.permute.xlu0 %4698
        %4700 = vrot.lane.b32.xlu0 %v3958, 32
        %v4701 = vpop.permute.xlu0 %4700
        %4702 = vrot.lane.b32.xlu0 %v3961, 32
        %v4703 = vpop.permute.xlu0 %4702
        %4704 = vrot.lane.b32.xlu0 %v3963, 32
        %v4705 = vpop.permute.xlu0 %4704
        %4706 = vrot.lane.b32.xlu0 %v3966, 32
        %v4707 = vpop.permute.xlu0 %4706
        %4708 = vrot.lane.b32.xlu0 %v3968, 32
        %v4709 = vpop.permute.xlu0 %4708
        %4710 = vrot.lane.b32.xlu0 %v3971, 32
        %v4711 = vpop.permute.xlu0 %4710
        %4712 = vrot.lane.b32.xlu0 %v3973, 32
        %v4713 = vpop.permute.xlu0 %4712
        %4714 = vrot.lane.b32.xlu0 %v3976, 32
        %v4715 = vpop.permute.xlu0 %4714
        %4716 = vrot.lane.b32.xlu0 %v3978, 32
        %v4717 = vpop.permute.xlu0 %4716
        %4718 = vrot.lane.b32.xlu0 %v3981, 32
        %v4719 = vpop.permute.xlu0 %4718
        %4720 = vrot.lane.b32.xlu0 %v3983, 32
        %v4721 = vpop.permute.xlu0 %4720
        %4722 = vrot.lane.b32.xlu0 %v3986, 32
        %v4723 = vpop.permute.xlu0 %4722
        %4724 = vrot.lane.b32.xlu0 %v3988, 32
        %v4725 = vpop.permute.xlu0 %4724
        %4726 = vrot.lane.b32.xlu0 %v3991, 32
        %v4727 = vpop.permute.xlu0 %4726
        %4728 = vrot.lane.b32.xlu0 %v3993, 32
        %v4729 = vpop.permute.xlu0 %4728
        %v4762 = vsel %vm334, %v3226, %v3995
        %v4763 = vsel %vm334, %v3227, %v3997
        %v4764 = vsel %vm334, %v3229, %v3999
        %v4765 = vsel %vm334, %v3230, %v4001
        %v4766 = vsel %vm334, %v3232, %v4003
        %v4767 = vsel %vm334, %v3233, %v4005
        %v4768 = vsel %vm334, %v3235, %v4007
        %v4769 = vsel %vm334, %v3236, %v4009
        %v4770 = vsel %vm334, %v3238, %v4011
        %v4771 = vsel %vm334, %v3239, %v4013
        %v4772 = vsel %vm334, %v3241, %v4015
        %v4773 = vsel %vm334, %v3242, %v4017
        %v4774 = vsel %vm334, %v3244, %v4019
        %v4775 = vsel %vm334, %v3245, %v4021
        %v4776 = vsel %vm334, %v3247, %v4023
        %v4777 = vsel %vm334, %v3248, %v4025
        %v4778 = vsel %vm334, %v3250, %v4027
        %v4779 = vsel %vm334, %v3251, %v4029
        %v4780 = vsel %vm334, %v3253, %v4031
        %v4781 = vsel %vm334, %v3254, %v4033
        %v4782 = vsel %vm334, %v3256, %v4035
        %v4783 = vsel %vm334, %v3257, %v4037
        %v4784 = vsel %vm334, %v3259, %v4039
        %v4785 = vsel %vm334, %v3260, %v4041
        %v4786 = vsel %vm334, %v3262, %v4043
        %v4787 = vsel %vm334, %v3263, %v4045
        %v4788 = vsel %vm334, %v3265, %v4047
        %v4789 = vsel %vm334, %v3266, %v4049
        %v4790 = vsel %vm334, %v3268, %v4051
        %v4791 = vsel %vm334, %v3269, %v4053
        %v4792 = vsel %vm334, %v3271, %v4055
        %v4793 = vsel %vm334, %v3272, %v4057
        %v4794 = vsel %vm2141, %v4762, %v4091
        %v4795 = vsel %vm2141, %v4763, %v4093
        %v4796 = vsel %vm2141, %v4764, %v4095
        %v4797 = vsel %vm2141, %v4765, %v4097
        %v4798 = vsel %vm2141, %v4766, %v4099
        %v4799 = vsel %vm2141, %v4767, %v4101
        %v4800 = vsel %vm2141, %v4768, %v4103
        %v4801 = vsel %vm2141, %v4769, %v4105
        %v4802 = vsel %vm2141, %v4770, %v4107
        %v4803 = vsel %vm2141, %v4771, %v4109
        %v4804 = vsel %vm2141, %v4772, %v4111
        %v4805 = vsel %vm2141, %v4773, %v4113
        %v4806 = vsel %vm2141, %v4774, %v4115
        %v4807 = vsel %vm2141, %v4775, %v4117
        %v4808 = vsel %vm2141, %v4776, %v4119
        %v4809 = vsel %vm2141, %v4777, %v4121
        %v4810 = vsel %vm2141, %v4778, %v4123
        %v4811 = vsel %vm2141, %v4779, %v4125
        %v4812 = vsel %vm2141, %v4780, %v4127
        %v4813 = vsel %vm2141, %v4781, %v4129
        %v4814 = vsel %vm2141, %v4782, %v4131
        %v4815 = vsel %vm2141, %v4783, %v4133
        %v4816 = vsel %vm2141, %v4784, %v4135
        %v4817 = vsel %vm2141, %v4785, %v4137
        %v4818 = vsel %vm2141, %v4786, %v4139
        %v4819 = vsel %vm2141, %v4787, %v4141
        %v4820 = vsel %vm2141, %v4788, %v4143
        %v4821 = vsel %vm2141, %v4789, %v4145
        %v4822 = vsel %vm2141, %v4790, %v4147
        %v4823 = vsel %vm2141, %v4791, %v4149
        %v4824 = vsel %vm2141, %v4792, %v4151
        %v4825 = vsel %vm2141, %v4793, %v4153
        %v4826 = vsel %vm2174, %v4794, %v4187
        %v4827 = vsel %vm2174, %v4795, %v4189
        %v4828 = vsel %vm2174, %v4796, %v4191
        %v4829 = vsel %vm2174, %v4797, %v4193
        %v4830 = vsel %vm2174, %v4798, %v4195
        %v4831 = vsel %vm2174, %v4799, %v4197
        %v4832 = vsel %vm2174, %v4800, %v4199
        %v4833 = vsel %vm2174, %v4801, %v4201
        %v4834 = vsel %vm2174, %v4802, %v4203
        %v4835 = vsel %vm2174, %v4803, %v4205
        %v4836 = vsel %vm2174, %v4804, %v4207
        %v4837 = vsel %vm2174, %v4805, %v4209
        %v4838 = vsel %vm2174, %v4806, %v4211
        %v4839 = vsel %vm2174, %v4807, %v4213
        %v4840 = vsel %vm2174, %v4808, %v4215
        %v4841 = vsel %vm2174, %v4809, %v4217
        %v4842 = vsel %vm2174, %v4810, %v4219
        %v4843 = vsel %vm2174, %v4811, %v4221
        %v4844 = vsel %vm2174, %v4812, %v4223
        %v4845 = vsel %vm2174, %v4813, %v4225
        %v4846 = vsel %vm2174, %v4814, %v4227
        %v4847 = vsel %vm2174, %v4815, %v4229
        %v4848 = vsel %vm2174, %v4816, %v4231
        %v4849 = vsel %vm2174, %v4817, %v4233
        %v4850 = vsel %vm2174, %v4818, %v4235
        %v4851 = vsel %vm2174, %v4819, %v4237
        %v4852 = vsel %vm2174, %v4820, %v4239
        %v4853 = vsel %vm2174, %v4821, %v4241
        %v4854 = vsel %vm2174, %v4822, %v4243
        %v4855 = vsel %vm2174, %v4823, %v4245
        %v4856 = vsel %vm2174, %v4824, %v4247
        %v4857 = vsel %vm2174, %v4825, %v4249
        %v4858 = vsel %vm2207, %v4187, %v4283
        %v4859 = vsel %vm2207, %v4189, %v4285
        %v4860 = vsel %vm2207, %v4191, %v4287
        %v4861 = vsel %vm2207, %v4193, %v4289
        %v4862 = vsel %vm2207, %v4195, %v4291
        %v4863 = vsel %vm2207, %v4197, %v4293
        %v4864 = vsel %vm2207, %v4199, %v4295
        %v4865 = vsel %vm2207, %v4201, %v4297
        %v4866 = vsel %vm2207, %v4203, %v4299
        %v4867 = vsel %vm2207, %v4205, %v4301
        %v4868 = vsel %vm2207, %v4207, %v4303
        %v4869 = vsel %vm2207, %v4209, %v4305
        %v4870 = vsel %vm2207, %v4211, %v4307
        %v4871 = vsel %vm2207, %v4213, %v4309
        %v4872 = vsel %vm2207, %v4215, %v4311
        %v4873 = vsel %vm2207, %v4217, %v4313
        %v4874 = vsel %vm2207, %v4219, %v4315
        %v4875 = vsel %vm2207, %v4221, %v4317
        %v4876 = vsel %vm2207, %v4223, %v4319
        %v4877 = vsel %vm2207, %v4225, %v4321
        %v4878 = vsel %vm2207, %v4227, %v4323
        %v4879 = vsel %vm2207, %v4229, %v4325
        %v4880 = vsel %vm2207, %v4231, %v4327
        %v4881 = vsel %vm2207, %v4233, %v4329
        %v4882 = vsel %vm2207, %v4235, %v4331
        %v4883 = vsel %vm2207, %v4237, %v4333
        %v4884 = vsel %vm2207, %v4239, %v4335
        %v4885 = vsel %vm2207, %v4241, %v4337
        %v4886 = vsel %vm2207, %v4243, %v4339
        %v4887 = vsel %vm2207, %v4245, %v4341
        %v4888 = vsel %vm2207, %v4247, %v4343
        %v4889 = vsel %vm2207, %v4249, %v4345
        %v4890 = vsel %vm2240, %v4858, %v4379
        %v4891 = vsel %vm2240, %v4859, %v4381
        %v4892 = vsel %vm2240, %v4860, %v4383
        %v4893 = vsel %vm2240, %v4861, %v4385
        %v4894 = vsel %vm2240, %v4862, %v4387
        %v4895 = vsel %vm2240, %v4863, %v4389
        %v4896 = vsel %vm2240, %v4864, %v4391
        %v4897 = vsel %vm2240, %v4865, %v4393
        %v4898 = vsel %vm2240, %v4866, %v4395
        %v4899 = vsel %vm2240, %v4867, %v4397
        %v4900 = vsel %vm2240, %v4868, %v4399
        %v4901 = vsel %vm2240, %v4869, %v4401
        %v4902 = vsel %vm2240, %v4870, %v4403
        %v4903 = vsel %vm2240, %v4871, %v4405
        %v4904 = vsel %vm2240, %v4872, %v4407
        %v4905 = vsel %vm2240, %v4873, %v4409
        %v4906 = vsel %vm2240, %v4874, %v4411
        %v4907 = vsel %vm2240, %v4875, %v4413
        %v4908 = vsel %vm2240, %v4876, %v4415
        %v4909 = vsel %vm2240, %v4877, %v4417
        %v4910 = vsel %vm2240, %v4878, %v4419
        %v4911 = vsel %vm2240, %v4879, %v4421
        %v4912 = vsel %vm2240, %v4880, %v4423
        %v4913 = vsel %vm2240, %v4881, %v4425
        %v4914 = vsel %vm2240, %v4882, %v4427
        %v4915 = vsel %vm2240, %v4883, %v4429
        %v4916 = vsel %vm2240, %v4884, %v4431
        %v4917 = vsel %vm2240, %v4885, %v4433
        %v4918 = vsel %vm2240, %v4886, %v4435
        %v4919 = vsel %vm2240, %v4887, %v4437
        %v4920 = vsel %vm2240, %v4888, %v4439
        %v4921 = vsel %vm2240, %v4889, %v4441
        %v4922 = vsel %vm2273, %v4890, %v4475
        %v4923 = vsel %vm2273, %v4891, %v4477
        %v4924 = vsel %vm2273, %v4892, %v4479
        %v4925 = vsel %vm2273, %v4893, %v4481
        %v4926 = vsel %vm2273, %v4894, %v4483
        %v4927 = vsel %vm2273, %v4895, %v4485
        %v4928 = vsel %vm2273, %v4896, %v4487
        %v4929 = vsel %vm2273, %v4897, %v4489
        %v4930 = vsel %vm2273, %v4898, %v4491
        %v4931 = vsel %vm2273, %v4899, %v4493
        %v4932 = vsel %vm2273, %v4900, %v4495
        %v4933 = vsel %vm2273, %v4901, %v4497
        %v4934 = vsel %vm2273, %v4902, %v4499
        %v4935 = vsel %vm2273, %v4903, %v4501
        %v4936 = vsel %vm2273, %v4904, %v4503
        %v4937 = vsel %vm2273, %v4905, %v4505
        %v4938 = vsel %vm2273, %v4906, %v4507
        %v4939 = vsel %vm2273, %v4907, %v4509
        %v4940 = vsel %vm2273, %v4908, %v4511
        %v4941 = vsel %vm2273, %v4909, %v4513
        %v4942 = vsel %vm2273, %v4910, %v4515
        %v4943 = vsel %vm2273, %v4911, %v4517
        %v4944 = vsel %vm2273, %v4912, %v4519
        %v4945 = vsel %vm2273, %v4913, %v4521
        %v4946 = vsel %vm2273, %v4914, %v4523
        %v4947 = vsel %vm2273, %v4915, %v4525
        %v4948 = vsel %vm2273, %v4916, %v4527
        %v4949 = vsel %vm2273, %v4917, %v4529
        %v4950 = vsel %vm2273, %v4918, %v4531
        %v4951 = vsel %vm2273, %v4919, %v4533
        %v4952 = vsel %vm2273, %v4920, %v4535
        %v4953 = vsel %vm2273, %v4921, %v4537
        %v4954 = vsel %vm2306, %v4922, %v4571
        %v4955 = vsel %vm2306, %v4923, %v4573
        %v4956 = vsel %vm2306, %v4924, %v4575
        %v4957 = vsel %vm2306, %v4925, %v4577
        %v4958 = vsel %vm2306, %v4926, %v4579
        %v4959 = vsel %vm2306, %v4927, %v4581
        %v4960 = vsel %vm2306, %v4928, %v4583
        %v4961 = vsel %vm2306, %v4929, %v4585
        %v4962 = vsel %vm2306, %v4930, %v4587
        %v4963 = vsel %vm2306, %v4931, %v4589
        %v4964 = vsel %vm2306, %v4932, %v4591
        %v4965 = vsel %vm2306, %v4933, %v4593
        %v4966 = vsel %vm2306, %v4934, %v4595
        %v4967 = vsel %vm2306, %v4935, %v4597
        %v4968 = vsel %vm2306, %v4936, %v4599
        %v4969 = vsel %vm2306, %v4937, %v4601
        %v4970 = vsel %vm2306, %v4938, %v4603
        %v4971 = vsel %vm2306, %v4939, %v4605
        %v4972 = vsel %vm2306, %v4940, %v4607
        %v4973 = vsel %vm2306, %v4941, %v4609
        %v4974 = vsel %vm2306, %v4942, %v4611
        %v4975 = vsel %vm2306, %v4943, %v4613
        %v4976 = vsel %vm2306, %v4944, %v4615
        %v4977 = vsel %vm2306, %v4945, %v4617
        %v4978 = vsel %vm2306, %v4946, %v4619
        %v4979 = vsel %vm2306, %v4947, %v4621
        %v4980 = vsel %vm2306, %v4948, %v4623
        %v4981 = vsel %vm2306, %v4949, %v4625
        %v4982 = vsel %vm2306, %v4950, %v4627
        %v4983 = vsel %vm2306, %v4951, %v4629
        %v4984 = vsel %vm2306, %v4952, %v4631
        %v4985 = vsel %vm2306, %v4953, %v4633
        %v4986 = vsel %vm505, %v4571, %v4667
        %v4987 = vsel %vm505, %v4573, %v4669
        %v4988 = vsel %vm505, %v4575, %v4671
        %v4989 = vsel %vm505, %v4577, %v4673
        %v4990 = vsel %vm505, %v4579, %v4675
        %v4991 = vsel %vm505, %v4581, %v4677
        %v4992 = vsel %vm505, %v4583, %v4679
        %v4993 = vsel %vm505, %v4585, %v4681
        %v4994 = vsel %vm505, %v4587, %v4683
        %v4995 = vsel %vm505, %v4589, %v4685
        %v4996 = vsel %vm505, %v4591, %v4687
        %v4997 = vsel %vm505, %v4593, %v4689
        %v4998 = vsel %vm505, %v4595, %v4691
        %v4999 = vsel %vm505, %v4597, %v4693
        %v5000 = vsel %vm505, %v4599, %v4695
        %v5001 = vsel %vm505, %v4601, %v4697
        %v5002 = vsel %vm505, %v4603, %v4699
        %v5003 = vsel %vm505, %v4605, %v4701
        %v5004 = vsel %vm505, %v4607, %v4703
        %v5005 = vsel %vm505, %v4609, %v4705
        %v5006 = vsel %vm505, %v4611, %v4707
        %v5007 = vsel %vm505, %v4613, %v4709
        %v5008 = vsel %vm505, %v4615, %v4711
        %v5009 = vsel %vm505, %v4617, %v4713
        %v5010 = vsel %vm505, %v4619, %v4715
        %v5011 = vsel %vm505, %v4621, %v4717
        %v5012 = vsel %vm505, %v4623, %v4719
        %v5013 = vsel %vm505, %v4625, %v4721
        %v5014 = vsel %vm505, %v4627, %v4723
        %v5015 = vsel %vm505, %v4629, %v4725
        %v5016 = vsel %vm505, %v4631, %v4727
        %v5017 = vsel %vm505, %v4633, %v4729
        %v5018 = vld [vmem:[%s4] sm:$0xff]
        %v5019 = vld [vmem:[%s4 + $0x8] sm:$0xff]
        %v5020 = vld [vmem:[%s4 + $0x10] sm:$0xff]
        %v5021 = vld [vmem:[%s4 + $0x18] sm:$0xff]
        %v5022 = vld [vmem:[%s4 + $0x20] sm:$0xff]
        %v5023 = vld [vmem:[%s4 + $0x28] sm:$0xff]
        %v5024 = vld [vmem:[%s4 + $0x30] sm:$0xff]
        %v5025 = vld [vmem:[%s4 + $0x38] sm:$0xff]
        %v5026 = vld [vmem:[%s4 + $0x40] sm:$0xff]
        %v5027 = vld [vmem:[%s4 + $0x48] sm:$0xff]
        %v5028 = vld [vmem:[%s4 + $0x50] sm:$0xff]
        %v5029 = vld [vmem:[%s4 + $0x58] sm:$0xff]
        %v5030 = vld [vmem:[%s4 + $0x60] sm:$0xff]
        %v5031 = vld [vmem:[%s4 + $0x68] sm:$0xff]
        %v5032 = vld [vmem:[%s4 + $0x70] sm:$0xff]
        %v5033 = vld [vmem:[%s4 + $0x78] sm:$0xff]
        %v5034 = vld [vmem:[%s4 + $0x80] sm:$0xff]
        %v5035 = vld [vmem:[%s4 + $0x88] sm:$0xff]
        %v5036 = vld [vmem:[%s4 + $0x90] sm:$0xff]
        %v5037 = vld [vmem:[%s4 + $0x98] sm:$0xff]
        %v5038 = vld [vmem:[%s4 + $0xa0] sm:$0xff]
        %v5039 = vld [vmem:[%s4 + $0xa8] sm:$0xff]
        %v5040 = vld [vmem:[%s4 + $0xb0] sm:$0xff]
        %v5041 = vld [vmem:[%s4 + $0xb8] sm:$0xff]
        %v5042 = vld [vmem:[%s4 + $0xc0] sm:$0xff]
        %v5043 = vld [vmem:[%s4 + $0xc8] sm:$0xff]
        %v5044 = vld [vmem:[%s4 + $0xd0] sm:$0xff]
        %v5045 = vld [vmem:[%s4 + $0xd8] sm:$0xff]
        %v5046 = vld [vmem:[%s4 + $0xe0] sm:$0xff]
        %v5047 = vld [vmem:[%s4 + $0xe8] sm:$0xff]
        %v5048 = vld [vmem:[%s4 + $0xf0] sm:$0xff]
        %v5049 = vld [vmem:[%s4 + $0xf8] sm:$0xff]
        %v5050 = vld [vmem:[%s4 + $0x100] sm:$0xff]
        %v5051 = vld [vmem:[%s4 + $0x108] sm:$0xff]
        %v5052 = vld [vmem:[%s4 + $0x110] sm:$0xff]
        %v5053 = vld [vmem:[%s4 + $0x118] sm:$0xff]
        %v5054 = vld [vmem:[%s4 + $0x120] sm:$0xff]
        %v5055 = vld [vmem:[%s4 + $0x128] sm:$0xff]
        %v5056 = vld [vmem:[%s4 + $0x130] sm:$0xff]
        %v5057 = vld [vmem:[%s4 + $0x138] sm:$0xff]
        %v5058 = vld [vmem:[%s4 + $0x140] sm:$0xf]
        %v5059 = vld [vmem:[%s5] sm:$0x1]
        %v5061 = vlaneseq
        %v5062 = vshrl.u32 %v5061, 7
        %v5063 = vsub.s32 0, %v5062
        %v5064 = vrot.slane %v5059, %v5063
        %v5067 = vsel %vm2419, %v4986, 0
        %v5070 = vsel %vm2419, %v4987, 0
        %v5073 = vsel %vm2419, %v4988, 0
        %v5076 = vsel %vm2419, %v4989, 0
        %v5079 = vsel %vm2419, %v4990, 0
        %v5082 = vsel %vm2419, %v4991, 0
        %v5085 = vsel %vm2419, %v4992, 0
        %v5088 = vsel %vm2419, %v4993, 0
        %v5091 = vsel %vm2419, %v4994, 0
        %v5094 = vsel %vm2419, %v4995, 0
        %v5097 = vsel %vm2419, %v4996, 0
        %v5100 = vsel %vm2419, %v4997, 0
        %v5103 = vsel %vm2419, %v4998, 0
        %v5106 = vsel %vm2419, %v4999, 0
        %v5109 = vsel %vm2419, %v5000, 0
        %v5112 = vsel %vm2419, %v5001, 0
        %v5115 = vsel %vm2419, %v5002, 0
        %v5118 = vsel %vm2419, %v5003, 0
        %v5121 = vsel %vm2419, %v5004, 0
        %v5124 = vsel %vm2419, %v5005, 0
        %v5127 = vsel %vm2419, %v5006, 0
        %v5130 = vsel %vm2419, %v5007, 0
        %v5133 = vsel %vm2419, %v5008, 0
        %v5136 = vsel %vm2419, %v5009, 0
        %v5139 = vsel %vm2419, %v5010, 0
        %v5142 = vsel %vm2419, %v5011, 0
        %v5145 = vsel %vm2419, %v5012, 0
        %v5148 = vsel %vm2419, %v5013, 0
        %v5151 = vsel %vm2419, %v5014, 0
        %v5154 = vsel %vm2419, %v5015, 0
        %v5157 = vsel %vm2419, %v5016, 0
        %v5160 = vsel %vm2419, %v5017, 0
        %v5163 = vsel %vm2516, %v5058, 0
        %5165 = vmatprep.subr.mxu0 0.0
        %5166 = vmatpush1.msra.mxu0 %v5018
        %5167 = vmatprep.subr.mxu0 0.0
        %5168 = vmatpush1.msra.mxu0 %v5019
        %5169 = vmatprep.subr.mxu0 0.0
        %5170 = vmatpush1.msra.mxu0 %v5020
        %5171 = vmatprep.subr.mxu0 0.0
        %5172 = vmatpush1.msra.mxu0 %v5021
        %5173 = vmatprep.subr.mxu0 0.0
        %5174 = vmatpush1.msra.mxu0 %v5022
        %5175 = vmatprep.subr.mxu0 0.0
        %5176 = vmatpush1.msra.mxu0 %v5023
        %5177 = vmatprep.subr.mxu0 0.0
        %5178 = vmatpush1.msra.mxu0 %v5024
        %5179 = vmatprep.subr.mxu0 0.0
        %5180 = vmatpush1.msra.mxu0 %v5025
        %5181 = vmatprep.subr.mxu0 0.0
        %5182 = vmatpush1.msra.mxu0 %v5026
        %5183 = vmatprep.subr.mxu0 0.0
        %5184 = vmatpush1.msra.mxu0 %v5027
        %5185 = vmatprep.subr.mxu0 0.0
        %5186 = vmatpush1.msra.mxu0 %v5028
        %5187 = vmatprep.subr.mxu0 0.0
        %5188 = vmatpush1.msra.mxu0 %v5029
        %5189 = vmatprep.subr.mxu0 0.0
        %5190 = vmatpush1.msra.mxu0 %v5030
        %5191 = vmatprep.subr.mxu0 0.0
        %5192 = vmatpush1.msra.mxu0 %v5031
        %5193 = vmatprep.subr.mxu0 0.0
        %5194 = vmatpush1.msra.mxu0 %v5032
        %5195 = vmatprep.subr.mxu0 0.0
        %5196 = vmatpush1.msra.mxu0 %v5033
        %5197 = vmatprep.subr.mxu0 0.0
        %5198 = vmatpush1.msra.mxu0 %v5034
        %5199 = vmatprep.subr.mxu0 0.0
        %5200 = vmatpush1.msra.mxu0 %v5035
        %5201 = vmatprep.subr.mxu0 0.0
        %5202 = vmatpush1.msra.mxu0 %v5036
        %5203 = vmatprep.subr.mxu0 0.0
        %5204 = vmatpush1.msra.mxu0 %v5037
        %5205 = vmatprep.subr.mxu0 0.0
        %5206 = vmatpush1.msra.mxu0 %v5038
        %5207 = vmatprep.subr.mxu0 0.0
        %5208 = vmatpush1.msra.mxu0 %v5039
        %5209 = vmatprep.subr.mxu0 0.0
        %5210 = vmatpush1.msra.mxu0 %v5040
        %5211 = vmatprep.subr.mxu0 0.0
        %5212 = vmatpush1.msra.mxu0 %v5041
        %5213 = vmatprep.subr.mxu0 0.0
        %5214 = vmatpush1.msra.mxu0 %v5042
        %5215 = vmatprep.subr.mxu0 0.0
        %5216 = vmatpush1.msra.mxu0 %v5043
        %5217 = vmatprep.subr.mxu0 0.0
        %5218 = vmatpush1.msra.mxu0 %v5044
        %5219 = vmatprep.subr.mxu0 0.0
        %5220 = vmatpush1.msra.mxu0 %v5045
        %5221 = vmatprep.subr.mxu0 0.0
        %5222 = vmatpush1.msra.mxu0 %v5046
        %5223 = vmatprep.subr.mxu0 0.0
        %5224 = vmatpush1.msra.mxu0 %v5047
        %5225 = vmatprep.subr.mxu0 0.0
        %5226 = vmatpush1.msra.mxu0 %v5048
        %5227 = vmatprep.subr.mxu0 0.0
        %5228 = vmatpush1.msra.mxu0 %v5049
        %5229 = vmatprep.mubr.f32.mxu0 %v4954
        %5230 = vmatmul.mubr.f32.gmra.mrb[0].mxu0 %v4826
        %v5231 = vpop.f32.mrb[0].mxu0
        %v5232 = vadd.f32 %v5064, %v5231
        %v5233 = vpop.f32.mrb[0].mxu0
        %5234 = vmatprep.mubr.f32.mxu0 %v4955
        %5235 = vmatmul.mubr.f32.gmra.mrb[0].mxu0 %v4827
        %v5236 = vpop.f32.mrb[0].mxu0
        %v5237 = vadd.f32 %v5064, %v5236
        %v5238 = vpop.f32.mrb[0].mxu0
        %5239 = vmatprep.mubr.f32.mxu0 %v4956
        %5240 = vmatmul.mubr.f32.gmra.mrb[0].mxu0 %v4828
        %v5241 = vpop.f32.mrb[0].mxu0
        %v5242 = vadd.f32 %v5064, %v5241
        %v5243 = vpop.f32.mrb[0].mxu0
        %5244 = vmatprep.mubr.f32.mxu0 %v4957
        %5245 = vmatmul.mubr.f32.gmra.mrb[0].mxu0 %v4829
        %v5246 = vpop.f32.mrb[0].mxu0
        %v5247 = vadd.f32 %v5064, %v5246
        %v5248 = vpop.f32.mrb[0].mxu0
        %5249 = vmatprep.mubr.f32.mxu0 %v4958
        %5250 = vmatmul.mubr.f32.gmra.mrb[0].mxu0 %v4830
        %v5251 = vpop.f32.mrb[0].mxu0
        %v5252 = vadd.f32 %v5064, %v5251
        %v5253 = vpop.f32.mrb[0].mxu0
        %5254 = vmatprep.mubr.f32.mxu0 %v4959
        %5255 = vmatmul.mubr.f32.gmra.mrb[0].mxu0 %v4831
        %v5256 = vpop.f32.mrb[0].mxu0
        %v5257 = vadd.f32 %v5064, %v5256
        %v5258 = vpop.f32.mrb[0].mxu0
        %5259 = vmatprep.mubr.f32.mxu0 %v4960
        %5260 = vmatmul.mubr.f32.gmra.mrb[0].mxu0 %v4832
        %v5261 = vpop.f32.mrb[0].mxu0
        %v5262 = vadd.f32 %v5064, %v5261
        %v5263 = vpop.f32.mrb[0].mxu0
        %5264 = vmatprep.mubr.f32.mxu0 %v4961
        %5265 = vmatmul.mubr.f32.gmra.mrb[0].mxu0 %v4833
        %v5266 = vpop.f32.mrb[0].mxu0
        %v5267 = vadd.f32 %v5064, %v5266
        %v5268 = vpop.f32.mrb[0].mxu0
        %5269 = vmatprep.mubr.f32.mxu0 %v4962
        %5270 = vmatmul.mubr.f32.gmra.mrb[0].mxu0 %v4834
        %v5271 = vpop.f32.mrb[0].mxu0
        %v5272 = vadd.f32 %v5064, %v5271
        %v5273 = vpop.f32.mrb[0].mxu0
        %5274 = vmatprep.mubr.f32.mxu0 %v4963
        %5275 = vmatmul.mubr.f32.gmra.mrb[0].mxu0 %v4835
        %v5276 = vpop.f32.mrb[0].mxu0
        %v5277 = vadd.f32 %v5064, %v5276
        %v5278 = vpop.f32.mrb[0].mxu0
        %5279 = vmatprep.mubr.f32.mxu0 %v4964
        %5280 = vmatmul.mubr.f32.gmra.mrb[0].mxu0 %v4836
        %v5281 = vpop.f32.mrb[0].mxu0
        %v5282 = vadd.f32 %v5064, %v5281
        %v5283 = vpop.f32.mrb[0].mxu0
        %5284 = vmatprep.mubr.f32.mxu0 %v4965
        %5285 = vmatmul.mubr.f32.gmra.mrb[0].mxu0 %v4837
        %v5286 = vpop.f32.mrb[0].mxu0
        %v5287 = vadd.f32 %v5064, %v5286
        %v5288 = vpop.f32.mrb[0].mxu0
        %5289 = vmatprep.mubr.f32.mxu0 %v4966
        %5290 = vmatmul.mubr.f32.gmra.mrb[0].mxu0 %v4838
        %v5291 = vpop.f32.mrb[0].mxu0
        %v5292 = vadd.f32 %v5064, %v5291
        %v5293 = vpop.f32.mrb[0].mxu0
        %5294 = vmatprep.mubr.f32.mxu0 %v4967
        %5295 = vmatmul.mubr.f32.gmra.mrb[0].mxu0 %v4839
        %v5296 = vpop.f32.mrb[0].mxu0
        %v5297 = vadd.f32 %v5064, %v5296
        %v5298 = vpop.f32.mrb[0].mxu0
        %5299 = vmatprep.mubr.f32.mxu0 %v4968
        %5300 = vmatmul.mubr.f32.gmra.mrb[0].mxu0 %v4840
        %v5301 = vpop.f32.mrb[0].mxu0
        %v5302 = vadd.f32 %v5064, %v5301
        %v5303 = vpop.f32.mrb[0].mxu0
        %5304 = vmatprep.mubr.f32.mxu0 %v4969
        %5305 = vmatmul.mubr.f32.gmra.mrb[0].mxu0 %v4841
        %v5306 = vpop.f32.mrb[0].mxu0
        %v5307 = vadd.f32 %v5064, %v5306
        %v5308 = vpop.f32.mrb[0].mxu0
        %5309 = vmatprep.mubr.f32.mxu0 %v4970
        %5310 = vmatmul.mubr.f32.gmra.mrb[0].mxu0 %v4842
        %v5311 = vpop.f32.mrb[0].mxu0
        %v5312 = vadd.f32 %v5064, %v5311
        %v5313 = vpop.f32.mrb[0].mxu0
        %5314 = vmatprep.mubr.f32.mxu0 %v4971
        %5315 = vmatmul.mubr.f32.gmra.mrb[0].mxu0 %v4843
        %v5316 = vpop.f32.mrb[0].mxu0
        %v5317 = vadd.f32 %v5064, %v5316
        %v5318 = vpop.f32.mrb[0].mxu0
        %5319 = vmatprep.mubr.f32.mxu0 %v4972
        %5320 = vmatmul.mubr.f32.gmra.mrb[0].mxu0 %v4844
        %v5321 = vpop.f32.mrb[0].mxu0
        %v5322 = vadd.f32 %v5064, %v5321
        %v5323 = vpop.f32.mrb[0].mxu0
        %5324 = vmatprep.mubr.f32.mxu0 %v4973
        %5325 = vmatmul.mubr.f32.gmra.mrb[0].mxu0 %v4845
        %v5326 = vpop.f32.mrb[0].mxu0
        %v5327 = vadd.f32 %v5064, %v5326
        %v5328 = vpop.f32.mrb[0].mxu0
        %5329 = vmatprep.mubr.f32.mxu0 %v4974
        %5330 = vmatmul.mubr.f32.gmra.mrb[0].mxu0 %v4846
        %v5331 = vpop.f32.mrb[0].mxu0
        %v5332 = vadd.f32 %v5064, %v5331
        %v5333 = vpop.f32.mrb[0].mxu0
        %5334 = vmatprep.mubr.f32.mxu0 %v4975
        %5335 = vmatmul.mubr.f32.gmra.mrb[0].mxu0 %v4847
        %v5336 = vpop.f32.mrb[0].mxu0
        %v5337 = vadd.f32 %v5064, %v5336
        %v5338 = vpop.f32.mrb[0].mxu0
        %5339 = vmatprep.mubr.f32.mxu0 %v4976
        %5340 = vmatmul.mubr.f32.gmra.mrb[0].mxu0 %v4848
        %v5341 = vpop.f32.mrb[0].mxu0
        %v5342 = vadd.f32 %v5064, %v5341
        %v5343 = vpop.f32.mrb[0].mxu0
        %5344 = vmatprep.mubr.f32.mxu0 %v4977
        %5345 = vmatmul.mubr.f32.gmra.mrb[0].mxu0 %v4849
        %v5346 = vpop.f32.mrb[0].mxu0
        %v5347 = vadd.f32 %v5064, %v5346
        %v5348 = vpop.f32.mrb[0].mxu0
        %5349 = vmatprep.mubr.f32.mxu0 %v4978
        %5350 = vmatmul.mubr.f32.gmra.mrb[0].mxu0 %v4850
        %v5351 = vpop.f32.mrb[0].mxu0
        %v5352 = vadd.f32 %v5064, %v5351
        %v5353 = vpop.f32.mrb[0].mxu0
        %5354 = vmatprep.mubr.f32.mxu0 %v4979
        %5355 = vmatmul.mubr.f32.gmra.mrb[0].mxu0 %v4851
        %v5356 = vpop.f32.mrb[0].mxu0
        %v5357 = vadd.f32 %v5064, %v5356
        %v5358 = vpop.f32.mrb[0].mxu0
        %5359 = vmatprep.mubr.f32.mxu0 %v4980
        %5360 = vmatmul.mubr.f32.gmra.mrb[0].mxu0 %v4852
        %v5361 = vpop.f32.mrb[0].mxu0
        %v5362 = vadd.f32 %v5064, %v5361
        %v5363 = vpop.f32.mrb[0].mxu0
        %5364 = vmatprep.mubr.f32.mxu0 %v4981
        %5365 = vmatmul.mubr.f32.gmra.mrb[0].mxu0 %v4853
        %v5366 = vpop.f32.mrb[0].mxu0
        %v5367 = vadd.f32 %v5064, %v5366
        %v5368 = vpop.f32.mrb[0].mxu0
        %5369 = vmatprep.mubr.f32.mxu0 %v4982
        %5370 = vmatmul.mubr.f32.gmra.mrb[0].mxu0 %v4854
        %v5371 = vpop.f32.mrb[0].mxu0
        %v5372 = vadd.f32 %v5064, %v5371
        %v5373 = vpop.f32.mrb[0].mxu0
        %5374 = vmatprep.mubr.f32.mxu0 %v4983
        %5375 = vmatmul.mubr.f32.gmra.mrb[0].mxu0 %v4855
        %v5376 = vpop.f32.mrb[0].mxu0
        %v5377 = vadd.f32 %v5064, %v5376
        %v5378 = vpop.f32.mrb[0].mxu0
        %5379 = vmatprep.mubr.f32.mxu0 %v4984
        %5380 = vmatmul.mubr.f32.gmra.mrb[0].mxu0 %v4856
        %v5381 = vpop.f32.mrb[0].mxu0
        %v5382 = vadd.f32 %v5064, %v5381
        %v5383 = vpop.f32.mrb[0].mxu0
        %5384 = vmatprep.mubr.f32.mxu0 %v4985
        %5385 = vmatmul.mubr.f32.gmra.mrb[0].mxu0 %v4857
        %v5386 = vpop.f32.mrb[0].mxu0
        %v5387 = vadd.f32 %v5064, %v5386
        %v5388 = vpop.f32.mrb[0].mxu0
        %5389 = vdwg.mxu0
        %5390 = vmatprep.subr.mxu0 0.0
        %5391 = vmatpush1.msra.mxu0 %v5050
        %5392 = vmatprep.subr.mxu0 0.0
        %5393 = vmatpush1.msra.mxu0 %v5051
        %5394 = vmatprep.subr.mxu0 0.0
        %5395 = vmatpush1.msra.mxu0 %v5052
        %5396 = vmatprep.subr.mxu0 0.0
        %5397 = vmatpush1.msra.mxu0 %v5053
        %5398 = vmatprep.subr.mxu0 0.0
        %5399 = vmatpush1.msra.mxu0 %v5054
        %5400 = vmatprep.subr.mxu0 0.0
        %5401 = vmatpush1.msra.mxu0 %v5055
        %5402 = vmatprep.subr.mxu0 0.0
        %5403 = vmatpush1.msra.mxu0 %v5056
        %5404 = vmatprep.subr.mxu0 0.0
        %5405 = vmatpush1.msra.mxu0 %v5057
        %5406 = vmatprep.subr.mxu0 0.0
        %5407 = vmatpush1.msra.mxu0 %v5163
        %5408 = vmatprep.subr.mxu0 0.0
        %5409 = vmatpush1.msra.mxu0 0.0
        %5410 = vmatprep.subr.mxu0 0.0
        %5411 = vmatpush1.msra.mxu0 0.0
        %5412 = vmatprep.subr.mxu0 0.0
        %5413 = vmatpush1.msra.mxu0 0.0
        %5414 = vmatprep.subr.mxu0 0.0
        %5415 = vmatpush1.msra.mxu0 0.0
        %5416 = vmatprep.subr.mxu0 0.0
        %5417 = vmatpush1.msra.mxu0 0.0
        %5418 = vmatprep.subr.mxu0 0.0
        %5419 = vmatpush1.msra.mxu0 0.0
        %5420 = vmatprep.subr.mxu0 0.0
        %5421 = vmatpush1.msra.mxu0 0.0
        %5422 = vmatprep.subr.mxu0 0.0
        %5423 = vmatpush1.msra.mxu0 0.0
        %5424 = vmatprep.subr.mxu0 0.0
        %5425 = vmatpush1.msra.mxu0 0.0
        %5426 = vmatprep.subr.mxu0 0.0
        %5427 = vmatpush1.msra.mxu0 0.0
        %5428 = vmatprep.subr.mxu0 0.0
        %5429 = vmatpush1.msra.mxu0 0.0
        %5430 = vmatprep.subr.mxu0 0.0
        %5431 = vmatpush1.msra.mxu0 0.0
        %5432 = vmatprep.subr.mxu0 0.0
        %5433 = vmatpush1.msra.mxu0 0.0
        %5434 = vmatprep.subr.mxu0 0.0
        %5435 = vmatpush1.msra.mxu0 0.0
        %5436 = vmatprep.subr.mxu0 0.0
        %5437 = vmatpush1.msra.mxu0 0.0
        %5438 = vmatprep.subr.mxu0 0.0
        %5439 = vmatpush1.msra.mxu0 0.0
        %5440 = vmatprep.subr.mxu0 0.0
        %5441 = vmatpush1.msra.mxu0 0.0
        %5442 = vmatprep.subr.mxu0 0.0
        %5443 = vmatpush1.msra.mxu0 0.0
        %5444 = vmatprep.subr.mxu0 0.0
        %5445 = vmatpush1.msra.mxu0 0.0
        %5446 = vmatprep.subr.mxu0 0.0
        %5447 = vmatpush1.msra.mxu0 0.0
        %5448 = vmatprep.subr.mxu0 0.0
        %5449 = vmatpush1.msra.mxu0 0.0
        %5450 = vmatprep.subr.mxu0 0.0
        %5451 = vmatpush1.msra.mxu0 0.0
        %5452 = vmatprep.subr.mxu0 0.0
        %5453 = vmatpush1.msra.mxu0 0.0
        %5454 = vmatprep.mubr.f32.mxu0 0.0
        %5455 = vmatmul.mubr.f32.gmra.mrb[0].mxu0 %v5067
        %v5456 = vpop.f32.mrb[0].mxu0
        %v5457 = vadd.f32 %v5232, %v5456
        %v5458 = vpop.f32.mrb[0].mxu0
        %5459 = vmatprep.mubr.f32.mxu0 0.0
        %5460 = vmatmul.mubr.f32.gmra.mrb[0].mxu0 %v5070
        %v5461 = vpop.f32.mrb[0].mxu0
        %v5462 = vadd.f32 %v5237, %v5461
        %v5463 = vpop.f32.mrb[0].mxu0
        %5464 = vmatprep.mubr.f32.mxu0 0.0
        %5465 = vmatmul.mubr.f32.gmra.mrb[0].mxu0 %v5073
        %v5466 = vpop.f32.mrb[0].mxu0
        %v5467 = vadd.f32 %v5242, %v5466
        %v5468 = vpop.f32.mrb[0].mxu0
        %5469 = vmatprep.mubr.f32.mxu0 0.0
        %5470 = vmatmul.mubr.f32.gmra.mrb[0].mxu0 %v5076
        %v5471 = vpop.f32.mrb[0].mxu0
        %v5472 = vadd.f32 %v5247, %v5471
        %v5473 = vpop.f32.mrb[0].mxu0
        %5474 = vmatprep.mubr.f32.mxu0 0.0
        %5475 = vmatmul.mubr.f32.gmra.mrb[0].mxu0 %v5079
        %v5476 = vpop.f32.mrb[0].mxu0
        %v5477 = vadd.f32 %v5252, %v5476
        %v5478 = vpop.f32.mrb[0].mxu0
        %5479 = vmatprep.mubr.f32.mxu0 0.0
        %5480 = vmatmul.mubr.f32.gmra.mrb[0].mxu0 %v5082
        %v5481 = vpop.f32.mrb[0].mxu0
        %v5482 = vadd.f32 %v5257, %v5481
        %v5483 = vpop.f32.mrb[0].mxu0
        %5484 = vmatprep.mubr.f32.mxu0 0.0
        %5485 = vmatmul.mubr.f32.gmra.mrb[0].mxu0 %v5085
        %v5486 = vpop.f32.mrb[0].mxu0
        %v5487 = vadd.f32 %v5262, %v5486
        %v5488 = vpop.f32.mrb[0].mxu0
        %5489 = vmatprep.mubr.f32.mxu0 0.0
        %5490 = vmatmul.mubr.f32.gmra.mrb[0].mxu0 %v5088
        %v5491 = vpop.f32.mrb[0].mxu0
        %v5492 = vadd.f32 %v5267, %v5491
        %v5493 = vpop.f32.mrb[0].mxu0
        %5494 = vmatprep.mubr.f32.mxu0 0.0
        %5495 = vmatmul.mubr.f32.gmra.mrb[0].mxu0 %v5091
        %v5496 = vpop.f32.mrb[0].mxu0
        %v5497 = vadd.f32 %v5272, %v5496
        %v5498 = vpop.f32.mrb[0].mxu0
        %5499 = vmatprep.mubr.f32.mxu0 0.0
        %5500 = vmatmul.mubr.f32.gmra.mrb[0].mxu0 %v5094
        %v5501 = vpop.f32.mrb[0].mxu0
        %v5502 = vadd.f32 %v5277, %v5501
        %v5503 = vpop.f32.mrb[0].mxu0
        %5504 = vmatprep.mubr.f32.mxu0 0.0
        %5505 = vmatmul.mubr.f32.gmra.mrb[0].mxu0 %v5097
        %v5506 = vpop.f32.mrb[0].mxu0
        %v5507 = vadd.f32 %v5282, %v5506
        %v5508 = vpop.f32.mrb[0].mxu0
        %5509 = vmatprep.mubr.f32.mxu0 0.0
        %5510 = vmatmul.mubr.f32.gmra.mrb[0].mxu0 %v5100
        %v5511 = vpop.f32.mrb[0].mxu0
        %v5512 = vadd.f32 %v5287, %v5511
        %v5513 = vpop.f32.mrb[0].mxu0
        %5514 = vmatprep.mubr.f32.mxu0 0.0
        %5515 = vmatmul.mubr.f32.gmra.mrb[0].mxu0 %v5103
        %v5516 = vpop.f32.mrb[0].mxu0
        %v5517 = vadd.f32 %v5292, %v5516
        %v5518 = vpop.f32.mrb[0].mxu0
        %5519 = vmatprep.mubr.f32.mxu0 0.0
        %5520 = vmatmul.mubr.f32.gmra.mrb[0].mxu0 %v5106
        %v5521 = vpop.f32.mrb[0].mxu0
        %v5522 = vadd.f32 %v5297, %v5521
        %v5523 = vpop.f32.mrb[0].mxu0
        %5524 = vmatprep.mubr.f32.mxu0 0.0
        %5525 = vmatmul.mubr.f32.gmra.mrb[0].mxu0 %v5109
        %v5526 = vpop.f32.mrb[0].mxu0
        %v5527 = vadd.f32 %v5302, %v5526
        %v5528 = vpop.f32.mrb[0].mxu0
        %5529 = vmatprep.mubr.f32.mxu0 0.0
        %5530 = vmatmul.mubr.f32.gmra.mrb[0].mxu0 %v5112
        %v5531 = vpop.f32.mrb[0].mxu0
        %v5532 = vadd.f32 %v5307, %v5531
        %v5533 = vpop.f32.mrb[0].mxu0
        %5534 = vmatprep.mubr.f32.mxu0 0.0
        %5535 = vmatmul.mubr.f32.gmra.mrb[0].mxu0 %v5115
        %v5536 = vpop.f32.mrb[0].mxu0
        %v5537 = vadd.f32 %v5312, %v5536
        %v5538 = vpop.f32.mrb[0].mxu0
        %5539 = vmatprep.mubr.f32.mxu0 0.0
        %5540 = vmatmul.mubr.f32.gmra.mrb[0].mxu0 %v5118
        %v5541 = vpop.f32.mrb[0].mxu0
        %v5542 = vadd.f32 %v5317, %v5541
        %v5543 = vpop.f32.mrb[0].mxu0
        %5544 = vmatprep.mubr.f32.mxu0 0.0
        %5545 = vmatmul.mubr.f32.gmra.mrb[0].mxu0 %v5121
        %v5546 = vpop.f32.mrb[0].mxu0
        %v5547 = vadd.f32 %v5322, %v5546
        %v5548 = vpop.f32.mrb[0].mxu0
        %5549 = vmatprep.mubr.f32.mxu0 0.0
        %5550 = vmatmul.mubr.f32.gmra.mrb[0].mxu0 %v5124
        %v5551 = vpop.f32.mrb[0].mxu0
        %v5552 = vadd.f32 %v5327, %v5551
        %v5553 = vpop.f32.mrb[0].mxu0
        %5554 = vmatprep.mubr.f32.mxu0 0.0
        %5555 = vmatmul.mubr.f32.gmra.mrb[0].mxu0 %v5127
        %v5556 = vpop.f32.mrb[0].mxu0
        %v5557 = vadd.f32 %v5332, %v5556
        %v5558 = vpop.f32.mrb[0].mxu0
        %5559 = vmatprep.mubr.f32.mxu0 0.0
        %5560 = vmatmul.mubr.f32.gmra.mrb[0].mxu0 %v5130
        %v5561 = vpop.f32.mrb[0].mxu0
        %v5562 = vadd.f32 %v5337, %v5561
        %v5563 = vpop.f32.mrb[0].mxu0
        %5564 = vmatprep.mubr.f32.mxu0 0.0
        %5565 = vmatmul.mubr.f32.gmra.mrb[0].mxu0 %v5133
        %v5566 = vpop.f32.mrb[0].mxu0
        %v5567 = vadd.f32 %v5342, %v5566
        %v5568 = vpop.f32.mrb[0].mxu0
        %5569 = vmatprep.mubr.f32.mxu0 0.0
        %5570 = vmatmul.mubr.f32.gmra.mrb[0].mxu0 %v5136
        %v5571 = vpop.f32.mrb[0].mxu0
        %v5572 = vadd.f32 %v5347, %v5571
        %v5573 = vpop.f32.mrb[0].mxu0
        %5574 = vmatprep.mubr.f32.mxu0 0.0
        %5575 = vmatmul.mubr.f32.gmra.mrb[0].mxu0 %v5139
        %v5576 = vpop.f32.mrb[0].mxu0
        %v5577 = vadd.f32 %v5352, %v5576
        %v5578 = vpop.f32.mrb[0].mxu0
        %5579 = vmatprep.mubr.f32.mxu0 0.0
        %5580 = vmatmul.mubr.f32.gmra.mrb[0].mxu0 %v5142
        %v5581 = vpop.f32.mrb[0].mxu0
        %v5582 = vadd.f32 %v5357, %v5581
        %v5583 = vpop.f32.mrb[0].mxu0
        %5584 = vmatprep.mubr.f32.mxu0 0.0
        %5585 = vmatmul.mubr.f32.gmra.mrb[0].mxu0 %v5145
        %v5586 = vpop.f32.mrb[0].mxu0
        %v5587 = vadd.f32 %v5362, %v5586
        %v5588 = vpop.f32.mrb[0].mxu0
        %5589 = vmatprep.mubr.f32.mxu0 0.0
        %5590 = vmatmul.mubr.f32.gmra.mrb[0].mxu0 %v5148
        %v5591 = vpop.f32.mrb[0].mxu0
        %v5592 = vadd.f32 %v5367, %v5591
        %v5593 = vpop.f32.mrb[0].mxu0
        %5594 = vmatprep.mubr.f32.mxu0 0.0
        %5595 = vmatmul.mubr.f32.gmra.mrb[0].mxu0 %v5151
        %v5596 = vpop.f32.mrb[0].mxu0
        %v5597 = vadd.f32 %v5372, %v5596
        %v5598 = vpop.f32.mrb[0].mxu0
        %5599 = vmatprep.mubr.f32.mxu0 0.0
        %5600 = vmatmul.mubr.f32.gmra.mrb[0].mxu0 %v5154
        %v5601 = vpop.f32.mrb[0].mxu0
        %v5602 = vadd.f32 %v5377, %v5601
        %v5603 = vpop.f32.mrb[0].mxu0
        %5604 = vmatprep.mubr.f32.mxu0 0.0
        %5605 = vmatmul.mubr.f32.gmra.mrb[0].mxu0 %v5157
        %v5606 = vpop.f32.mrb[0].mxu0
        %v5607 = vadd.f32 %v5382, %v5606
        %v5608 = vpop.f32.mrb[0].mxu0
        %5609 = vmatprep.mubr.f32.mxu0 0.0
        %5610 = vmatmul.mubr.f32.gmra.mrb[0].mxu0 %v5160
        %v5611 = vpop.f32.mrb[0].mxu0
        %v5612 = vadd.f32 %v5387, %v5611
        %v5613 = vpop.f32.mrb[0].mxu0
        %5614 = vdwg.mxu0
        %v5615 = vtanh.pop %v5457
        %v5616 = vtanh.pop %v5462
        %v5617 = vtanh.pop %v5467
        %v5618 = vtanh.pop %v5472
        %v5619 = vtanh.pop %v5477
        %v5620 = vtanh.pop %v5482
        %v5621 = vtanh.pop %v5487
        %v5622 = vtanh.pop %v5492
        %v5623 = vtanh.pop %v5497
        %v5624 = vtanh.pop %v5502
        %v5625 = vtanh.pop %v5507
        %v5626 = vtanh.pop %v5512
        %v5627 = vtanh.pop %v5517
        %v5628 = vtanh.pop %v5522
        %v5629 = vtanh.pop %v5527
        %v5630 = vtanh.pop %v5532
        %v5631 = vtanh.pop %v5537
        %v5632 = vtanh.pop %v5542
        %v5633 = vtanh.pop %v5547
        %v5634 = vtanh.pop %v5552
        %v5635 = vtanh.pop %v5557
        %v5636 = vtanh.pop %v5562
        %v5637 = vtanh.pop %v5567
        %v5638 = vtanh.pop %v5572
        %v5639 = vtanh.pop %v5577
        %v5640 = vtanh.pop %v5582
        %v5641 = vtanh.pop %v5587
        %v5642 = vtanh.pop %v5592
        %v5643 = vtanh.pop %v5597
        %v5644 = vtanh.pop %v5602
        %v5645 = vtanh.pop %v5607
        %v5646 = vtanh.pop %v5612
        %v5647 = vsub.f32 %v5615, %v302
        %v5648 = vsub.f32 %v5616, %v303
        %v5649 = vsub.f32 %v5617, %v304
        %v5650 = vsub.f32 %v5618, %v305
        %v5651 = vsub.f32 %v5619, %v306
        %v5652 = vsub.f32 %v5620, %v307
        %v5653 = vsub.f32 %v5621, %v308
        %v5654 = vsub.f32 %v5622, %v309
        %v5655 = vsub.f32 %v5623, %v310
        %v5656 = vsub.f32 %v5624, %v311
        %v5657 = vsub.f32 %v5625, %v312
        %v5658 = vsub.f32 %v5626, %v313
        %v5659 = vsub.f32 %v5627, %v314
        %v5660 = vsub.f32 %v5628, %v315
        %v5661 = vsub.f32 %v5629, %v316
        %v5662 = vsub.f32 %v5630, %v317
        %v5663 = vsub.f32 %v5631, %v318
        %v5664 = vsub.f32 %v5632, %v319
        %v5665 = vsub.f32 %v5633, %v320
        %v5666 = vsub.f32 %v5634, %v321
        %v5667 = vsub.f32 %v5635, %v322
        %v5668 = vsub.f32 %v5636, %v323
        %v5669 = vsub.f32 %v5637, %v324
        %v5670 = vsub.f32 %v5638, %v325
        %v5671 = vsub.f32 %v5639, %v326
        %v5672 = vsub.f32 %v5640, %v327
        %v5673 = vsub.f32 %v5641, %v328
        %v5674 = vsub.f32 %v5642, %v329
        %v5675 = vsub.f32 %v5643, %v330
        %v5676 = vsub.f32 %v5644, %v331
        %v5677 = vsub.f32 %v5645, %v332
        %v5678 = vsub.f32 %v5646, %v333
        %5711 = vrot.lane.b32.xlu0 %v5647, 32
        %v5712 = vpop.permute.xlu0 %5711
        %5713 = vrot.lane.b32.xlu0 %v5648, 32
        %v5714 = vpop.permute.xlu0 %5713
        %5715 = vrot.lane.b32.xlu0 %v5649, 32
        %v5716 = vpop.permute.xlu0 %5715
        %5717 = vrot.lane.b32.xlu0 %v5650, 32
        %v5718 = vpop.permute.xlu0 %5717
        %5719 = vrot.lane.b32.xlu0 %v5651, 32
        %v5720 = vpop.permute.xlu0 %5719
        %5721 = vrot.lane.b32.xlu0 %v5652, 32
        %v5722 = vpop.permute.xlu0 %5721
        %5723 = vrot.lane.b32.xlu0 %v5653, 32
        %v5724 = vpop.permute.xlu0 %5723
        %5725 = vrot.lane.b32.xlu0 %v5654, 32
        %v5726 = vpop.permute.xlu0 %5725
        %5727 = vrot.lane.b32.xlu0 %v5655, 32
        %v5728 = vpop.permute.xlu0 %5727
        %5729 = vrot.lane.b32.xlu0 %v5656, 32
        %v5730 = vpop.permute.xlu0 %5729
        %5731 = vrot.lane.b32.xlu0 %v5657, 32
        %v5732 = vpop.permute.xlu0 %5731
        %5733 = vrot.lane.b32.xlu0 %v5658, 32
        %v5734 = vpop.permute.xlu0 %5733
        %5735 = vrot.lane.b32.xlu0 %v5659, 32
        %v5736 = vpop.permute.xlu0 %5735
        %5737 = vrot.lane.b32.xlu0 %v5660, 32
        %v5738 = vpop.permute.xlu0 %5737
        %5739 = vrot.lane.b32.xlu0 %v5661, 32
        %v5740 = vpop.permute.xlu0 %5739
        %5741 = vrot.lane.b32.xlu0 %v5662, 32
        %v5742 = vpop.permute.xlu0 %5741
        %5743 = vrot.lane.b32.xlu0 %v5663, 32
        %v5744 = vpop.permute.xlu0 %5743
        %5745 = vrot.lane.b32.xlu0 %v5664, 32
        %v5746 = vpop.permute.xlu0 %5745
        %5747 = vrot.lane.b32.xlu0 %v5665, 32
        %v5748 = vpop.permute.xlu0 %5747
        %5749 = vrot.lane.b32.xlu0 %v5666, 32
        %v5750 = vpop.permute.xlu0 %5749
        %5751 = vrot.lane.b32.xlu0 %v5667, 32
        %v5752 = vpop.permute.xlu0 %5751
        %5753 = vrot.lane.b32.xlu0 %v5668, 32
        %v5754 = vpop.permute.xlu0 %5753
        %5755 = vrot.lane.b32.xlu0 %v5669, 32
        %v5756 = vpop.permute.xlu0 %5755
        %5757 = vrot.lane.b32.xlu0 %v5670, 32
        %v5758 = vpop.permute.xlu0 %5757
        %5759 = vrot.lane.b32.xlu0 %v5671, 32
        %v5760 = vpop.permute.xlu0 %5759
        %5761 = vrot.lane.b32.xlu0 %v5672, 32
        %v5762 = vpop.permute.xlu0 %5761
        %5763 = vrot.lane.b32.xlu0 %v5673, 32
        %v5764 = vpop.permute.xlu0 %5763
        %5765 = vrot.lane.b32.xlu0 %v5674, 32
        %v5766 = vpop.permute.xlu0 %5765
        %5767 = vrot.lane.b32.xlu0 %v5675, 32
        %v5768 = vpop.permute.xlu0 %5767
        %5769 = vrot.lane.b32.xlu0 %v5676, 32
        %v5770 = vpop.permute.xlu0 %5769
        %5771 = vrot.lane.b32.xlu0 %v5677, 32
        %v5772 = vpop.permute.xlu0 %5771
        %5773 = vrot.lane.b32.xlu0 %v5678, 32
        %v5774 = vpop.permute.xlu0 %5773
        %v5807 = vmul.f32 %v3099, %v5712
        %v5808 = vmul.f32 %v3101, %v5714
        %v5809 = vmul.f32 %v3103, %v5716
        %v5810 = vmul.f32 %v3105, %v5718
        %v5811 = vmul.f32 %v3107, %v5720
        %v5812 = vmul.f32 %v3109, %v5722
        %v5813 = vmul.f32 %v3111, %v5724
        %v5814 = vmul.f32 %v3113, %v5726
        %v5815 = vmul.f32 %v3115, %v5728
        %v5816 = vmul.f32 %v3117, %v5730
        %v5817 = vmul.f32 %v3119, %v5732
        %v5818 = vmul.f32 %v3121, %v5734
        %v5819 = vmul.f32 %v3123, %v5736
        %v5820 = vmul.f32 %v3125, %v5738
        %v5821 = vmul.f32 %v3127, %v5740
        %v5822 = vmul.f32 %v3129, %v5742
        %v5823 = vmul.f32 %v3131, %v5744
        %v5824 = vmul.f32 %v3133, %v5746
        %v5825 = vmul.f32 %v3135, %v5748
        %v5826 = vmul.f32 %v3137, %v5750
        %v5827 = vmul.f32 %v3139, %v5752
        %v5828 = vmul.f32 %v3141, %v5754
        %v5829 = vmul.f32 %v3143, %v5756
        %v5830 = vmul.f32 %v3145, %v5758
        %v5831 = vmul.f32 %v3147, %v5760
        %v5832 = vmul.f32 %v3149, %v5762
        %v5833 = vmul.f32 %v3151, %v5764
        %v5834 = vmul.f32 %v3153, %v5766
        %v5835 = vmul.f32 %v3155, %v5768
        %v5836 = vmul.f32 %v3157, %v5770
        %v5837 = vmul.f32 %v3159, %v5772
        %v5838 = vmul.f32 %v3161, %v5774
        %5871 = vrot.lane.b32.xlu0 %v5807, 96
        %v5872 = vpop.permute.xlu0 %5871
        %5873 = vrot.lane.b32.xlu0 %v5808, 96
        %v5874 = vpop.permute.xlu0 %5873
        %5875 = vrot.lane.b32.xlu0 %v5809, 96
        %v5876 = vpop.permute.xlu0 %5875
        %5877 = vrot.lane.b32.xlu0 %v5810, 96
        %v5878 = vpop.permute.xlu0 %5877
        %5879 = vrot.lane.b32.xlu0 %v5811, 96
        %v5880 = vpop.permute.xlu0 %5879
        %5881 = vrot.lane.b32.xlu0 %v5812, 96
        %v5882 = vpop.permute.xlu0 %5881
        %5883 = vrot.lane.b32.xlu0 %v5813, 96
        %v5884 = vpop.permute.xlu0 %5883
        %5885 = vrot.lane.b32.xlu0 %v5814, 96
        %v5886 = vpop.permute.xlu0 %5885
        %5887 = vrot.lane.b32.xlu0 %v5815, 96
        %v5888 = vpop.permute.xlu0 %5887
        %5889 = vrot.lane.b32.xlu0 %v5816, 96
        %v5890 = vpop.permute.xlu0 %5889
        %5891 = vrot.lane.b32.xlu0 %v5817, 96
        %v5892 = vpop.permute.xlu0 %5891
        %5893 = vrot.lane.b32.xlu0 %v5818, 96
        %v5894 = vpop.permute.xlu0 %5893
        %5895 = vrot.lane.b32.xlu0 %v5819, 96
        %v5896 = vpop.permute.xlu0 %5895
        %5897 = vrot.lane.b32.xlu0 %v5820, 96
        %v5898 = vpop.permute.xlu0 %5897
        %5899 = vrot.lane.b32.xlu0 %v5821, 96
        %v5900 = vpop.permute.xlu0 %5899
        %5901 = vrot.lane.b32.xlu0 %v5822, 96
        %v5902 = vpop.permute.xlu0 %5901
        %5903 = vrot.lane.b32.xlu0 %v5823, 96
        %v5904 = vpop.permute.xlu0 %5903
        %5905 = vrot.lane.b32.xlu0 %v5824, 96
        %v5906 = vpop.permute.xlu0 %5905
        %5907 = vrot.lane.b32.xlu0 %v5825, 96
        %v5908 = vpop.permute.xlu0 %5907
        %5909 = vrot.lane.b32.xlu0 %v5826, 96
        %v5910 = vpop.permute.xlu0 %5909
        %5911 = vrot.lane.b32.xlu0 %v5827, 96
        %v5912 = vpop.permute.xlu0 %5911
        %5913 = vrot.lane.b32.xlu0 %v5828, 96
        %v5914 = vpop.permute.xlu0 %5913
        %5915 = vrot.lane.b32.xlu0 %v5829, 96
        %v5916 = vpop.permute.xlu0 %5915
        %5917 = vrot.lane.b32.xlu0 %v5830, 96
        %v5918 = vpop.permute.xlu0 %5917
        %5919 = vrot.lane.b32.xlu0 %v5831, 96
        %v5920 = vpop.permute.xlu0 %5919
        %5921 = vrot.lane.b32.xlu0 %v5832, 96
        %v5922 = vpop.permute.xlu0 %5921
        %5923 = vrot.lane.b32.xlu0 %v5833, 96
        %v5924 = vpop.permute.xlu0 %5923
        %5925 = vrot.lane.b32.xlu0 %v5834, 96
        %v5926 = vpop.permute.xlu0 %5925
        %5927 = vrot.lane.b32.xlu0 %v5835, 96
        %v5928 = vpop.permute.xlu0 %5927
        %5929 = vrot.lane.b32.xlu0 %v5836, 96
        %v5930 = vpop.permute.xlu0 %5929
        %5931 = vrot.lane.b32.xlu0 %v5837, 96
        %v5932 = vpop.permute.xlu0 %5931
        %5933 = vrot.lane.b32.xlu0 %v5838, 96
        %v5934 = vpop.permute.xlu0 %5933
        %v5967 = vadd.f32 %v302, %v5872
        %v5968 = vadd.f32 %v303, %v5874
        %v5969 = vadd.f32 %v304, %v5876
        %v5970 = vadd.f32 %v305, %v5878
        %v5971 = vadd.f32 %v306, %v5880
        %v5972 = vadd.f32 %v307, %v5882
        %v5973 = vadd.f32 %v308, %v5884
        %v5974 = vadd.f32 %v309, %v5886
        %v5975 = vadd.f32 %v310, %v5888
        %v5976 = vadd.f32 %v311, %v5890
        %v5977 = vadd.f32 %v312, %v5892
        %v5978 = vadd.f32 %v313, %v5894
        %v5979 = vadd.f32 %v314, %v5896
        %v5980 = vadd.f32 %v315, %v5898
        %v5981 = vadd.f32 %v316, %v5900
        %v5982 = vadd.f32 %v317, %v5902
        %v5983 = vadd.f32 %v318, %v5904
        %v5984 = vadd.f32 %v319, %v5906
        %v5985 = vadd.f32 %v320, %v5908
        %v5986 = vadd.f32 %v321, %v5910
        %v5987 = vadd.f32 %v322, %v5912
        %v5988 = vadd.f32 %v323, %v5914
        %v5989 = vadd.f32 %v324, %v5916
        %v5990 = vadd.f32 %v325, %v5918
        %v5991 = vadd.f32 %v326, %v5920
        %v5992 = vadd.f32 %v327, %v5922
        %v5993 = vadd.f32 %v328, %v5924
        %v5994 = vadd.f32 %v329, %v5926
        %v5995 = vadd.f32 %v330, %v5928
        %v5996 = vadd.f32 %v331, %v5930
        %v5997 = vadd.f32 %v332, %v5932
        %v5998 = vadd.f32 %v333, %v5934
        %5999 = vst.msk [vmem:[%s259] sm:$0xff] %vm505, %v5967
        %6000 = vst.msk [vmem:[%s259 + $0x8] sm:$0xff] %vm505, %v5968
        %6001 = vst.msk [vmem:[%s259 + $0x10] sm:$0xff] %vm505, %v5969
        %6002 = vst.msk [vmem:[%s259 + $0x18] sm:$0xff] %vm505, %v5970
        %6003 = vst.msk [vmem:[%s259 + $0x20] sm:$0xff] %vm505, %v5971
        %6004 = vst.msk [vmem:[%s259 + $0x28] sm:$0xff] %vm505, %v5972
        %6005 = vst.msk [vmem:[%s259 + $0x30] sm:$0xff] %vm505, %v5973
        %6006 = vst.msk [vmem:[%s259 + $0x38] sm:$0xff] %vm505, %v5974
        %6007 = vst.msk [vmem:[%s259 + $0x40] sm:$0xff] %vm505, %v5975
        %6008 = vst.msk [vmem:[%s259 + $0x48] sm:$0xff] %vm505, %v5976
        %6009 = vst.msk [vmem:[%s259 + $0x50] sm:$0xff] %vm505, %v5977
        %6010 = vst.msk [vmem:[%s259 + $0x58] sm:$0xff] %vm505, %v5978
        %6011 = vst.msk [vmem:[%s259 + $0x60] sm:$0xff] %vm505, %v5979
        %6012 = vst.msk [vmem:[%s259 + $0x68] sm:$0xff] %vm505, %v5980
        %6013 = vst.msk [vmem:[%s259 + $0x70] sm:$0xff] %vm505, %v5981
        %6014 = vst.msk [vmem:[%s259 + $0x78] sm:$0xff] %vm505, %v5982
        %6015 = vst.msk [vmem:[%s259 + $0x80] sm:$0xff] %vm505, %v5983
        %6016 = vst.msk [vmem:[%s259 + $0x88] sm:$0xff] %vm505, %v5984
        %6017 = vst.msk [vmem:[%s259 + $0x90] sm:$0xff] %vm505, %v5985
        %6018 = vst.msk [vmem:[%s259 + $0x98] sm:$0xff] %vm505, %v5986
        %6019 = vst.msk [vmem:[%s259 + $0xa0] sm:$0xff] %vm505, %v5987
        %6020 = vst.msk [vmem:[%s259 + $0xa8] sm:$0xff] %vm505, %v5988
        %6021 = vst.msk [vmem:[%s259 + $0xb0] sm:$0xff] %vm505, %v5989
        %6022 = vst.msk [vmem:[%s259 + $0xb8] sm:$0xff] %vm505, %v5990
        %6023 = vst.msk [vmem:[%s259 + $0xc0] sm:$0xff] %vm505, %v5991
        %6024 = vst.msk [vmem:[%s259 + $0xc8] sm:$0xff] %vm505, %v5992
        %6025 = vst.msk [vmem:[%s259 + $0xd0] sm:$0xff] %vm505, %v5993
        %6026 = vst.msk [vmem:[%s259 + $0xd8] sm:$0xff] %vm505, %v5994
        %6027 = vst.msk [vmem:[%s259 + $0xe0] sm:$0xff] %vm505, %v5995
        %6028 = vst.msk [vmem:[%s259 + $0xe8] sm:$0xff] %vm505, %v5996
        %6029 = vst.msk [vmem:[%s259 + $0xf0] sm:$0xff] %vm505, %v5997
        %6030 = vst.msk [vmem:[%s259 + $0xf8] sm:$0xff] %vm505, %v5998
        %s6031 = sand.u32 %s164, 1
        %s6032 = scalar_lea.sflag [#allocation4], %s6031
        %s6033 = sand.u32 %s164, 1
        %s6034 = smul.addr %s6033, 256
        %s6035 = scalar_lea.vmem [#allocation3], %s6034
        // Predicated region
        $region45: #{tpu_custom_call.1} parent=43 // pred_check
          %p6036 = pneg %p174
        $region46: #{tpu_custom_call.1} parent=43 // pred_check_branch
          %6038 = sbr.rel (%p6036) target = $region48
        $region47: #{tpu_custom_call.1} parent=43 // pred_region
          %s6040 = ssub.s32 4096, 4096
          %6041 = vsyncadd %s6032, %s6040
          %s6042 = smul.addr %s20, 32
          %s6043 = smul.addr %s6042, 128
          %s6044 = scalar_lea.hbm %s6, %s6043
          %s6045 = sshll.u32 %s6035, 4
          %s6046 = int_to_ptr.vmem [resolvable:$true] %s6045
          %6051 = dma.vmem_to_hbm [thread:$0]  %s6046, 4096, %s6044, %s6032, 128, 128, 8
        $region48: #{tpu_custom_call.1} parent=43 // pred_fallthru
          _
      $region44: #{tpu_custom_call.1} parent=5 // pred_fallthru
        _
      %p6052 = scmp.le.s32.totalorder 2, %s15
      // Predicated region
      $region49: #{tpu_custom_call.1} parent=5 // pred_check
        %p6053 = pneg %p6052
      $region50: #{tpu_custom_call.1} parent=5 // pred_check_branch
        %6055 = sbr.rel (%p6053) target = $region52
      $region51: #{tpu_custom_call.1} parent=5 // pred_region
        %s6056 = ssub.s32 %s15, 2
        // Predicated region
        $region53: #{tpu_custom_call.1} parent=51 // pred_check
          %p6057 = pneg %p180
        $region54: #{tpu_custom_call.1} parent=51 // pred_check_branch
          %6059 = sbr.rel (%p6057) target = $region56
        $region55: #{tpu_custom_call.1} parent=51 // pred_region
          %s6060 = sand.u32 %s165, 1
          %s6061 = scalar_lea.sflag [#allocation4], %s6060
          %s6062 = sand.u32 %s165, 1
          %s6063 = smul.addr %s6062, 256
          %s6064 = scalar_lea.vmem [#allocation3], %s6063
          %6065 = dma.done %s6061, 4096
        $region56: #{tpu_custom_call.1} parent=51 // pred_fallthru
          _
      $region52: #{tpu_custom_call.1} parent=5 // pred_fallthru
        _
    $region6: #{tpu_custom_call.1} parent=1 // loop_footer
      %s19 = sadd.s32 1, %s15
    $region7: #{tpu_custom_call.1} parent=1 // loop_footer_branch
      %14 = sbr.rel target = $region3
    $region8: #{tpu_custom_call.1} parent=1 // loop_exit
      _
    %6066 = vsyncpa [#allocation4], 1
    %s6067 = scalar_lea.sflag [#allocation4], 1
    %6068 = vsyncpa %s6067, 1

</llo_original>
